<compile_context>
chip_gen: v6e
topology: v6e:2x2x1
jax: 0.10.0
libtpu: 0.0.40
codegen_flags: <defaults>
</compile_context>

<pallas_src>
import functools
import math

import jax
import jax.numpy as jnp
from jax import lax
from jax.experimental import pallas as pl
from jax.experimental.pallas import tpu as pltpu

# ------------------------------ configuration -------------------------------
N_QUESTION = 15        # q-matrix width = n_question + 1 = 16
N_PID = 12             # embedding rows = n_pid + 1 = 13
D_MODEL = 32
N_BLOCKS = 1           # reference code only supports 1 (blocks_for_h has 1 layer)
N_HEADS = 2
D_FF = 64
FINAL_FC_DIM = 64
L2 = 1e-5
BATCH = 2
SEQLEN = 8

NQ1 = N_QUESTION + 1

# --------------------------- parameter slab layouts --------------------------
_WMAT_ORDER = (
    'emb_w', 'emb_wblk',
    'y_k_w', 'y_v_w', 'y_out_w', 'y_ff1_w', 'y_ff2_w',
    'x_k_w', 'x_v_w', 'x_out_w',
    'h_k_w', 'h_v_w', 'h_out_w', 'h_ff1_w', 'h_ff2_w',
    'o_w1',
)
_W_IDX = {n: i for i, n in enumerate(_WMAT_ORDER)}
_WMAT_PAD = 64          # every weight matrix zero-padded into a (64, 64) tile

_VEC_ORDER = (
    # fused embedding projection
    ('emb_b', D_MODEL), ('emb_bblk', 2 * D_MODEL),
    ('emb_ln1_g', D_MODEL), ('emb_ln1_b', D_MODEL),
    ('emb_ln2_g', 2 * D_MODEL), ('emb_ln2_b', 2 * D_MODEL),
    # y transformer layer (d_model = 2*D)
    ('y_k_b', 2 * D_MODEL), ('y_v_b', 2 * D_MODEL), ('y_out_b', 2 * D_MODEL),
    ('y_ln1_g', 2 * D_MODEL), ('y_ln1_b', 2 * D_MODEL),
    ('y_ff1_b', D_FF), ('y_ff2_b', 2 * D_MODEL),
    ('y_ln2_g', 2 * D_MODEL), ('y_ln2_b', 2 * D_MODEL),
    # x transformer layer (d_model = D, FFN unused: apply_pos=False)
    ('x_k_b', D_MODEL), ('x_v_b', D_MODEL), ('x_out_b', D_MODEL),
    ('x_ln1_g', D_MODEL), ('x_ln1_b', D_MODEL),
    # h transformer layer (d_model = D, v_len = 2*D)
    ('h_k_b', D_MODEL), ('h_v_b', 2 * D_MODEL), ('h_out_b', D_MODEL),
    ('h_ln1_g', D_MODEL), ('h_ln1_b', D_MODEL),
    ('h_ff1_b', D_FF), ('h_ff2_b', D_MODEL),
    ('h_ln2_g', D_MODEL), ('h_ln2_b', D_MODEL),
    # output head
    ('o_ln0_gd', D_MODEL), ('o_ln0_gq', D_MODEL),
    ('o_ln0_bd', D_MODEL), ('o_ln0_bq', D_MODEL),
    ('o_b1', FINAL_FC_DIM), ('o_ln1_g', FINAL_FC_DIM), ('o_ln1_b', FINAL_FC_DIM),
    ('o_b2', 256), ('o_ln2_g', 256), ('o_ln2_b', 256),
    ('o_w3', 256), ('o_b3', 1),
) + tuple(('gam_%s%d' % (p, h), 1)              # -softplus(gamma), lane 0
          for p in ('y', 'x', 'h') for h in range(N_HEADS))
_VEC_IDX = {name: i for i, (name, _) in enumerate(_VEC_ORDER)}
_VEC_PAD = 256


# ============================ the fused kernel ===============================
def _qakt_kernel(qd_ref, qa_ref, pid_ref, wm_ref, w2_ref, vec_ref, out_ref, *,
                 S, D, H):
    f32 = jnp.float32
    bf16 = jnp.bfloat16

    def vec(name, width):
        i = _VEC_IDX[name]
        return vec_ref[i:i + 1, :width]                      # (1, width) f32

    def mat(name, r, c):
        return wm_ref[_W_IDX[name]][:r, :c]                  # (r, c) bf16

    def mm(x, w):
        # bf16 MXU inputs, f32 accumulation (VPU math stays in f32)
        return jnp.dot(x.astype(bf16), w.astype(bf16),
                       preferred_element_type=f32)

    def ln(x, g, b, eps=1e-5):
        mu = jnp.mean(x, axis=-1, keepdims=True)
        xc = x - mu
        var = jnp.mean(xc * xc, axis=-1, keepdims=True)
        return xc * lax.rsqrt(var + eps) * g + b

    # ---- mask / distance constants: built once, shared by all 3 layers ----
    row = lax.broadcasted_iota(jnp.int32, (S, S), 0)         # query index i
    col = lax.broadcasted_iota(jnp.int32, (S, S), 1)         # key index j
    causal_m = col <= row                                    # mask_flag == 1
    strict_m = col < row                                     # mask_flag == 0
    cum_mat = (row <= col).astype(f32)                       # MXU cumsum along keys
    pos_eff = jnp.abs(row - col).astype(f32)
    neg_inf = f32(-1e32)

    def mha_layer(xq, xv, pfx, *, Dq, Dv, strict_mask, zero_pad, apply_pos, Dff):
        """TransformerLayer (kq_same=True, query==key).  xq:(S,Dq) xv:(S,Dv)."""
        d_k, d_v = Dq // H, Dv // H
        allowed = strict_m if strict_mask else causal_m
        allowed_f = allowed.astype(f32)
        scale = 1.0 / math.sqrt(d_k)

        # lane-dense projections, all heads at once (q == k)
        q = mm(xq, mat(pfx + '_k_w', Dq, Dq)) + vec(pfx + '_k_b', Dq)     # (S, Dq)
        v = mm(xv, mat(pfx + '_v_w', Dv, Dv)) + vec(pfx + '_v_b', Dv)     # (S, Dv)

        attn = jnp.zeros((S, Dq), f32)
        # TODO(synk): fold the head loop into one batched einsum if n_heads grows.
        for h in range(H):                                    # static unroll (H=2)
            qh = q[:, h * d_k:(h + 1) * d_k]
            vh = v[:, h * d_v:(h + 1) * d_v]
            scores = jnp.einsum('qd,kd->qk', qh.astype(bf16), qh.astype(bf16),
                                preferred_element_type=f32) * scale

            # distance-decay branch (torch.no_grad in the reference)
            s1 = jnp.where(allowed, scores, neg_inf)
            e1 = jnp.exp(s1 - jnp.max(s1, axis=-1, keepdims=True))
            p1 = e1 * pl.reciprocal(jnp.sum(e1, axis=-1, keepdims=True),
                                    approx=True) * allowed_f
            distcum = jnp.dot(p1, cum_mat, preferred_element_type=f32)
            disttot = jnp.sum(p1, axis=-1, keepdims=True)
            dist = lax.stop_gradient(
                jnp.sqrt(jnp.maximum((disttot - distcum) * pos_eff, 0.0)))
            gamma = vec('gam_%s%d' % (pfx, h), 1)             # (1,1) -softplus(gamma)
            total_effect = jnp.clip(jnp.exp(dist * gamma), 1e-5, 1e5)

            s2 = jnp.where(allowed, scores * total_effect, neg_inf)
            e2 = jnp.exp(s2 - jnp.max(s2, axis=-1, keepdims=True))
            p2 = e2 * pl.reciprocal(jnp.sum(e2, axis=-1, keepdims=True), approx=True)
            if zero_pad:
                p2 = jnp.where(row == 0, 0.0, p2)

            oh = mm(p2, vh)                                   # (S, d_v)
            # head-h slab of out_proj -> accumulate directly in concat layout
            ow_h = wm_ref[_W_IDX[pfx + '_out_w']][h * d_v:(h + 1) * d_v, :Dq]
            attn = attn + mm(oh, ow_h)

        x = xq + attn + vec(pfx + '_out_b', Dq)               # residual (dropout = id)
        x = ln(x, vec(pfx + '_ln1_g', Dq), vec(pfx + '_ln1_b', Dq))
        if apply_pos:
            hid = jnp.maximum(mm(x, mat(pfx + '_ff1_w', Dq, Dff))
                              + vec(pfx + '_ff1_b', Dff), 0.0)
            ffo = mm(hid, mat(pfx + '_ff2_w', Dff, Dq)) + vec(pfx + '_ff2_b', Dq)
            x = ln(x + ffo, vec(pfx + '_ln2_g', Dq), vec(pfx + '_ln2_b', Dq))
        return x

    # ------------------------------ embeddings -------------------------------
    xq_in = qd_ref[...].reshape(S, NQ1)                       # sigmoid(q-matrix row)
    xa_in = qa_ref[...].reshape(S, 2 * NQ1)                   # [pos | neg]
    pid = pid_ref[...].reshape(S, 1)

    # q stream: Linear+ReLU, /row-sum, +pid, LayerNorm(D)
    sq = jnp.sum(xq_in, axis=-1, keepdims=True)               # >0 (sigmoid inputs)
    eq = jnp.maximum(mm(xq_in, mat('emb_w', NQ1, D)) + vec('emb_b', D), 0.0)
    eq = eq * pl.reciprocal(sq, approx=True) + pid
    q_embed = ln(eq, vec('emb_ln1_g', D), vec('emb_ln1_b', D))            # (S, D)

    # qa stream: block-diag(W,W) -> [pos-proj | neg-proj]; per-half normalisers
    lane_in = lax.broadcasted_iota(jnp.int32, (S, 2 * NQ1), 1)
    s_pos = jnp.sum(jnp.where(lane_in < NQ1, xa_in, 0.0), axis=-1, keepdims=True)
    s_neg = jnp.sum(xa_in, axis=-1, keepdims=True) - s_pos
    ea = jnp.maximum(mm(xa_in, mat('emb_wblk', 2 * NQ1, 2 * D))
                     + vec('emb_bblk', 2 * D), 0.0)
    lane_out = lax.broadcasted_iota(jnp.int32, (S, 2 * D), 1)
    ea = ea * pl.reciprocal(jnp.where(lane_out < D, s_pos, s_neg), approx=True) + pid
    qa_embed = ln(ea, vec('emb_ln2_g', 2 * D), vec('emb_ln2_b', 2 * D))   # (S, 2D)

    # ------------------------------ architecture -----------------------------
    y = mha_layer(qa_embed, qa_embed, 'y', Dq=2 * D, Dv=2 * D,
                  strict_mask=False, zero_pad=False, apply_pos=True, Dff=D_FF)
    x = mha_layer(q_embed, q_embed, 'x', Dq=D, Dv=D,
                  strict_mask=False, zero_pad=False, apply_pos=False, Dff=D_FF)
    x = mha_layer(x, y, 'h', Dq=D, Dv=2 * D,
                  strict_mask=True, zero_pad=True, apply_pos=True, Dff=D_FF)

    # ------------------------------ output head ------------------------------
    # LayerNorm over the virtual concat [x | q_embed] (width 2D): shared
    # mean/var, per-half affine, per-half W1 slabs (no lane concat needed).
    n2 = 2.0 * D
    mu = (jnp.sum(x, -1, keepdims=True) + jnp.sum(q_embed, -1, keepdims=True)) / n2
    dd = x - mu
    qq = q_embed - mu
    var = (jnp.sum(dd * dd, -1, keepdims=True)
           + jnp.sum(qq * qq, -1, keepdims=True)) / n2
    rstd = lax.rsqrt(var + 1e-5)
    h0d = dd * rstd * vec('o_ln0_gd', D) + vec('o_ln0_bd', D)
    h0q = qq * rstd * vec('o_ln0_gq', D) + vec('o_ln0_bq', D)

    w1 = wm_ref[_W_IDX['o_w1']]
    h1 = jnp.maximum(mm(h0d, w1[:D, :FINAL_FC_DIM])
                     + mm(h0q, w1[D:2 * D, :FINAL_FC_DIM])
                     + vec('o_b1', FINAL_FC_DIM), 0.0)
    h1 = ln(h1, vec('o_ln1_g', FINAL_FC_DIM), vec('o_ln1_b', FINAL_FC_DIM))
    h2 = jnp.maximum(mm(h1, w2_ref[...]) + vec('o_b2', 256), 0.0)
    h2 = ln(h2, vec('o_ln2_g', 256), vec('o_ln2_b', 256))
    # final 256 -> 1 as multiply + lane-reduce; store a lane-dense (S,128) tile
    logit = jnp.sum(h2 * vec('o_w3', 256), axis=-1, keepdims=True) + vec('o_b3', 1)
    out_ref[...] = jnp.broadcast_to(logit, (S, 128))


# ============================== forward wrapper ==============================
def qakt_forward(packed, p_data, pa_data, target):
    B, S = p_data.shape
    Wp = packed['p_embed_w']                                  # (n_pid+1, nq+1)
    q_data = jax.nn.sigmoid(Wp[p_data])                       # (B, S, nq+1)
    pa_pos = jnp.where(pa_data > N_PID, pa_data - N_PID, 0)
    pa_neg = jnp.where(pa_data <= N_PID, pa_data, 0)
    qa_in = jnp.concatenate(
        [jax.nn.sigmoid(Wp[pa_pos]), jax.nn.sigmoid(Wp[pa_neg])], axis=-1)
    pid_embed = packed['difficult_w'][p_data]                 # (B, S, 1)

    kern = functools.partial(_qakt_kernel, S=S, D=D_MODEL, H=N_HEADS)
    logits_pad = pl.pallas_call(
        kern,
        out_shape=jax.ShapeDtypeStruct((B * S, 128), jnp.float32),
        grid=(B,),
        in_specs=[
            pl.BlockSpec((1, S, NQ1), lambda b: (b, 0, 0)),
            pl.BlockSpec((1, S, 2 * NQ1), lambda b: (b, 0, 0)),
            pl.BlockSpec((1, S, 1), lambda b: (b, 0, 0)),
            pl.BlockSpec((len(_WMAT_ORDER), _WMAT_PAD, _WMAT_PAD),
                         lambda b: (0, 0, 0)),
            pl.BlockSpec((FINAL_FC_DIM, 256), lambda b: (0, 0)),
            pl.BlockSpec((len(_VEC_ORDER), _VEC_PAD), lambda b: (0, 0)),
        ],
        out_specs=pl.BlockSpec((S, 128), lambda b: (b, 0)),
        compiler_params=pltpu.CompilerParams(
            dimension_semantics=("parallel",)),   # v7x: one batch row per TensorCore
    )(q_data, qa_in, pid_embed, packed['wmats'], packed['w2'], packed['vecs'])

    preds = logits_pad[:, 0]                                  # (B*S,)

    c_reg_loss = jnp.sum(pid_embed ** 2.0) * L2
    sparse_loss = jnp.sum(0.5 - jnp.abs(q_data - 0.5))        # qm is None branch

    labels = target.reshape(-1)
    mask = labels > -1
    yv = labels.astype(jnp.float32)
    xv = preds
    # BCEWithLogits (stable), masked sum
    bce = jnp.maximum(xv, 0.0) - xv * yv + jnp.log1p(jnp.exp(-jnp.abs(xv)))
    loss_sum = jnp.sum(jnp.where(mask, bce, 0.0))
    return loss_sum + c_reg_loss + sparse_loss, jax.nn.sigmoid(preds), jnp.sum(mask)


# ============================ one-time param packing =========================
def pack_params(params):
    """Packs all weights into 3 slabs.  Call once, outside the hot path."""
    D = D_MODEL
    arch = params['arch']
    yb = arch['blocks_y'][0]
    xb = arch['blocks_x'][0]
    hb = arch['blocks_h'][0]

    w = params['q_embed_w']                                   # (nq+1, D)
    wblk = jnp.zeros((2 * NQ1, 2 * D), jnp.float32)
    wblk = wblk.at[:NQ1, :D].set(w).at[NQ1:, D:].set(w)       # block-diag(W, W)

    mats = {
        'emb_w': w, 'emb_wblk': wblk,
        'y_k_w': yb['attn']['k_w'], 'y_v_w': yb['attn']['v_w'],
        'y_out_w': yb['attn']['out_w'], 'y_ff1_w': yb['ff1_w'], 'y_ff2_w': yb['ff2_w'],
        'x_k_w': xb['attn']['k_w'], 'x_v_w': xb['attn']['v_w'],
        'x_out_w': xb['attn']['out_w'],
        'h_k_w': hb['attn']['k_w'], 'h_v_w': hb['attn']['v_w'],
        'h_out_w': hb['attn']['out_w'], 'h_ff1_w': hb['ff1_w'], 'h_ff2_w': hb['ff2_w'],
        'o_w1': params['out_w1'],
    }
    wm = jnp.zeros((len(_WMAT_ORDER), _WMAT_PAD, _WMAT_PAD), jnp.float32)
    for name in _WMAT_ORDER:
        m = mats[name]
        wm = wm.at[_W_IDX[name], :m.shape[0], :m.shape[1]].set(m)

    gam = {}
    for pfx, blk in (('y', yb), ('x', xb), ('h', hb)):
        ng = -jax.nn.softplus(blk['attn']['gammas'])          # (H,)
        for h in range(N_HEADS):
            gam['gam_%s%d' % (pfx, h)] = ng[h:h + 1]

    vec_entries = {
        'emb_b': params['q_embed_b'],
        'emb_bblk': jnp.concatenate([params['q_embed_b'], params['q_embed_b']]),
        'emb_ln1_g': params['ln1_g'], 'emb_ln1_b': params['ln1_b'],
        'emb_ln2_g': params['ln2_g'], 'emb_ln2_b': params['ln2_b'],
        'y_k_b': yb['attn']['k_b'], 'y_v_b': yb['attn']['v_b'],
        'y_out_b': yb['attn']['out_b'],
        'y_ln1_g': yb['ln1_g'], 'y_ln1_b': yb['ln1_b'],
        'y_ff1_b': yb['ff1_b'], 'y_ff2_b': yb['ff2_b'],
        'y_ln2_g': yb['ln2_g'], 'y_ln2_b': yb['ln2_b'],
        'x_k_b': xb['attn']['k_b'], 'x_v_b': xb['attn']['v_b'],
        'x_out_b': xb['attn']['out_b'],
        'x_ln1_g': xb['ln1_g'], 'x_ln1_b': xb['ln1_b'],
        'h_k_b': hb['attn']['k_b'], 'h_v_b': hb['attn']['v_b'],
        'h_out_b': hb['attn']['out_b'],
        'h_ln1_g': hb['ln1_g'], 'h_ln1_b': hb['ln1_b'],
        'h_ff1_b': hb['ff1_b'], 'h_ff2_b': hb['ff2_b'],
        'h_ln2_g': hb['ln2_g'], 'h_ln2_b': hb['ln2_b'],
        'o_ln0_gd': params['out_ln0_g'][:D], 'o_ln0_gq': params['out_ln0_g'][D:],
        'o_ln0_bd': params['out_ln0_b'][:D], 'o_ln0_bq': params['out_ln0_b'][D:],
        'o_b1': params['out_b1'],
        'o_ln1_g': params['out_ln1_g'], 'o_ln1_b': params['out_ln1_b'],
        'o_b2': params['out_b2'],
        'o_ln2_g': params['out_ln2_g'], 'o_ln2_b': params['out_ln2_b'],
        'o_w3': params['out_w3'].reshape(-1), 'o_b3': params['out_b3'],
        **gam,
    }
    vecs = jnp.zeros((len(_VEC_ORDER), _VEC_PAD), jnp.float32)
    for name, width in _VEC_ORDER:
        v = jnp.asarray(vec_entries[name], jnp.float32).reshape(-1)
        assert v.shape[0] == width, (name, v.shape, width)
        vecs = vecs.at[_VEC_IDX[name], :width].set(v)

    return dict(
        p_embed_w=params['p_embed_w'],
        difficult_w=params['difficult_w'],
        wmats=wm.astype(jnp.bfloat16),
        w2=params['out_w2'].astype(jnp.bfloat16),
        vecs=vecs,
    )


# =============================== parameter init ==============================
def _xavier(key, shape):
    fan_in, fan_out = shape
    limit = math.sqrt(6.0 / (fan_in + fan_out))
    return jax.random.uniform(key, shape, jnp.float32, -limit, limit)


def init_mha_params(key, d_model, v_len, n_heads):
    k0, k1, k2, k3 = jax.random.split(key, 4)
    return dict(
        k_w=_xavier(k0, (d_model, d_model)), k_b=jnp.zeros((d_model,), jnp.float32),
        v_w=_xavier(k1, (v_len, v_len)), v_b=jnp.zeros((v_len,), jnp.float32),
        out_w=_xavier(k2, (v_len, d_model)), out_b=jnp.zeros((d_model,), jnp.float32),
        gammas=jax.random.uniform(k3, (n_heads,), jnp.float32, -0.5, 0.5),
    )


def init_layer_params(key, d_model, v_len, d_ff, n_heads):
    k0, k1, k2 = jax.random.split(key, 3)
    return dict(
        attn=init_mha_params(k0, d_model, v_len, n_heads),
        ln1_g=jnp.ones((d_model,), jnp.float32), ln1_b=jnp.zeros((d_model,), jnp.float32),
        ff1_w=_xavier(k1, (d_model, d_ff)), ff1_b=jnp.zeros((d_ff,), jnp.float32),
        ff2_w=_xavier(k2, (d_ff, d_model)), ff2_b=jnp.zeros((d_model,), jnp.float32),
        ln2_g=jnp.ones((d_model,), jnp.float32), ln2_b=jnp.zeros((d_model,), jnp.float32),
    )


def init_qakt_params(key):
    ks = jax.random.split(key, 9)
    arch = dict(
        blocks_y=[init_layer_params(ks[0], 2 * D_MODEL, 2 * D_MODEL, D_FF, N_HEADS)
                  for _ in range(N_BLOCKS)],
        blocks_x=[init_layer_params(ks[1], D_MODEL, D_MODEL, D_FF, N_HEADS)
                  for _ in range(N_BLOCKS)],
        blocks_h=[init_layer_params(ks[2], D_MODEL, 2 * D_MODEL, D_FF, N_HEADS)],
    )
    return dict(
        # NOTE: reference reset() zeroes p_embed / difficult_param; small non-zero
        # values are used here so the kernel is exercised non-trivially.
        p_embed_w=0.1 * jax.random.normal(ks[3], (N_PID + 1, NQ1), jnp.float32),
        difficult_w=0.1 * jax.random.normal(ks[4], (N_PID + 1, 1), jnp.float32),
        q_embed_w=_xavier(ks[5], (NQ1, D_MODEL)),
        q_embed_b=jnp.zeros((D_MODEL,), jnp.float32),
        ln1_g=jnp.ones((D_MODEL,), jnp.float32), ln1_b=jnp.zeros((D_MODEL,), jnp.float32),
        ln2_g=jnp.ones((2 * D_MODEL,), jnp.float32), ln2_b=jnp.zeros((2 * D_MODEL,), jnp.float32),
        arch=arch,
        out_ln0_g=jnp.ones((2 * D_MODEL,), jnp.float32),
        out_ln0_b=jnp.zeros((2 * D_MODEL,), jnp.float32),
        out_w1=_xavier(ks[6], (2 * D_MODEL, FINAL_FC_DIM)),
        out_b1=jnp.zeros((FINAL_FC_DIM,), jnp.float32),
        out_ln1_g=jnp.ones((FINAL_FC_DIM,), jnp.float32),
        out_ln1_b=jnp.zeros((FINAL_FC_DIM,), jnp.float32),
        out_w2=_xavier(ks[7], (FINAL_FC_DIM, 256)), out_b2=jnp.zeros((256,), jnp.float32),
        out_ln2_g=jnp.ones((256,), jnp.float32), out_ln2_b=jnp.zeros((256,), jnp.float32),
        out_w3=_xavier(ks[8], (256, 1)), out_b3=jnp.zeros((1,), jnp.float32),
    )


# ==================================== main ===================================
if __name__ == "__main__":
    root = jax.random.PRNGKey(0)
    kp, kd1, kd2, kd3 = jax.random.split(root, 4)
    params = init_qakt_params(kp)
    packed = pack_params(params)        # one-time packing, outside the hot path

    p_data = jax.random.randint(kd1, (BATCH, SEQLEN), 0, N_PID + 1, dtype=jnp.int32)
    pa_data = jax.random.randint(kd2, (BATCH, SEQLEN), 0, 2 * N_PID + 1, dtype=jnp.int32)
    target = jax.random.randint(kd3, (BATCH, SEQLEN), -1, 2, dtype=jnp.int32)

    fwd = jax.jit(qakt_forward)
    loss, preds, n_valid = fwd(packed, p_data, pa_data, target)
    jax.block_until_ready((loss, preds, n_valid))
    print("KERNEL_OK")
</pallas_src>

<mosaic_0001>
module attributes {stable_mosaic.version = 11 : i64} {
  func.func @_qakt_kernel(%arg0: i32, %arg1: memref<1x8x16xf32, #tpu.memory_space<vmem>>, %arg2: memref<1x8x32xf32, #tpu.memory_space<vmem>>, %arg3: memref<1x8x1xf32, #tpu.memory_space<vmem>>, %arg4: memref<16x64x64xbf16, #tpu.memory_space<vmem>>, %arg5: memref<64x256xbf16, #tpu.memory_space<vmem>>, %arg6: memref<47x256xf32, #tpu.memory_space<vmem>>, %arg7: memref<8x128xf32, #tpu.memory_space<vmem>>) attributes {dimension_semantics = [#tpu.dimension_semantics<parallel>], iteration_bounds = array<i64: 2>, scalar_prefetch = 0 : i64, scratch_operands = 0 : i64, tpu.core_type = #tpu.core_type<tc>, window_params = [{transform_indices = @transform_0, window_bounds = array<i64: 1, 8, 16>}, {transform_indices = @transform_1, window_bounds = array<i64: 1, 8, 32>}, {transform_indices = @transform_2, window_bounds = array<i64: 1, 8, 1>}, {pipeline_mode = #tpu.pipeline_mode<synchronous>, transform_indices = @transform_3, window_bounds = array<i64: 16, 64, 64>}, {pipeline_mode = #tpu.pipeline_mode<synchronous>, transform_indices = @transform_4, window_bounds = array<i64: 64, 256>}, {pipeline_mode = #tpu.pipeline_mode<synchronous>, transform_indices = @transform_5, window_bounds = array<i64: 47, 256>}, {transform_indices = @transform_6, window_bounds = array<i64: 8, 128>}]} {
    %0 = tpu.iota {dimensions = array<i32: 0>} : vector<8x8xi32>
    %1 = tpu.iota {dimensions = array<i32: 1>} : vector<8x8xi32>
    %2 = arith.cmpi sle, %1, %0 : vector<8x8xi32>
    %3 = arith.cmpi slt, %1, %0 : vector<8x8xi32>
    %4 = arith.cmpi sle, %0, %1 : vector<8x8xi32>
    %5 = arith.extui %4 : vector<8x8xi1> to vector<8x8xi32>
    %6 = arith.sitofp %5 : vector<8x8xi32> to vector<8x8xf32>
    %7 = arith.subi %0, %1 : vector<8x8xi32>
    %8 = math.absi %7 : vector<8x8xi32>
    %9 = arith.sitofp %8 : vector<8x8xi32> to vector<8x8xf32>
    %c0 = arith.constant 0 : index
    %c0_0 = arith.constant 0 : index
    %c0_1 = arith.constant 0 : index
    %10 = vector.load %arg1[%c0, %c0_0, %c0_1] : memref<1x8x16xf32, #tpu.memory_space<vmem>>, vector<1x8x16xf32>
    %11 = vector.shape_cast %10 : vector<1x8x16xf32> to vector<8x16xf32>
    %c0_2 = arith.constant 0 : index
    %c0_3 = arith.constant 0 : index
    %c0_4 = arith.constant 0 : index
    %12 = vector.load %arg2[%c0_2, %c0_3, %c0_4] : memref<1x8x32xf32, #tpu.memory_space<vmem>>, vector<1x8x32xf32>
    %13 = vector.shape_cast %12 : vector<1x8x32xf32> to vector<8x32xf32>
    %c0_5 = arith.constant 0 : index
    %c0_6 = arith.constant 0 : index
    %c0_7 = arith.constant 0 : index
    %14 = vector.load %arg3[%c0_5, %c0_6, %c0_7] : memref<1x8x1xf32, #tpu.memory_space<vmem>>, vector<1x8x1xf32>
    %15 = vector.shape_cast %14 : vector<1x8x1xf32> to vector<8x1xf32>
    %cst = arith.constant dense<0.000000e+00> : vector<8xf32>
    %16 = vector.multi_reduction <add>, %11, %cst [1] : vector<8x16xf32> to vector<8xf32>
    %17 = vector.shape_cast %16 : vector<8xf32> to vector<8x1xf32>
    %c0_8 = arith.constant 0 : index
    %c0_9 = arith.constant 0 : index
    %c0_10 = arith.constant 0 : index
    %18 = vector.load %arg4[%c0_8, %c0_9, %c0_10] : memref<16x64x64xbf16, #tpu.memory_space<vmem>>, vector<1x64x64xbf16>
    %19 = vector.shape_cast %18 : vector<1x64x64xbf16> to vector<64x64xbf16>
    %20 = vector.extract_strided_slice %19 {offsets = [0, 0], sizes = [16, 32], strides = [1, 1]} : vector<64x64xbf16> to vector<16x32xbf16>
    %21 = arith.truncf %11 : vector<8x16xf32> to vector<8x16xbf16>
    %cst_11 = arith.constant dense<0.000000e+00> : vector<8x32xf32>
    %22 = tpu.matmul %21, %20, %cst_11 {dimension_numbers = #tpu.dot_dimension_numbers<[1], [0], [0], [1], [0, 0, 1, 1], [], []>} : vector<8x16xbf16>, vector<16x32xbf16>, vector<8x32xf32> -> vector<8x32xf32>
    %c0_12 = arith.constant 0 : index
    %c0_13 = arith.constant 0 : index
    %23 = vector.load %arg6[%c0_12, %c0_13] : memref<47x256xf32, #tpu.memory_space<vmem>>, vector<1x32xf32>
    %24 = vector.broadcast %23 : vector<1x32xf32> to vector<8x32xf32>
    %25 = arith.addf %22, %24 : vector<8x32xf32>
    %cst_14 = arith.constant 0.000000e+00 : f32
    %26 = vector.broadcast %cst_14 : f32 to vector<8x32xf32>
    %27 = arith.maximumf %25, %26 : vector<8x32xf32>
    %28 = tpu.reciprocal %17 {approx = true} : vector<8x1xf32> -> vector<8x1xf32>
    %29 = vector.broadcast %28 : vector<8x1xf32> to vector<8x32xf32>
    %30 = arith.mulf %27, %29 : vector<8x32xf32>
    %31 = vector.broadcast %15 : vector<8x1xf32> to vector<8x32xf32>
    %32 = arith.addf %30, %31 : vector<8x32xf32>
    %c2 = arith.constant 2 : index
    %c0_15 = arith.constant 0 : index
    %33 = vector.load %arg6[%c2, %c0_15] : memref<47x256xf32, #tpu.memory_space<vmem>>, vector<1x32xf32>
    %c3 = arith.constant 3 : index
    %c0_16 = arith.constant 0 : index
    %34 = vector.load %arg6[%c3, %c0_16] : memref<47x256xf32, #tpu.memory_space<vmem>>, vector<1x32xf32>
    %cst_17 = arith.constant dense<0.000000e+00> : vector<8xf32>
    %35 = vector.multi_reduction <add>, %32, %cst_17 [1] : vector<8x32xf32> to vector<8xf32>
    %36 = vector.shape_cast %35 : vector<8xf32> to vector<8x1xf32>
    %cst_18 = arith.constant 3.200000e+01 : f32
    %37 = vector.broadcast %cst_18 : f32 to vector<8x1xf32>
    %38 = arith.divf %36, %37 : vector<8x1xf32>
    %39 = vector.broadcast %38 : vector<8x1xf32> to vector<8x32xf32>
    %40 = arith.subf %32, %39 : vector<8x32xf32>
    %41 = arith.mulf %40, %40 : vector<8x32xf32>
    %cst_19 = arith.constant dense<0.000000e+00> : vector<8xf32>
    %42 = vector.multi_reduction <add>, %41, %cst_19 [1] : vector<8x32xf32> to vector<8xf32>
    %43 = vector.shape_cast %42 : vector<8xf32> to vector<8x1xf32>
    %cst_20 = arith.constant 3.200000e+01 : f32
    %44 = vector.broadcast %cst_20 : f32 to vector<8x1xf32>
    %45 = arith.divf %43, %44 : vector<8x1xf32>
    %cst_21 = arith.constant 9.99999974E-6 : f32
    %46 = vector.broadcast %cst_21 : f32 to vector<8x1xf32>
    %47 = arith.addf %45, %46 : vector<8x1xf32>
    %48 = math.rsqrt %47 : vector<8x1xf32>
    %49 = vector.broadcast %48 : vector<8x1xf32> to vector<8x32xf32>
    %50 = arith.mulf %40, %49 : vector<8x32xf32>
    %51 = vector.broadcast %33 : vector<1x32xf32> to vector<8x32xf32>
    %52 = arith.mulf %50, %51 : vector<8x32xf32>
    %53 = vector.broadcast %34 : vector<1x32xf32> to vector<8x32xf32>
    %54 = arith.addf %52, %53 : vector<8x32xf32>
    %55 = tpu.iota {dimensions = array<i32: 1>} : vector<8x32xi32>
    %c16_i32 = arith.constant 16 : i32
    %56 = vector.broadcast %c16_i32 : i32 to vector<8x32xi32>
    %57 = arith.cmpi slt, %55, %56 : vector<8x32xi32>
    %cst_22 = arith.constant 0.000000e+00 : f32
    %58 = vector.broadcast %cst_22 : f32 to vector<8x32xf32>
    %59 = arith.select %57, %13, %58 : vector<8x32xi1>, vector<8x32xf32>
    %cst_23 = arith.constant dense<0.000000e+00> : vector<8xf32>
    %60 = vector.multi_reduction <add>, %59, %cst_23 [1] : vector<8x32xf32> to vector<8xf32>
    %61 = vector.shape_cast %60 : vector<8xf32> to vector<8x1xf32>
    %cst_24 = arith.constant dense<0.000000e+00> : vector<8xf32>
    %62 = vector.multi_reduction <add>, %13, %cst_24 [1] : vector<8x32xf32> to vector<8xf32>
    %63 = vector.shape_cast %62 : vector<8xf32> to vector<8x1xf32>
    %64 = arith.subf %63, %61 : vector<8x1xf32>
    %c1 = arith.constant 1 : index
    %c0_25 = arith.constant 0 : index
    %c0_26 = arith.constant 0 : index
    %65 = vector.load %arg4[%c1, %c0_25, %c0_26] : memref<16x64x64xbf16, #tpu.memory_space<vmem>>, vector<1x64x64xbf16>
    %66 = vector.shape_cast %65 : vector<1x64x64xbf16> to vector<64x64xbf16>
    %67 = vector.extract_strided_slice %66 {offsets = [0, 0], sizes = [32, 64], strides = [1, 1]} : vector<64x64xbf16> to vector<32x64xbf16>
    %68 = arith.truncf %13 : vector<8x32xf32> to vector<8x32xbf16>
    %cst_27 = arith.constant dense<0.000000e+00> : vector<8x64xf32>
    %69 = tpu.matmul %68, %67, %cst_27 {dimension_numbers = #tpu.dot_dimension_numbers<[1], [0], [0], [1], [0, 0, 1, 1], [], []>} : vector<8x32xbf16>, vector<32x64xbf16>, vector<8x64xf32> -> vector<8x64xf32>
    %c1_28 = arith.constant 1 : index
    %c0_29 = arith.constant 0 : index
    %70 = vector.load %arg6[%c1_28, %c0_29] : memref<47x256xf32, #tpu.memory_space<vmem>>, vector<1x64xf32>
    %71 = vector.broadcast %70 : vector<1x64xf32> to vector<8x64xf32>
    %72 = arith.addf %69, %71 : vector<8x64xf32>
    %cst_30 = arith.constant 0.000000e+00 : f32
    %73 = vector.broadcast %cst_30 : f32 to vector<8x64xf32>
    %74 = arith.maximumf %72, %73 : vector<8x64xf32>
    %75 = tpu.iota {dimensions = array<i32: 1>} : vector<8x64xi32>
    %c32_i32 = arith.constant 32 : i32
    %76 = vector.broadcast %c32_i32 : i32 to vector<8x64xi32>
    %77 = arith.cmpi slt, %75, %76 : vector<8x64xi32>
    %78 = vector.shape_cast %61 : vector<8x1xf32> to vector<8x1xf32>
    %79 = vector.broadcast %78 : vector<8x1xf32> to vector<8x64xf32>
    %80 = vector.shape_cast %64 : vector<8x1xf32> to vector<8x1xf32>
    %81 = vector.broadcast %80 : vector<8x1xf32> to vector<8x64xf32>
    %82 = arith.select %77, %79, %81 : vector<8x64xi1>, vector<8x64xf32>
    %83 = tpu.reciprocal %82 {approx = true} : vector<8x64xf32> -> vector<8x64xf32>
    %84 = arith.mulf %74, %83 : vector<8x64xf32>
    %85 = vector.broadcast %15 : vector<8x1xf32> to vector<8x64xf32>
    %86 = arith.addf %84, %85 : vector<8x64xf32>
    %c4 = arith.constant 4 : index
    %c0_31 = arith.constant 0 : index
    %87 = vector.load %arg6[%c4, %c0_31] : memref<47x256xf32, #tpu.memory_space<vmem>>, vector<1x64xf32>
    %c5 = arith.constant 5 : index
    %c0_32 = arith.constant 0 : index
    %88 = vector.load %arg6[%c5, %c0_32] : memref<47x256xf32, #tpu.memory_space<vmem>>, vector<1x64xf32>
    %cst_33 = arith.constant dense<0.000000e+00> : vector<8xf32>
    %89 = vector.multi_reduction <add>, %86, %cst_33 [1] : vector<8x64xf32> to vector<8xf32>
    %90 = vector.shape_cast %89 : vector<8xf32> to vector<8x1xf32>
    %cst_34 = arith.constant 6.400000e+01 : f32
    %91 = vector.broadcast %cst_34 : f32 to vector<8x1xf32>
    %92 = arith.divf %90, %91 : vector<8x1xf32>
    %93 = vector.broadcast %92 : vector<8x1xf32> to vector<8x64xf32>
    %94 = arith.subf %86, %93 : vector<8x64xf32>
    %95 = arith.mulf %94, %94 : vector<8x64xf32>
    %cst_35 = arith.constant dense<0.000000e+00> : vector<8xf32>
    %96 = vector.multi_reduction <add>, %95, %cst_35 [1] : vector<8x64xf32> to vector<8xf32>
    %97 = vector.shape_cast %96 : vector<8xf32> to vector<8x1xf32>
    %cst_36 = arith.constant 6.400000e+01 : f32
    %98 = vector.broadcast %cst_36 : f32 to vector<8x1xf32>
    %99 = arith.divf %97, %98 : vector<8x1xf32>
    %cst_37 = arith.constant 9.99999974E-6 : f32
    %100 = vector.broadcast %cst_37 : f32 to vector<8x1xf32>
    %101 = arith.addf %99, %100 : vector<8x1xf32>
    %102 = math.rsqrt %101 : vector<8x1xf32>
    %103 = vector.broadcast %102 : vector<8x1xf32> to vector<8x64xf32>
    %104 = arith.mulf %94, %103 : vector<8x64xf32>
    %105 = vector.broadcast %87 : vector<1x64xf32> to vector<8x64xf32>
    %106 = arith.mulf %104, %105 : vector<8x64xf32>
    %107 = vector.broadcast %88 : vector<1x64xf32> to vector<8x64xf32>
    %108 = arith.addf %106, %107 : vector<8x64xf32>
    %109 = arith.extui %2 : vector<8x8xi1> to vector<8x8xi32>
    %110 = arith.sitofp %109 : vector<8x8xi32> to vector<8x8xf32>
    %c2_38 = arith.constant 2 : index
    %c0_39 = arith.constant 0 : index
    %c0_40 = arith.constant 0 : index
    %111 = vector.load %arg4[%c2_38, %c0_39, %c0_40] : memref<16x64x64xbf16, #tpu.memory_space<vmem>>, vector<1x64x64xbf16>
    %112 = vector.shape_cast %111 : vector<1x64x64xbf16> to vector<64x64xbf16>
    %113 = arith.truncf %108 : vector<8x64xf32> to vector<8x64xbf16>
    %cst_41 = arith.constant dense<0.000000e+00> : vector<8x64xf32>
    %114 = tpu.matmul %113, %112, %cst_41 {dimension_numbers = #tpu.dot_dimension_numbers<[1], [0], [0], [1], [0, 0, 1, 1], [], []>} : vector<8x64xbf16>, vector<64x64xbf16>, vector<8x64xf32> -> vector<8x64xf32>
    %c6 = arith.constant 6 : index
    %c0_42 = arith.constant 0 : index
    %115 = vector.load %arg6[%c6, %c0_42] : memref<47x256xf32, #tpu.memory_space<vmem>>, vector<1x64xf32>
    %116 = vector.broadcast %115 : vector<1x64xf32> to vector<8x64xf32>
    %117 = arith.addf %114, %116 : vector<8x64xf32>
    %c3_43 = arith.constant 3 : index
    %c0_44 = arith.constant 0 : index
    %c0_45 = arith.constant 0 : index
    %118 = vector.load %arg4[%c3_43, %c0_44, %c0_45] : memref<16x64x64xbf16, #tpu.memory_space<vmem>>, vector<1x64x64xbf16>
    %119 = vector.shape_cast %118 : vector<1x64x64xbf16> to vector<64x64xbf16>
    %120 = arith.truncf %108 : vector<8x64xf32> to vector<8x64xbf16>
    %cst_46 = arith.constant dense<0.000000e+00> : vector<8x64xf32>
    %121 = tpu.matmul %120, %119, %cst_46 {dimension_numbers = #tpu.dot_dimension_numbers<[1], [0], [0], [1], [0, 0, 1, 1], [], []>} : vector<8x64xbf16>, vector<64x64xbf16>, vector<8x64xf32> -> vector<8x64xf32>
    %c7 = arith.constant 7 : index
    %c0_47 = arith.constant 0 : index
    %122 = vector.load %arg6[%c7, %c0_47] : memref<47x256xf32, #tpu.memory_space<vmem>>, vector<1x64xf32>
    %123 = vector.broadcast %122 : vector<1x64xf32> to vector<8x64xf32>
    %124 = arith.addf %121, %123 : vector<8x64xf32>
    %cst_48 = arith.constant 0.000000e+00 : f32
    %125 = vector.broadcast %cst_48 : f32 to vector<8x64xf32>
    %126 = vector.extract_strided_slice %117 {offsets = [0, 0], sizes = [8, 32], strides = [1, 1]} : vector<8x64xf32> to vector<8x32xf32>
    %127 = vector.extract_strided_slice %124 {offsets = [0, 0], sizes = [8, 32], strides = [1, 1]} : vector<8x64xf32> to vector<8x32xf32>
    %128 = arith.truncf %126 : vector<8x32xf32> to vector<8x32xbf16>
    %129 = arith.truncf %126 : vector<8x32xf32> to vector<8x32xbf16>
    "tpu.trace_start"() <{level = 10 : i32, message = "qd,kd->qk"}> : () -> ()
    %cst_49 = arith.constant dense<0.000000e+00> : vector<8x8xf32>
    %130 = tpu.matmul %128, %129, %cst_49 {dimension_numbers = #tpu.dot_dimension_numbers<[1], [1], [0], [0], [0, 0, 1, 0], [], []>} : vector<8x32xbf16>, vector<8x32xbf16>, vector<8x8xf32> -> vector<8x8xf32>
    "tpu.trace_stop"() : () -> ()
    %cst_50 = arith.constant 0.176776692 : f32
    %131 = vector.broadcast %cst_50 : f32 to vector<8x8xf32>
    %132 = arith.mulf %130, %131 : vector<8x8xf32>
    %cst_51 = arith.constant -1.000000e+32 : f32
    %133 = vector.broadcast %cst_51 : f32 to vector<8x8xf32>
    %134 = arith.select %2, %132, %133 : vector<8x8xi1>, vector<8x8xf32>
    %cst_52 = arith.constant dense<0xFF800000> : vector<8xf32>
    %135 = vector.multi_reduction <maximumf>, %134, %cst_52 [1] : vector<8x8xf32> to vector<8xf32>
    %136 = vector.shape_cast %135 : vector<8xf32> to vector<8x1xf32>
    %137 = vector.broadcast %136 : vector<8x1xf32> to vector<8x8xf32>
    %138 = arith.subf %134, %137 : vector<8x8xf32>
    %139 = math.exp %138 : vector<8x8xf32>
    %cst_53 = arith.constant dense<0.000000e+00> : vector<8xf32>
    %140 = vector.multi_reduction <add>, %139, %cst_53 [1] : vector<8x8xf32> to vector<8xf32>
    %141 = vector.shape_cast %140 : vector<8xf32> to vector<8x1xf32>
    %142 = tpu.reciprocal %141 {approx = true} : vector<8x1xf32> -> vector<8x1xf32>
    %143 = vector.broadcast %142 : vector<8x1xf32> to vector<8x8xf32>
    %144 = arith.mulf %139, %143 : vector<8x8xf32>
    %145 = arith.mulf %144, %110 : vector<8x8xf32>
    %cst_54 = arith.constant dense<0.000000e+00> : vector<8x8xf32>
    %146 = tpu.matmul %145, %6, %cst_54 {dimension_numbers = #tpu.dot_dimension_numbers<[1], [0], [0], [1], [0, 0, 1, 1], [], []>} : vector<8x8xf32>, vector<8x8xf32>, vector<8x8xf32> -> vector<8x8xf32>
    %cst_55 = arith.constant dense<0.000000e+00> : vector<8xf32>
    %147 = vector.multi_reduction <add>, %145, %cst_55 [1] : vector<8x8xf32> to vector<8xf32>
    %148 = vector.shape_cast %147 : vector<8xf32> to vector<8x1xf32>
    %149 = vector.broadcast %148 : vector<8x1xf32> to vector<8x8xf32>
    %150 = arith.subf %149, %146 : vector<8x8xf32>
    %151 = arith.mulf %150, %9 : vector<8x8xf32>
    %cst_56 = arith.constant 0.000000e+00 : f32
    %152 = vector.broadcast %cst_56 : f32 to vector<8x8xf32>
    %153 = arith.maximumf %151, %152 : vector<8x8xf32>
    %154 = math.sqrt %153 : vector<8x8xf32>
    %c41 = arith.constant 41 : index
    %c0_57 = arith.constant 0 : index
    %155 = vector.load %arg6[%c41, %c0_57] : memref<47x256xf32, #tpu.memory_space<vmem>>, vector<1x1xf32>
    %156 = vector.broadcast %155 : vector<1x1xf32> to vector<8x8xf32>
    %157 = arith.mulf %154, %156 : vector<8x8xf32>
    %158 = math.exp %157 : vector<8x8xf32>
    %cst_58 = arith.constant 9.99999974E-6 : f32
    %cst_59 = arith.constant 1.000000e+05 : f32
    %159 = vector.broadcast %cst_58 : f32 to vector<8x8xf32>
    %160 = arith.maximumf %159, %158 : vector<8x8xf32>
    %161 = vector.broadcast %cst_59 : f32 to vector<8x8xf32>
    %162 = arith.minimumf %161, %160 : vector<8x8xf32>
    %163 = arith.mulf %132, %162 : vector<8x8xf32>
    %cst_60 = arith.constant -1.000000e+32 : f32
    %164 = vector.broadcast %cst_60 : f32 to vector<8x8xf32>
    %165 = arith.select %2, %163, %164 : vector<8x8xi1>, vector<8x8xf32>
    %cst_61 = arith.constant dense<0xFF800000> : vector<8xf32>
    %166 = vector.multi_reduction <maximumf>, %165, %cst_61 [1] : vector<8x8xf32> to vector<8xf32>
    %167 = vector.shape_cast %166 : vector<8xf32> to vector<8x1xf32>
    %168 = vector.broadcast %167 : vector<8x1xf32> to vector<8x8xf32>
    %169 = arith.subf %165, %168 : vector<8x8xf32>
    %170 = math.exp %169 : vector<8x8xf32>
    %cst_62 = arith.constant dense<0.000000e+00> : vector<8xf32>
    %171 = vector.multi_reduction <add>, %170, %cst_62 [1] : vector<8x8xf32> to vector<8xf32>
    %172 = vector.shape_cast %171 : vector<8xf32> to vector<8x1xf32>
    %173 = tpu.reciprocal %172 {approx = true} : vector<8x1xf32> -> vector<8x1xf32>
    %174 = vector.broadcast %173 : vector<8x1xf32> to vector<8x8xf32>
    %175 = arith.mulf %170, %174 : vector<8x8xf32>
    %176 = arith.truncf %175 : vector<8x8xf32> to vector<8x8xbf16>
    %177 = arith.truncf %127 : vector<8x32xf32> to vector<8x32xbf16>
    %cst_63 = arith.constant dense<0.000000e+00> : vector<8x32xf32>
    %178 = tpu.matmul %176, %177, %cst_63 {dimension_numbers = #tpu.dot_dimension_numbers<[1], [0], [0], [1], [0, 0, 1, 1], [], []>} : vector<8x8xbf16>, vector<8x32xbf16>, vector<8x32xf32> -> vector<8x32xf32>
    %c4_64 = arith.constant 4 : index
    %c0_65 = arith.constant 0 : index
    %c0_66 = arith.constant 0 : index
    %179 = vector.load %arg4[%c4_64, %c0_65, %c0_66] : memref<16x64x64xbf16, #tpu.memory_space<vmem>>, vector<1x64x64xbf16>
    %180 = vector.shape_cast %179 : vector<1x64x64xbf16> to vector<64x64xbf16>
    %181 = vector.extract_strided_slice %180 {offsets = [0, 0], sizes = [32, 64], strides = [1, 1]} : vector<64x64xbf16> to vector<32x64xbf16>
    %182 = arith.truncf %178 : vector<8x32xf32> to vector<8x32xbf16>
    %cst_67 = arith.constant dense<0.000000e+00> : vector<8x64xf32>
    %183 = tpu.matmul %182, %181, %cst_67 {dimension_numbers = #tpu.dot_dimension_numbers<[1], [0], [0], [1], [0, 0, 1, 1], [], []>} : vector<8x32xbf16>, vector<32x64xbf16>, vector<8x64xf32> -> vector<8x64xf32>
    %184 = arith.addf %125, %183 : vector<8x64xf32>
    %185 = vector.extract_strided_slice %117 {offsets = [0, 32], sizes = [8, 32], strides = [1, 1]} : vector<8x64xf32> to vector<8x32xf32>
    %186 = vector.extract_strided_slice %124 {offsets = [0, 32], sizes = [8, 32], strides = [1, 1]} : vector<8x64xf32> to vector<8x32xf32>
    %187 = arith.truncf %185 : vector<8x32xf32> to vector<8x32xbf16>
    %188 = arith.truncf %185 : vector<8x32xf32> to vector<8x32xbf16>
    "tpu.trace_start"() <{level = 10 : i32, message = "qd,kd->qk"}> : () -> ()
    %cst_68 = arith.constant dense<0.000000e+00> : vector<8x8xf32>
    %189 = tpu.matmul %187, %188, %cst_68 {dimension_numbers = #tpu.dot_dimension_numbers<[1], [1], [0], [0], [0, 0, 1, 0], [], []>} : vector<8x32xbf16>, vector<8x32xbf16>, vector<8x8xf32> -> vector<8x8xf32>
    "tpu.trace_stop"() : () -> ()
    %cst_69 = arith.constant 0.176776692 : f32
    %190 = vector.broadcast %cst_69 : f32 to vector<8x8xf32>
    %191 = arith.mulf %189, %190 : vector<8x8xf32>
    %cst_70 = arith.constant -1.000000e+32 : f32
    %192 = vector.broadcast %cst_70 : f32 to vector<8x8xf32>
    %193 = arith.select %2, %191, %192 : vector<8x8xi1>, vector<8x8xf32>
    %cst_71 = arith.constant dense<0xFF800000> : vector<8xf32>
    %194 = vector.multi_reduction <maximumf>, %193, %cst_71 [1] : vector<8x8xf32> to vector<8xf32>
    %195 = vector.shape_cast %194 : vector<8xf32> to vector<8x1xf32>
    %196 = vector.broadcast %195 : vector<8x1xf32> to vector<8x8xf32>
    %197 = arith.subf %193, %196 : vector<8x8xf32>
    %198 = math.exp %197 : vector<8x8xf32>
    %cst_72 = arith.constant dense<0.000000e+00> : vector<8xf32>
    %199 = vector.multi_reduction <add>, %198, %cst_72 [1] : vector<8x8xf32> to vector<8xf32>
    %200 = vector.shape_cast %199 : vector<8xf32> to vector<8x1xf32>
    %201 = tpu.reciprocal %200 {approx = true} : vector<8x1xf32> -> vector<8x1xf32>
    %202 = vector.broadcast %201 : vector<8x1xf32> to vector<8x8xf32>
    %203 = arith.mulf %198, %202 : vector<8x8xf32>
    %204 = arith.mulf %203, %110 : vector<8x8xf32>
    %cst_73 = arith.constant dense<0.000000e+00> : vector<8x8xf32>
    %205 = tpu.matmul %204, %6, %cst_73 {dimension_numbers = #tpu.dot_dimension_numbers<[1], [0], [0], [1], [0, 0, 1, 1], [], []>} : vector<8x8xf32>, vector<8x8xf32>, vector<8x8xf32> -> vector<8x8xf32>
    %cst_74 = arith.constant dense<0.000000e+00> : vector<8xf32>
    %206 = vector.multi_reduction <add>, %204, %cst_74 [1] : vector<8x8xf32> to vector<8xf32>
    %207 = vector.shape_cast %206 : vector<8xf32> to vector<8x1xf32>
    %208 = vector.broadcast %207 : vector<8x1xf32> to vector<8x8xf32>
    %209 = arith.subf %208, %205 : vector<8x8xf32>
    %210 = arith.mulf %209, %9 : vector<8x8xf32>
    %cst_75 = arith.constant 0.000000e+00 : f32
    %211 = vector.broadcast %cst_75 : f32 to vector<8x8xf32>
    %212 = arith.maximumf %210, %211 : vector<8x8xf32>
    %213 = math.sqrt %212 : vector<8x8xf32>
    %c42 = arith.constant 42 : index
    %c0_76 = arith.constant 0 : index
    %214 = vector.load %arg6[%c42, %c0_76] : memref<47x256xf32, #tpu.memory_space<vmem>>, vector<1x1xf32>
    %215 = vector.broadcast %214 : vector<1x1xf32> to vector<8x8xf32>
    %216 = arith.mulf %213, %215 : vector<8x8xf32>
    %217 = math.exp %216 : vector<8x8xf32>
    %cst_77 = arith.constant 9.99999974E-6 : f32
    %cst_78 = arith.constant 1.000000e+05 : f32
    %218 = vector.broadcast %cst_77 : f32 to vector<8x8xf32>
    %219 = arith.maximumf %218, %217 : vector<8x8xf32>
    %220 = vector.broadcast %cst_78 : f32 to vector<8x8xf32>
    %221 = arith.minimumf %220, %219 : vector<8x8xf32>
    %222 = arith.mulf %191, %221 : vector<8x8xf32>
    %cst_79 = arith.constant -1.000000e+32 : f32
    %223 = vector.broadcast %cst_79 : f32 to vector<8x8xf32>
    %224 = arith.select %2, %222, %223 : vector<8x8xi1>, vector<8x8xf32>
    %cst_80 = arith.constant dense<0xFF800000> : vector<8xf32>
    %225 = vector.multi_reduction <maximumf>, %224, %cst_80 [1] : vector<8x8xf32> to vector<8xf32>
    %226 = vector.shape_cast %225 : vector<8xf32> to vector<8x1xf32>
    %227 = vector.broadcast %226 : vector<8x1xf32> to vector<8x8xf32>
    %228 = arith.subf %224, %227 : vector<8x8xf32>
    %229 = math.exp %228 : vector<8x8xf32>
    %cst_81 = arith.constant dense<0.000000e+00> : vector<8xf32>
    %230 = vector.multi_reduction <add>, %229, %cst_81 [1] : vector<8x8xf32> to vector<8xf32>
    %231 = vector.shape_cast %230 : vector<8xf32> to vector<8x1xf32>
    %232 = tpu.reciprocal %231 {approx = true} : vector<8x1xf32> -> vector<8x1xf32>
    %233 = vector.broadcast %232 : vector<8x1xf32> to vector<8x8xf32>
    %234 = arith.mulf %229, %233 : vector<8x8xf32>
    %235 = arith.truncf %234 : vector<8x8xf32> to vector<8x8xbf16>
    %236 = arith.truncf %186 : vector<8x32xf32> to vector<8x32xbf16>
    %cst_82 = arith.constant dense<0.000000e+00> : vector<8x32xf32>
    %237 = tpu.matmul %235, %236, %cst_82 {dimension_numbers = #tpu.dot_dimension_numbers<[1], [0], [0], [1], [0, 0, 1, 1], [], []>} : vector<8x8xbf16>, vector<8x32xbf16>, vector<8x32xf32> -> vector<8x32xf32>
    %c4_83 = arith.constant 4 : index
    %c0_84 = arith.constant 0 : index
    %c0_85 = arith.constant 0 : index
    %238 = vector.load %arg4[%c4_83, %c0_84, %c0_85] : memref<16x64x64xbf16, #tpu.memory_space<vmem>>, vector<1x64x64xbf16>
    %239 = vector.shape_cast %238 : vector<1x64x64xbf16> to vector<64x64xbf16>
    %240 = vector.extract_strided_slice %239 {offsets = [32, 0], sizes = [32, 64], strides = [1, 1]} : vector<64x64xbf16> to vector<32x64xbf16>
    %241 = arith.truncf %237 : vector<8x32xf32> to vector<8x32xbf16>
    %cst_86 = arith.constant dense<0.000000e+00> : vector<8x64xf32>
    %242 = tpu.matmul %241, %240, %cst_86 {dimension_numbers = #tpu.dot_dimension_numbers<[1], [0], [0], [1], [0, 0, 1, 1], [], []>} : vector<8x32xbf16>, vector<32x64xbf16>, vector<8x64xf32> -> vector<8x64xf32>
    %243 = arith.addf %184, %242 : vector<8x64xf32>
    %244 = arith.addf %108, %243 : vector<8x64xf32>
    %c8 = arith.constant 8 : index
    %c0_87 = arith.constant 0 : index
    %245 = vector.load %arg6[%c8, %c0_87] : memref<47x256xf32, #tpu.memory_space<vmem>>, vector<1x64xf32>
    %246 = vector.broadcast %245 : vector<1x64xf32> to vector<8x64xf32>
    %247 = arith.addf %244, %246 : vector<8x64xf32>
    %c9 = arith.constant 9 : index
    %c0_88 = arith.constant 0 : index
    %248 = vector.load %arg6[%c9, %c0_88] : memref<47x256xf32, #tpu.memory_space<vmem>>, vector<1x64xf32>
    %c10 = arith.constant 10 : index
    %c0_89 = arith.constant 0 : index
    %249 = vector.load %arg6[%c10, %c0_89] : memref<47x256xf32, #tpu.memory_space<vmem>>, vector<1x64xf32>
    %cst_90 = arith.constant dense<0.000000e+00> : vector<8xf32>
    %250 = vector.multi_reduction <add>, %247, %cst_90 [1] : vector<8x64xf32> to vector<8xf32>
    %251 = vector.shape_cast %250 : vector<8xf32> to vector<8x1xf32>
    %cst_91 = arith.constant 6.400000e+01 : f32
    %252 = vector.broadcast %cst_91 : f32 to vector<8x1xf32>
    %253 = arith.divf %251, %252 : vector<8x1xf32>
    %254 = vector.broadcast %253 : vector<8x1xf32> to vector<8x64xf32>
    %255 = arith.subf %247, %254 : vector<8x64xf32>
    %256 = arith.mulf %255, %255 : vector<8x64xf32>
    %cst_92 = arith.constant dense<0.000000e+00> : vector<8xf32>
    %257 = vector.multi_reduction <add>, %256, %cst_92 [1] : vector<8x64xf32> to vector<8xf32>
    %258 = vector.shape_cast %257 : vector<8xf32> to vector<8x1xf32>
    %cst_93 = arith.constant 6.400000e+01 : f32
    %259 = vector.broadcast %cst_93 : f32 to vector<8x1xf32>
    %260 = arith.divf %258, %259 : vector<8x1xf32>
    %cst_94 = arith.constant 9.99999974E-6 : f32
    %261 = vector.broadcast %cst_94 : f32 to vector<8x1xf32>
    %262 = arith.addf %260, %261 : vector<8x1xf32>
    %263 = math.rsqrt %262 : vector<8x1xf32>
    %264 = vector.broadcast %263 : vector<8x1xf32> to vector<8x64xf32>
    %265 = arith.mulf %255, %264 : vector<8x64xf32>
    %266 = vector.broadcast %248 : vector<1x64xf32> to vector<8x64xf32>
    %267 = arith.mulf %265, %266 : vector<8x64xf32>
    %268 = vector.broadcast %249 : vector<1x64xf32> to vector<8x64xf32>
    %269 = arith.addf %267, %268 : vector<8x64xf32>
    %c5_95 = arith.constant 5 : index
    %c0_96 = arith.constant 0 : index
    %c0_97 = arith.constant 0 : index
    %270 = vector.load %arg4[%c5_95, %c0_96, %c0_97] : memref<16x64x64xbf16, #tpu.memory_space<vmem>>, vector<1x64x64xbf16>
    %271 = vector.shape_cast %270 : vector<1x64x64xbf16> to vector<64x64xbf16>
    %272 = arith.truncf %269 : vector<8x64xf32> to vector<8x64xbf16>
    %cst_98 = arith.constant dense<0.000000e+00> : vector<8x64xf32>
    %273 = tpu.matmul %272, %271, %cst_98 {dimension_numbers = #tpu.dot_dimension_numbers<[1], [0], [0], [1], [0, 0, 1, 1], [], []>} : vector<8x64xbf16>, vector<64x64xbf16>, vector<8x64xf32> -> vector<8x64xf32>
    %c11 = arith.constant 11 : index
    %c0_99 = arith.constant 0 : index
    %274 = vector.load %arg6[%c11, %c0_99] : memref<47x256xf32, #tpu.memory_space<vmem>>, vector<1x64xf32>
    %275 = vector.broadcast %274 : vector<1x64xf32> to vector<8x64xf32>
    %276 = arith.addf %273, %275 : vector<8x64xf32>
    %cst_100 = arith.constant 0.000000e+00 : f32
    %277 = vector.broadcast %cst_100 : f32 to vector<8x64xf32>
    %278 = arith.maximumf %276, %277 : vector<8x64xf32>
    %c6_101 = arith.constant 6 : index
    %c0_102 = arith.constant 0 : index
    %c0_103 = arith.constant 0 : index
    %279 = vector.load %arg4[%c6_101, %c0_102, %c0_103] : memref<16x64x64xbf16, #tpu.memory_space<vmem>>, vector<1x64x64xbf16>
    %280 = vector.shape_cast %279 : vector<1x64x64xbf16> to vector<64x64xbf16>
    %281 = arith.truncf %278 : vector<8x64xf32> to vector<8x64xbf16>
    %cst_104 = arith.constant dense<0.000000e+00> : vector<8x64xf32>
    %282 = tpu.matmul %281, %280, %cst_104 {dimension_numbers = #tpu.dot_dimension_numbers<[1], [0], [0], [1], [0, 0, 1, 1], [], []>} : vector<8x64xbf16>, vector<64x64xbf16>, vector<8x64xf32> -> vector<8x64xf32>
    %c12 = arith.constant 12 : index
    %c0_105 = arith.constant 0 : index
    %283 = vector.load %arg6[%c12, %c0_105] : memref<47x256xf32, #tpu.memory_space<vmem>>, vector<1x64xf32>
    %284 = vector.broadcast %283 : vector<1x64xf32> to vector<8x64xf32>
    %285 = arith.addf %282, %284 : vector<8x64xf32>
    %286 = arith.addf %269, %285 : vector<8x64xf32>
    %c13 = arith.constant 13 : index
    %c0_106 = arith.constant 0 : index
    %287 = vector.load %arg6[%c13, %c0_106] : memref<47x256xf32, #tpu.memory_space<vmem>>, vector<1x64xf32>
    %c14 = arith.constant 14 : index
    %c0_107 = arith.constant 0 : index
    %288 = vector.load %arg6[%c14, %c0_107] : memref<47x256xf32, #tpu.memory_space<vmem>>, vector<1x64xf32>
    %cst_108 = arith.constant dense<0.000000e+00> : vector<8xf32>
    %289 = vector.multi_reduction <add>, %286, %cst_108 [1] : vector<8x64xf32> to vector<8xf32>
    %290 = vector.shape_cast %289 : vector<8xf32> to vector<8x1xf32>
    %cst_109 = arith.constant 6.400000e+01 : f32
    %291 = vector.broadcast %cst_109 : f32 to vector<8x1xf32>
    %292 = arith.divf %290, %291 : vector<8x1xf32>
    %293 = vector.broadcast %292 : vector<8x1xf32> to vector<8x64xf32>
    %294 = arith.subf %286, %293 : vector<8x64xf32>
    %295 = arith.mulf %294, %294 : vector<8x64xf32>
    %cst_110 = arith.constant dense<0.000000e+00> : vector<8xf32>
    %296 = vector.multi_reduction <add>, %295, %cst_110 [1] : vector<8x64xf32> to vector<8xf32>
    %297 = vector.shape_cast %296 : vector<8xf32> to vector<8x1xf32>
    %cst_111 = arith.constant 6.400000e+01 : f32
    %298 = vector.broadcast %cst_111 : f32 to vector<8x1xf32>
    %299 = arith.divf %297, %298 : vector<8x1xf32>
    %cst_112 = arith.constant 9.99999974E-6 : f32
    %300 = vector.broadcast %cst_112 : f32 to vector<8x1xf32>
    %301 = arith.addf %299, %300 : vector<8x1xf32>
    %302 = math.rsqrt %301 : vector<8x1xf32>
    %303 = vector.broadcast %302 : vector<8x1xf32> to vector<8x64xf32>
    %304 = arith.mulf %294, %303 : vector<8x64xf32>
    %305 = vector.broadcast %287 : vector<1x64xf32> to vector<8x64xf32>
    %306 = arith.mulf %304, %305 : vector<8x64xf32>
    %307 = vector.broadcast %288 : vector<1x64xf32> to vector<8x64xf32>
    %308 = arith.addf %306, %307 : vector<8x64xf32>
    %309 = arith.extui %2 : vector<8x8xi1> to vector<8x8xi32>
    %310 = arith.sitofp %309 : vector<8x8xi32> to vector<8x8xf32>
    %c7_113 = arith.constant 7 : index
    %c0_114 = arith.constant 0 : index
    %c0_115 = arith.constant 0 : index
    %311 = vector.load %arg4[%c7_113, %c0_114, %c0_115] : memref<16x64x64xbf16, #tpu.memory_space<vmem>>, vector<1x64x64xbf16>
    %312 = vector.shape_cast %311 : vector<1x64x64xbf16> to vector<64x64xbf16>
    %313 = vector.extract_strided_slice %312 {offsets = [0, 0], sizes = [32, 32], strides = [1, 1]} : vector<64x64xbf16> to vector<32x32xbf16>
    %314 = arith.truncf %54 : vector<8x32xf32> to vector<8x32xbf16>
    %cst_116 = arith.constant dense<0.000000e+00> : vector<8x32xf32>
    %315 = tpu.matmul %314, %313, %cst_116 {dimension_numbers = #tpu.dot_dimension_numbers<[1], [0], [0], [1], [0, 0, 1, 1], [], []>} : vector<8x32xbf16>, vector<32x32xbf16>, vector<8x32xf32> -> vector<8x32xf32>
    %c15 = arith.constant 15 : index
    %c0_117 = arith.constant 0 : index
    %316 = vector.load %arg6[%c15, %c0_117] : memref<47x256xf32, #tpu.memory_space<vmem>>, vector<1x32xf32>
    %317 = vector.broadcast %316 : vector<1x32xf32> to vector<8x32xf32>
    %318 = arith.addf %315, %317 : vector<8x32xf32>
    %c8_118 = arith.constant 8 : index
    %c0_119 = arith.constant 0 : index
    %c0_120 = arith.constant 0 : index
    %319 = vector.load %arg4[%c8_118, %c0_119, %c0_120] : memref<16x64x64xbf16, #tpu.memory_space<vmem>>, vector<1x64x64xbf16>
    %320 = vector.shape_cast %319 : vector<1x64x64xbf16> to vector<64x64xbf16>
    %321 = vector.extract_strided_slice %320 {offsets = [0, 0], sizes = [32, 32], strides = [1, 1]} : vector<64x64xbf16> to vector<32x32xbf16>
    %322 = arith.truncf %54 : vector<8x32xf32> to vector<8x32xbf16>
    %cst_121 = arith.constant dense<0.000000e+00> : vector<8x32xf32>
    %323 = tpu.matmul %322, %321, %cst_121 {dimension_numbers = #tpu.dot_dimension_numbers<[1], [0], [0], [1], [0, 0, 1, 1], [], []>} : vector<8x32xbf16>, vector<32x32xbf16>, vector<8x32xf32> -> vector<8x32xf32>
    %c16 = arith.constant 16 : index
    %c0_122 = arith.constant 0 : index
    %324 = vector.load %arg6[%c16, %c0_122] : memref<47x256xf32, #tpu.memory_space<vmem>>, vector<1x32xf32>
    %325 = vector.broadcast %324 : vector<1x32xf32> to vector<8x32xf32>
    %326 = arith.addf %323, %325 : vector<8x32xf32>
    %cst_123 = arith.constant 0.000000e+00 : f32
    %327 = vector.broadcast %cst_123 : f32 to vector<8x32xf32>
    %328 = vector.extract_strided_slice %318 {offsets = [0, 0], sizes = [8, 16], strides = [1, 1]} : vector<8x32xf32> to vector<8x16xf32>
    %329 = vector.extract_strided_slice %326 {offsets = [0, 0], sizes = [8, 16], strides = [1, 1]} : vector<8x32xf32> to vector<8x16xf32>
    %330 = arith.truncf %328 : vector<8x16xf32> to vector<8x16xbf16>
    %331 = arith.truncf %328 : vector<8x16xf32> to vector<8x16xbf16>
    "tpu.trace_start"() <{level = 10 : i32, message = "qd,kd->qk"}> : () -> ()
    %cst_124 = arith.constant dense<0.000000e+00> : vector<8x8xf32>
    %332 = tpu.matmul %330, %331, %cst_124 {dimension_numbers = #tpu.dot_dimension_numbers<[1], [1], [0], [0], [0, 0, 1, 0], [], []>} : vector<8x16xbf16>, vector<8x16xbf16>, vector<8x8xf32> -> vector<8x8xf32>
    "tpu.trace_stop"() : () -> ()
    %cst_125 = arith.constant 2.500000e-01 : f32
    %333 = vector.broadcast %cst_125 : f32 to vector<8x8xf32>
    %334 = arith.mulf %332, %333 : vector<8x8xf32>
    %cst_126 = arith.constant -1.000000e+32 : f32
    %335 = vector.broadcast %cst_126 : f32 to vector<8x8xf32>
    %336 = arith.select %2, %334, %335 : vector<8x8xi1>, vector<8x8xf32>
    %cst_127 = arith.constant dense<0xFF800000> : vector<8xf32>
    %337 = vector.multi_reduction <maximumf>, %336, %cst_127 [1] : vector<8x8xf32> to vector<8xf32>
    %338 = vector.shape_cast %337 : vector<8xf32> to vector<8x1xf32>
    %339 = vector.broadcast %338 : vector<8x1xf32> to vector<8x8xf32>
    %340 = arith.subf %336, %339 : vector<8x8xf32>
    %341 = math.exp %340 : vector<8x8xf32>
    %cst_128 = arith.constant dense<0.000000e+00> : vector<8xf32>
    %342 = vector.multi_reduction <add>, %341, %cst_128 [1] : vector<8x8xf32> to vector<8xf32>
    %343 = vector.shape_cast %342 : vector<8xf32> to vector<8x1xf32>
    %344 = tpu.reciprocal %343 {approx = true} : vector<8x1xf32> -> vector<8x1xf32>
    %345 = vector.broadcast %344 : vector<8x1xf32> to vector<8x8xf32>
    %346 = arith.mulf %341, %345 : vector<8x8xf32>
    %347 = arith.mulf %346, %310 : vector<8x8xf32>
    %cst_129 = arith.constant dense<0.000000e+00> : vector<8x8xf32>
    %348 = tpu.matmul %347, %6, %cst_129 {dimension_numbers = #tpu.dot_dimension_numbers<[1], [0], [0], [1], [0, 0, 1, 1], [], []>} : vector<8x8xf32>, vector<8x8xf32>, vector<8x8xf32> -> vector<8x8xf32>
    %cst_130 = arith.constant dense<0.000000e+00> : vector<8xf32>
    %349 = vector.multi_reduction <add>, %347, %cst_130 [1] : vector<8x8xf32> to vector<8xf32>
    %350 = vector.shape_cast %349 : vector<8xf32> to vector<8x1xf32>
    %351 = vector.broadcast %350 : vector<8x1xf32> to vector<8x8xf32>
    %352 = arith.subf %351, %348 : vector<8x8xf32>
    %353 = arith.mulf %352, %9 : vector<8x8xf32>
    %cst_131 = arith.constant 0.000000e+00 : f32
    %354 = vector.broadcast %cst_131 : f32 to vector<8x8xf32>
    %355 = arith.maximumf %353, %354 : vector<8x8xf32>
    %356 = math.sqrt %355 : vector<8x8xf32>
    %c43 = arith.constant 43 : index
    %c0_132 = arith.constant 0 : index
    %357 = vector.load %arg6[%c43, %c0_132] : memref<47x256xf32, #tpu.memory_space<vmem>>, vector<1x1xf32>
    %358 = vector.broadcast %357 : vector<1x1xf32> to vector<8x8xf32>
    %359 = arith.mulf %356, %358 : vector<8x8xf32>
    %360 = math.exp %359 : vector<8x8xf32>
    %cst_133 = arith.constant 9.99999974E-6 : f32
    %cst_134 = arith.constant 1.000000e+05 : f32
    %361 = vector.broadcast %cst_133 : f32 to vector<8x8xf32>
    %362 = arith.maximumf %361, %360 : vector<8x8xf32>
    %363 = vector.broadcast %cst_134 : f32 to vector<8x8xf32>
    %364 = arith.minimumf %363, %362 : vector<8x8xf32>
    %365 = arith.mulf %334, %364 : vector<8x8xf32>
    %cst_135 = arith.constant -1.000000e+32 : f32
    %366 = vector.broadcast %cst_135 : f32 to vector<8x8xf32>
    %367 = arith.select %2, %365, %366 : vector<8x8xi1>, vector<8x8xf32>
    %cst_136 = arith.constant dense<0xFF800000> : vector<8xf32>
    %368 = vector.multi_reduction <maximumf>, %367, %cst_136 [1] : vector<8x8xf32> to vector<8xf32>
    %369 = vector.shape_cast %368 : vector<8xf32> to vector<8x1xf32>
    %370 = vector.broadcast %369 : vector<8x1xf32> to vector<8x8xf32>
    %371 = arith.subf %367, %370 : vector<8x8xf32>
    %372 = math.exp %371 : vector<8x8xf32>
    %cst_137 = arith.constant dense<0.000000e+00> : vector<8xf32>
    %373 = vector.multi_reduction <add>, %372, %cst_137 [1] : vector<8x8xf32> to vector<8xf32>
    %374 = vector.shape_cast %373 : vector<8xf32> to vector<8x1xf32>
    %375 = tpu.reciprocal %374 {approx = true} : vector<8x1xf32> -> vector<8x1xf32>
    %376 = vector.broadcast %375 : vector<8x1xf32> to vector<8x8xf32>
    %377 = arith.mulf %372, %376 : vector<8x8xf32>
    %378 = arith.truncf %377 : vector<8x8xf32> to vector<8x8xbf16>
    %379 = arith.truncf %329 : vector<8x16xf32> to vector<8x16xbf16>
    %cst_138 = arith.constant dense<0.000000e+00> : vector<8x16xf32>
    %380 = tpu.matmul %378, %379, %cst_138 {dimension_numbers = #tpu.dot_dimension_numbers<[1], [0], [0], [1], [0, 0, 1, 1], [], []>} : vector<8x8xbf16>, vector<8x16xbf16>, vector<8x16xf32> -> vector<8x16xf32>
    %c9_139 = arith.constant 9 : index
    %c0_140 = arith.constant 0 : index
    %c0_141 = arith.constant 0 : index
    %381 = vector.load %arg4[%c9_139, %c0_140, %c0_141] : memref<16x64x64xbf16, #tpu.memory_space<vmem>>, vector<1x64x64xbf16>
    %382 = vector.shape_cast %381 : vector<1x64x64xbf16> to vector<64x64xbf16>
    %383 = vector.extract_strided_slice %382 {offsets = [0, 0], sizes = [16, 32], strides = [1, 1]} : vector<64x64xbf16> to vector<16x32xbf16>
    %384 = arith.truncf %380 : vector<8x16xf32> to vector<8x16xbf16>
    %cst_142 = arith.constant dense<0.000000e+00> : vector<8x32xf32>
    %385 = tpu.matmul %384, %383, %cst_142 {dimension_numbers = #tpu.dot_dimension_numbers<[1], [0], [0], [1], [0, 0, 1, 1], [], []>} : vector<8x16xbf16>, vector<16x32xbf16>, vector<8x32xf32> -> vector<8x32xf32>
    %386 = arith.addf %327, %385 : vector<8x32xf32>
    %387 = vector.extract_strided_slice %318 {offsets = [0, 16], sizes = [8, 16], strides = [1, 1]} : vector<8x32xf32> to vector<8x16xf32>
    %388 = vector.extract_strided_slice %326 {offsets = [0, 16], sizes = [8, 16], strides = [1, 1]} : vector<8x32xf32> to vector<8x16xf32>
    %389 = arith.truncf %387 : vector<8x16xf32> to vector<8x16xbf16>
    %390 = arith.truncf %387 : vector<8x16xf32> to vector<8x16xbf16>
    "tpu.trace_start"() <{level = 10 : i32, message = "qd,kd->qk"}> : () -> ()
    %cst_143 = arith.constant dense<0.000000e+00> : vector<8x8xf32>
    %391 = tpu.matmul %389, %390, %cst_143 {dimension_numbers = #tpu.dot_dimension_numbers<[1], [1], [0], [0], [0, 0, 1, 0], [], []>} : vector<8x16xbf16>, vector<8x16xbf16>, vector<8x8xf32> -> vector<8x8xf32>
    "tpu.trace_stop"() : () -> ()
    %cst_144 = arith.constant 2.500000e-01 : f32
    %392 = vector.broadcast %cst_144 : f32 to vector<8x8xf32>
    %393 = arith.mulf %391, %392 : vector<8x8xf32>
    %cst_145 = arith.constant -1.000000e+32 : f32
    %394 = vector.broadcast %cst_145 : f32 to vector<8x8xf32>
    %395 = arith.select %2, %393, %394 : vector<8x8xi1>, vector<8x8xf32>
    %cst_146 = arith.constant dense<0xFF800000> : vector<8xf32>
    %396 = vector.multi_reduction <maximumf>, %395, %cst_146 [1] : vector<8x8xf32> to vector<8xf32>
    %397 = vector.shape_cast %396 : vector<8xf32> to vector<8x1xf32>
    %398 = vector.broadcast %397 : vector<8x1xf32> to vector<8x8xf32>
    %399 = arith.subf %395, %398 : vector<8x8xf32>
    %400 = math.exp %399 : vector<8x8xf32>
    %cst_147 = arith.constant dense<0.000000e+00> : vector<8xf32>
    %401 = vector.multi_reduction <add>, %400, %cst_147 [1] : vector<8x8xf32> to vector<8xf32>
    %402 = vector.shape_cast %401 : vector<8xf32> to vector<8x1xf32>
    %403 = tpu.reciprocal %402 {approx = true} : vector<8x1xf32> -> vector<8x1xf32>
    %404 = vector.broadcast %403 : vector<8x1xf32> to vector<8x8xf32>
    %405 = arith.mulf %400, %404 : vector<8x8xf32>
    %406 = arith.mulf %405, %310 : vector<8x8xf32>
    %cst_148 = arith.constant dense<0.000000e+00> : vector<8x8xf32>
    %407 = tpu.matmul %406, %6, %cst_148 {dimension_numbers = #tpu.dot_dimension_numbers<[1], [0], [0], [1], [0, 0, 1, 1], [], []>} : vector<8x8xf32>, vector<8x8xf32>, vector<8x8xf32> -> vector<8x8xf32>
    %cst_149 = arith.constant dense<0.000000e+00> : vector<8xf32>
    %408 = vector.multi_reduction <add>, %406, %cst_149 [1] : vector<8x8xf32> to vector<8xf32>
    %409 = vector.shape_cast %408 : vector<8xf32> to vector<8x1xf32>
    %410 = vector.broadcast %409 : vector<8x1xf32> to vector<8x8xf32>
    %411 = arith.subf %410, %407 : vector<8x8xf32>
    %412 = arith.mulf %411, %9 : vector<8x8xf32>
    %cst_150 = arith.constant 0.000000e+00 : f32
    %413 = vector.broadcast %cst_150 : f32 to vector<8x8xf32>
    %414 = arith.maximumf %412, %413 : vector<8x8xf32>
    %415 = math.sqrt %414 : vector<8x8xf32>
    %c44 = arith.constant 44 : index
    %c0_151 = arith.constant 0 : index
    %416 = vector.load %arg6[%c44, %c0_151] : memref<47x256xf32, #tpu.memory_space<vmem>>, vector<1x1xf32>
    %417 = vector.broadcast %416 : vector<1x1xf32> to vector<8x8xf32>
    %418 = arith.mulf %415, %417 : vector<8x8xf32>
    %419 = math.exp %418 : vector<8x8xf32>
    %cst_152 = arith.constant 9.99999974E-6 : f32
    %cst_153 = arith.constant 1.000000e+05 : f32
    %420 = vector.broadcast %cst_152 : f32 to vector<8x8xf32>
    %421 = arith.maximumf %420, %419 : vector<8x8xf32>
    %422 = vector.broadcast %cst_153 : f32 to vector<8x8xf32>
    %423 = arith.minimumf %422, %421 : vector<8x8xf32>
    %424 = arith.mulf %393, %423 : vector<8x8xf32>
    %cst_154 = arith.constant -1.000000e+32 : f32
    %425 = vector.broadcast %cst_154 : f32 to vector<8x8xf32>
    %426 = arith.select %2, %424, %425 : vector<8x8xi1>, vector<8x8xf32>
    %cst_155 = arith.constant dense<0xFF800000> : vector<8xf32>
    %427 = vector.multi_reduction <maximumf>, %426, %cst_155 [1] : vector<8x8xf32> to vector<8xf32>
    %428 = vector.shape_cast %427 : vector<8xf32> to vector<8x1xf32>
    %429 = vector.broadcast %428 : vector<8x1xf32> to vector<8x8xf32>
    %430 = arith.subf %426, %429 : vector<8x8xf32>
    %431 = math.exp %430 : vector<8x8xf32>
    %cst_156 = arith.constant dense<0.000000e+00> : vector<8xf32>
    %432 = vector.multi_reduction <add>, %431, %cst_156 [1] : vector<8x8xf32> to vector<8xf32>
    %433 = vector.shape_cast %432 : vector<8xf32> to vector<8x1xf32>
    %434 = tpu.reciprocal %433 {approx = true} : vector<8x1xf32> -> vector<8x1xf32>
    %435 = vector.broadcast %434 : vector<8x1xf32> to vector<8x8xf32>
    %436 = arith.mulf %431, %435 : vector<8x8xf32>
    %437 = arith.truncf %436 : vector<8x8xf32> to vector<8x8xbf16>
    %438 = arith.truncf %388 : vector<8x16xf32> to vector<8x16xbf16>
    %cst_157 = arith.constant dense<0.000000e+00> : vector<8x16xf32>
    %439 = tpu.matmul %437, %438, %cst_157 {dimension_numbers = #tpu.dot_dimension_numbers<[1], [0], [0], [1], [0, 0, 1, 1], [], []>} : vector<8x8xbf16>, vector<8x16xbf16>, vector<8x16xf32> -> vector<8x16xf32>
    %c9_158 = arith.constant 9 : index
    %c0_159 = arith.constant 0 : index
    %c0_160 = arith.constant 0 : index
    %440 = vector.load %arg4[%c9_158, %c0_159, %c0_160] : memref<16x64x64xbf16, #tpu.memory_space<vmem>>, vector<1x64x64xbf16>
    %441 = vector.shape_cast %440 : vector<1x64x64xbf16> to vector<64x64xbf16>
    %442 = vector.extract_strided_slice %441 {offsets = [16, 0], sizes = [16, 32], strides = [1, 1]} : vector<64x64xbf16> to vector<16x32xbf16>
    %443 = arith.truncf %439 : vector<8x16xf32> to vector<8x16xbf16>
    %cst_161 = arith.constant dense<0.000000e+00> : vector<8x32xf32>
    %444 = tpu.matmul %443, %442, %cst_161 {dimension_numbers = #tpu.dot_dimension_numbers<[1], [0], [0], [1], [0, 0, 1, 1], [], []>} : vector<8x16xbf16>, vector<16x32xbf16>, vector<8x32xf32> -> vector<8x32xf32>
    %445 = arith.addf %386, %444 : vector<8x32xf32>
    %446 = arith.addf %54, %445 : vector<8x32xf32>
    %c17 = arith.constant 17 : index
    %c0_162 = arith.constant 0 : index
    %447 = vector.load %arg6[%c17, %c0_162] : memref<47x256xf32, #tpu.memory_space<vmem>>, vector<1x32xf32>
    %448 = vector.broadcast %447 : vector<1x32xf32> to vector<8x32xf32>
    %449 = arith.addf %446, %448 : vector<8x32xf32>
    %c18 = arith.constant 18 : index
    %c0_163 = arith.constant 0 : index
    %450 = vector.load %arg6[%c18, %c0_163] : memref<47x256xf32, #tpu.memory_space<vmem>>, vector<1x32xf32>
    %c19 = arith.constant 19 : index
    %c0_164 = arith.constant 0 : index
    %451 = vector.load %arg6[%c19, %c0_164] : memref<47x256xf32, #tpu.memory_space<vmem>>, vector<1x32xf32>
    %cst_165 = arith.constant dense<0.000000e+00> : vector<8xf32>
    %452 = vector.multi_reduction <add>, %449, %cst_165 [1] : vector<8x32xf32> to vector<8xf32>
    %453 = vector.shape_cast %452 : vector<8xf32> to vector<8x1xf32>
    %cst_166 = arith.constant 3.200000e+01 : f32
    %454 = vector.broadcast %cst_166 : f32 to vector<8x1xf32>
    %455 = arith.divf %453, %454 : vector<8x1xf32>
    %456 = vector.broadcast %455 : vector<8x1xf32> to vector<8x32xf32>
    %457 = arith.subf %449, %456 : vector<8x32xf32>
    %458 = arith.mulf %457, %457 : vector<8x32xf32>
    %cst_167 = arith.constant dense<0.000000e+00> : vector<8xf32>
    %459 = vector.multi_reduction <add>, %458, %cst_167 [1] : vector<8x32xf32> to vector<8xf32>
    %460 = vector.shape_cast %459 : vector<8xf32> to vector<8x1xf32>
    %cst_168 = arith.constant 3.200000e+01 : f32
    %461 = vector.broadcast %cst_168 : f32 to vector<8x1xf32>
    %462 = arith.divf %460, %461 : vector<8x1xf32>
    %cst_169 = arith.constant 9.99999974E-6 : f32
    %463 = vector.broadcast %cst_169 : f32 to vector<8x1xf32>
    %464 = arith.addf %462, %463 : vector<8x1xf32>
    %465 = math.rsqrt %464 : vector<8x1xf32>
    %466 = vector.broadcast %465 : vector<8x1xf32> to vector<8x32xf32>
    %467 = arith.mulf %457, %466 : vector<8x32xf32>
    %468 = vector.broadcast %450 : vector<1x32xf32> to vector<8x32xf32>
    %469 = arith.mulf %467, %468 : vector<8x32xf32>
    %470 = vector.broadcast %451 : vector<1x32xf32> to vector<8x32xf32>
    %471 = arith.addf %469, %470 : vector<8x32xf32>
    %472 = arith.extui %3 : vector<8x8xi1> to vector<8x8xi32>
    %473 = arith.sitofp %472 : vector<8x8xi32> to vector<8x8xf32>
    %c10_170 = arith.constant 10 : index
    %c0_171 = arith.constant 0 : index
    %c0_172 = arith.constant 0 : index
    %474 = vector.load %arg4[%c10_170, %c0_171, %c0_172] : memref<16x64x64xbf16, #tpu.memory_space<vmem>>, vector<1x64x64xbf16>
    %475 = vector.shape_cast %474 : vector<1x64x64xbf16> to vector<64x64xbf16>
    %476 = vector.extract_strided_slice %475 {offsets = [0, 0], sizes = [32, 32], strides = [1, 1]} : vector<64x64xbf16> to vector<32x32xbf16>
    %477 = arith.truncf %471 : vector<8x32xf32> to vector<8x32xbf16>
    %cst_173 = arith.constant dense<0.000000e+00> : vector<8x32xf32>
    %478 = tpu.matmul %477, %476, %cst_173 {dimension_numbers = #tpu.dot_dimension_numbers<[1], [0], [0], [1], [0, 0, 1, 1], [], []>} : vector<8x32xbf16>, vector<32x32xbf16>, vector<8x32xf32> -> vector<8x32xf32>
    %c20 = arith.constant 20 : index
    %c0_174 = arith.constant 0 : index
    %479 = vector.load %arg6[%c20, %c0_174] : memref<47x256xf32, #tpu.memory_space<vmem>>, vector<1x32xf32>
    %480 = vector.broadcast %479 : vector<1x32xf32> to vector<8x32xf32>
    %481 = arith.addf %478, %480 : vector<8x32xf32>
    %c11_175 = arith.constant 11 : index
    %c0_176 = arith.constant 0 : index
    %c0_177 = arith.constant 0 : index
    %482 = vector.load %arg4[%c11_175, %c0_176, %c0_177] : memref<16x64x64xbf16, #tpu.memory_space<vmem>>, vector<1x64x64xbf16>
    %483 = vector.shape_cast %482 : vector<1x64x64xbf16> to vector<64x64xbf16>
    %484 = arith.truncf %308 : vector<8x64xf32> to vector<8x64xbf16>
    %cst_178 = arith.constant dense<0.000000e+00> : vector<8x64xf32>
    %485 = tpu.matmul %484, %483, %cst_178 {dimension_numbers = #tpu.dot_dimension_numbers<[1], [0], [0], [1], [0, 0, 1, 1], [], []>} : vector<8x64xbf16>, vector<64x64xbf16>, vector<8x64xf32> -> vector<8x64xf32>
    %c21 = arith.constant 21 : index
    %c0_179 = arith.constant 0 : index
    %486 = vector.load %arg6[%c21, %c0_179] : memref<47x256xf32, #tpu.memory_space<vmem>>, vector<1x64xf32>
    %487 = vector.broadcast %486 : vector<1x64xf32> to vector<8x64xf32>
    %488 = arith.addf %485, %487 : vector<8x64xf32>
    %cst_180 = arith.constant 0.000000e+00 : f32
    %489 = vector.broadcast %cst_180 : f32 to vector<8x32xf32>
    %490 = vector.extract_strided_slice %481 {offsets = [0, 0], sizes = [8, 16], strides = [1, 1]} : vector<8x32xf32> to vector<8x16xf32>
    %491 = vector.extract_strided_slice %488 {offsets = [0, 0], sizes = [8, 32], strides = [1, 1]} : vector<8x64xf32> to vector<8x32xf32>
    %492 = arith.truncf %490 : vector<8x16xf32> to vector<8x16xbf16>
    %493 = arith.truncf %490 : vector<8x16xf32> to vector<8x16xbf16>
    "tpu.trace_start"() <{level = 10 : i32, message = "qd,kd->qk"}> : () -> ()
    %cst_181 = arith.constant dense<0.000000e+00> : vector<8x8xf32>
    %494 = tpu.matmul %492, %493, %cst_181 {dimension_numbers = #tpu.dot_dimension_numbers<[1], [1], [0], [0], [0, 0, 1, 0], [], []>} : vector<8x16xbf16>, vector<8x16xbf16>, vector<8x8xf32> -> vector<8x8xf32>
    "tpu.trace_stop"() : () -> ()
    %cst_182 = arith.constant 2.500000e-01 : f32
    %495 = vector.broadcast %cst_182 : f32 to vector<8x8xf32>
    %496 = arith.mulf %494, %495 : vector<8x8xf32>
    %cst_183 = arith.constant -1.000000e+32 : f32
    %497 = vector.broadcast %cst_183 : f32 to vector<8x8xf32>
    %498 = arith.select %3, %496, %497 : vector<8x8xi1>, vector<8x8xf32>
    %cst_184 = arith.constant dense<0xFF800000> : vector<8xf32>
    %499 = vector.multi_reduction <maximumf>, %498, %cst_184 [1] : vector<8x8xf32> to vector<8xf32>
    %500 = vector.shape_cast %499 : vector<8xf32> to vector<8x1xf32>
    %501 = vector.broadcast %500 : vector<8x1xf32> to vector<8x8xf32>
    %502 = arith.subf %498, %501 : vector<8x8xf32>
    %503 = math.exp %502 : vector<8x8xf32>
    %cst_185 = arith.constant dense<0.000000e+00> : vector<8xf32>
    %504 = vector.multi_reduction <add>, %503, %cst_185 [1] : vector<8x8xf32> to vector<8xf32>
    %505 = vector.shape_cast %504 : vector<8xf32> to vector<8x1xf32>
    %506 = tpu.reciprocal %505 {approx = true} : vector<8x1xf32> -> vector<8x1xf32>
    %507 = vector.broadcast %506 : vector<8x1xf32> to vector<8x8xf32>
    %508 = arith.mulf %503, %507 : vector<8x8xf32>
    %509 = arith.mulf %508, %473 : vector<8x8xf32>
    %cst_186 = arith.constant dense<0.000000e+00> : vector<8x8xf32>
    %510 = tpu.matmul %509, %6, %cst_186 {dimension_numbers = #tpu.dot_dimension_numbers<[1], [0], [0], [1], [0, 0, 1, 1], [], []>} : vector<8x8xf32>, vector<8x8xf32>, vector<8x8xf32> -> vector<8x8xf32>
    %cst_187 = arith.constant dense<0.000000e+00> : vector<8xf32>
    %511 = vector.multi_reduction <add>, %509, %cst_187 [1] : vector<8x8xf32> to vector<8xf32>
    %512 = vector.shape_cast %511 : vector<8xf32> to vector<8x1xf32>
    %513 = vector.broadcast %512 : vector<8x1xf32> to vector<8x8xf32>
    %514 = arith.subf %513, %510 : vector<8x8xf32>
    %515 = arith.mulf %514, %9 : vector<8x8xf32>
    %cst_188 = arith.constant 0.000000e+00 : f32
    %516 = vector.broadcast %cst_188 : f32 to vector<8x8xf32>
    %517 = arith.maximumf %515, %516 : vector<8x8xf32>
    %518 = math.sqrt %517 : vector<8x8xf32>
    %c45 = arith.constant 45 : index
    %c0_189 = arith.constant 0 : index
    %519 = vector.load %arg6[%c45, %c0_189] : memref<47x256xf32, #tpu.memory_space<vmem>>, vector<1x1xf32>
    %520 = vector.broadcast %519 : vector<1x1xf32> to vector<8x8xf32>
    %521 = arith.mulf %518, %520 : vector<8x8xf32>
    %522 = math.exp %521 : vector<8x8xf32>
    %cst_190 = arith.constant 9.99999974E-6 : f32
    %cst_191 = arith.constant 1.000000e+05 : f32
    %523 = vector.broadcast %cst_190 : f32 to vector<8x8xf32>
    %524 = arith.maximumf %523, %522 : vector<8x8xf32>
    %525 = vector.broadcast %cst_191 : f32 to vector<8x8xf32>
    %526 = arith.minimumf %525, %524 : vector<8x8xf32>
    %527 = arith.mulf %496, %526 : vector<8x8xf32>
    %cst_192 = arith.constant -1.000000e+32 : f32
    %528 = vector.broadcast %cst_192 : f32 to vector<8x8xf32>
    %529 = arith.select %3, %527, %528 : vector<8x8xi1>, vector<8x8xf32>
    %cst_193 = arith.constant dense<0xFF800000> : vector<8xf32>
    %530 = vector.multi_reduction <maximumf>, %529, %cst_193 [1] : vector<8x8xf32> to vector<8xf32>
    %531 = vector.shape_cast %530 : vector<8xf32> to vector<8x1xf32>
    %532 = vector.broadcast %531 : vector<8x1xf32> to vector<8x8xf32>
    %533 = arith.subf %529, %532 : vector<8x8xf32>
    %534 = math.exp %533 : vector<8x8xf32>
    %cst_194 = arith.constant dense<0.000000e+00> : vector<8xf32>
    %535 = vector.multi_reduction <add>, %534, %cst_194 [1] : vector<8x8xf32> to vector<8xf32>
    %536 = vector.shape_cast %535 : vector<8xf32> to vector<8x1xf32>
    %537 = tpu.reciprocal %536 {approx = true} : vector<8x1xf32> -> vector<8x1xf32>
    %538 = vector.broadcast %537 : vector<8x1xf32> to vector<8x8xf32>
    %539 = arith.mulf %534, %538 : vector<8x8xf32>
    %c0_i32 = arith.constant 0 : i32
    %540 = vector.broadcast %c0_i32 : i32 to vector<8x8xi32>
    %541 = arith.cmpi eq, %0, %540 : vector<8x8xi32>
    %cst_195 = arith.constant 0.000000e+00 : f32
    %542 = vector.broadcast %cst_195 : f32 to vector<8x8xf32>
    %543 = arith.select %541, %542, %539 : vector<8x8xi1>, vector<8x8xf32>
    %544 = arith.truncf %543 : vector<8x8xf32> to vector<8x8xbf16>
    %545 = arith.truncf %491 : vector<8x32xf32> to vector<8x32xbf16>
    %cst_196 = arith.constant dense<0.000000e+00> : vector<8x32xf32>
    %546 = tpu.matmul %544, %545, %cst_196 {dimension_numbers = #tpu.dot_dimension_numbers<[1], [0], [0], [1], [0, 0, 1, 1], [], []>} : vector<8x8xbf16>, vector<8x32xbf16>, vector<8x32xf32> -> vector<8x32xf32>
    %c12_197 = arith.constant 12 : index
    %c0_198 = arith.constant 0 : index
    %c0_199 = arith.constant 0 : index
    %547 = vector.load %arg4[%c12_197, %c0_198, %c0_199] : memref<16x64x64xbf16, #tpu.memory_space<vmem>>, vector<1x64x64xbf16>
    %548 = vector.shape_cast %547 : vector<1x64x64xbf16> to vector<64x64xbf16>
    %549 = vector.extract_strided_slice %548 {offsets = [0, 0], sizes = [32, 32], strides = [1, 1]} : vector<64x64xbf16> to vector<32x32xbf16>
    %550 = arith.truncf %546 : vector<8x32xf32> to vector<8x32xbf16>
    %cst_200 = arith.constant dense<0.000000e+00> : vector<8x32xf32>
    %551 = tpu.matmul %550, %549, %cst_200 {dimension_numbers = #tpu.dot_dimension_numbers<[1], [0], [0], [1], [0, 0, 1, 1], [], []>} : vector<8x32xbf16>, vector<32x32xbf16>, vector<8x32xf32> -> vector<8x32xf32>
    %552 = arith.addf %489, %551 : vector<8x32xf32>
    %553 = vector.extract_strided_slice %481 {offsets = [0, 16], sizes = [8, 16], strides = [1, 1]} : vector<8x32xf32> to vector<8x16xf32>
    %554 = vector.extract_strided_slice %488 {offsets = [0, 32], sizes = [8, 32], strides = [1, 1]} : vector<8x64xf32> to vector<8x32xf32>
    %555 = arith.truncf %553 : vector<8x16xf32> to vector<8x16xbf16>
    %556 = arith.truncf %553 : vector<8x16xf32> to vector<8x16xbf16>
    "tpu.trace_start"() <{level = 10 : i32, message = "qd,kd->qk"}> : () -> ()
    %cst_201 = arith.constant dense<0.000000e+00> : vector<8x8xf32>
    %557 = tpu.matmul %555, %556, %cst_201 {dimension_numbers = #tpu.dot_dimension_numbers<[1], [1], [0], [0], [0, 0, 1, 0], [], []>} : vector<8x16xbf16>, vector<8x16xbf16>, vector<8x8xf32> -> vector<8x8xf32>
    "tpu.trace_stop"() : () -> ()
    %cst_202 = arith.constant 2.500000e-01 : f32
    %558 = vector.broadcast %cst_202 : f32 to vector<8x8xf32>
    %559 = arith.mulf %557, %558 : vector<8x8xf32>
    %cst_203 = arith.constant -1.000000e+32 : f32
    %560 = vector.broadcast %cst_203 : f32 to vector<8x8xf32>
    %561 = arith.select %3, %559, %560 : vector<8x8xi1>, vector<8x8xf32>
    %cst_204 = arith.constant dense<0xFF800000> : vector<8xf32>
    %562 = vector.multi_reduction <maximumf>, %561, %cst_204 [1] : vector<8x8xf32> to vector<8xf32>
    %563 = vector.shape_cast %562 : vector<8xf32> to vector<8x1xf32>
    %564 = vector.broadcast %563 : vector<8x1xf32> to vector<8x8xf32>
    %565 = arith.subf %561, %564 : vector<8x8xf32>
    %566 = math.exp %565 : vector<8x8xf32>
    %cst_205 = arith.constant dense<0.000000e+00> : vector<8xf32>
    %567 = vector.multi_reduction <add>, %566, %cst_205 [1] : vector<8x8xf32> to vector<8xf32>
    %568 = vector.shape_cast %567 : vector<8xf32> to vector<8x1xf32>
    %569 = tpu.reciprocal %568 {approx = true} : vector<8x1xf32> -> vector<8x1xf32>
    %570 = vector.broadcast %569 : vector<8x1xf32> to vector<8x8xf32>
    %571 = arith.mulf %566, %570 : vector<8x8xf32>
    %572 = arith.mulf %571, %473 : vector<8x8xf32>
    %cst_206 = arith.constant dense<0.000000e+00> : vector<8x8xf32>
    %573 = tpu.matmul %572, %6, %cst_206 {dimension_numbers = #tpu.dot_dimension_numbers<[1], [0], [0], [1], [0, 0, 1, 1], [], []>} : vector<8x8xf32>, vector<8x8xf32>, vector<8x8xf32> -> vector<8x8xf32>
    %cst_207 = arith.constant dense<0.000000e+00> : vector<8xf32>
    %574 = vector.multi_reduction <add>, %572, %cst_207 [1] : vector<8x8xf32> to vector<8xf32>
    %575 = vector.shape_cast %574 : vector<8xf32> to vector<8x1xf32>
    %576 = vector.broadcast %575 : vector<8x1xf32> to vector<8x8xf32>
    %577 = arith.subf %576, %573 : vector<8x8xf32>
    %578 = arith.mulf %577, %9 : vector<8x8xf32>
    %cst_208 = arith.constant 0.000000e+00 : f32
    %579 = vector.broadcast %cst_208 : f32 to vector<8x8xf32>
    %580 = arith.maximumf %578, %579 : vector<8x8xf32>
    %581 = math.sqrt %580 : vector<8x8xf32>
    %c46 = arith.constant 46 : index
    %c0_209 = arith.constant 0 : index
    %582 = vector.load %arg6[%c46, %c0_209] : memref<47x256xf32, #tpu.memory_space<vmem>>, vector<1x1xf32>
    %583 = vector.broadcast %582 : vector<1x1xf32> to vector<8x8xf32>
    %584 = arith.mulf %581, %583 : vector<8x8xf32>
    %585 = math.exp %584 : vector<8x8xf32>
    %cst_210 = arith.constant 9.99999974E-6 : f32
    %cst_211 = arith.constant 1.000000e+05 : f32
    %586 = vector.broadcast %cst_210 : f32 to vector<8x8xf32>
    %587 = arith.maximumf %586, %585 : vector<8x8xf32>
    %588 = vector.broadcast %cst_211 : f32 to vector<8x8xf32>
    %589 = arith.minimumf %588, %587 : vector<8x8xf32>
    %590 = arith.mulf %559, %589 : vector<8x8xf32>
    %cst_212 = arith.constant -1.000000e+32 : f32
    %591 = vector.broadcast %cst_212 : f32 to vector<8x8xf32>
    %592 = arith.select %3, %590, %591 : vector<8x8xi1>, vector<8x8xf32>
    %cst_213 = arith.constant dense<0xFF800000> : vector<8xf32>
    %593 = vector.multi_reduction <maximumf>, %592, %cst_213 [1] : vector<8x8xf32> to vector<8xf32>
    %594 = vector.shape_cast %593 : vector<8xf32> to vector<8x1xf32>
    %595 = vector.broadcast %594 : vector<8x1xf32> to vector<8x8xf32>
    %596 = arith.subf %592, %595 : vector<8x8xf32>
    %597 = math.exp %596 : vector<8x8xf32>
    %cst_214 = arith.constant dense<0.000000e+00> : vector<8xf32>
    %598 = vector.multi_reduction <add>, %597, %cst_214 [1] : vector<8x8xf32> to vector<8xf32>
    %599 = vector.shape_cast %598 : vector<8xf32> to vector<8x1xf32>
    %600 = tpu.reciprocal %599 {approx = true} : vector<8x1xf32> -> vector<8x1xf32>
    %601 = vector.broadcast %600 : vector<8x1xf32> to vector<8x8xf32>
    %602 = arith.mulf %597, %601 : vector<8x8xf32>
    %c0_i32_215 = arith.constant 0 : i32
    %603 = vector.broadcast %c0_i32_215 : i32 to vector<8x8xi32>
    %604 = arith.cmpi eq, %0, %603 : vector<8x8xi32>
    %cst_216 = arith.constant 0.000000e+00 : f32
    %605 = vector.broadcast %cst_216 : f32 to vector<8x8xf32>
    %606 = arith.select %604, %605, %602 : vector<8x8xi1>, vector<8x8xf32>
    %607 = arith.truncf %606 : vector<8x8xf32> to vector<8x8xbf16>
    %608 = arith.truncf %554 : vector<8x32xf32> to vector<8x32xbf16>
    %cst_217 = arith.constant dense<0.000000e+00> : vector<8x32xf32>
    %609 = tpu.matmul %607, %608, %cst_217 {dimension_numbers = #tpu.dot_dimension_numbers<[1], [0], [0], [1], [0, 0, 1, 1], [], []>} : vector<8x8xbf16>, vector<8x32xbf16>, vector<8x32xf32> -> vector<8x32xf32>
    %c12_218 = arith.constant 12 : index
    %c0_219 = arith.constant 0 : index
    %c0_220 = arith.constant 0 : index
    %610 = vector.load %arg4[%c12_218, %c0_219, %c0_220] : memref<16x64x64xbf16, #tpu.memory_space<vmem>>, vector<1x64x64xbf16>
    %611 = vector.shape_cast %610 : vector<1x64x64xbf16> to vector<64x64xbf16>
    %612 = vector.extract_strided_slice %611 {offsets = [32, 0], sizes = [32, 32], strides = [1, 1]} : vector<64x64xbf16> to vector<32x32xbf16>
    %613 = arith.truncf %609 : vector<8x32xf32> to vector<8x32xbf16>
    %cst_221 = arith.constant dense<0.000000e+00> : vector<8x32xf32>
    %614 = tpu.matmul %613, %612, %cst_221 {dimension_numbers = #tpu.dot_dimension_numbers<[1], [0], [0], [1], [0, 0, 1, 1], [], []>} : vector<8x32xbf16>, vector<32x32xbf16>, vector<8x32xf32> -> vector<8x32xf32>
    %615 = arith.addf %552, %614 : vector<8x32xf32>
    %616 = arith.addf %471, %615 : vector<8x32xf32>
    %c22 = arith.constant 22 : index
    %c0_222 = arith.constant 0 : index
    %617 = vector.load %arg6[%c22, %c0_222] : memref<47x256xf32, #tpu.memory_space<vmem>>, vector<1x32xf32>
    %618 = vector.broadcast %617 : vector<1x32xf32> to vector<8x32xf32>
    %619 = arith.addf %616, %618 : vector<8x32xf32>
    %c23 = arith.constant 23 : index
    %c0_223 = arith.constant 0 : index
    %620 = vector.load %arg6[%c23, %c0_223] : memref<47x256xf32, #tpu.memory_space<vmem>>, vector<1x32xf32>
    %c24 = arith.constant 24 : index
    %c0_224 = arith.constant 0 : index
    %621 = vector.load %arg6[%c24, %c0_224] : memref<47x256xf32, #tpu.memory_space<vmem>>, vector<1x32xf32>
    %cst_225 = arith.constant dense<0.000000e+00> : vector<8xf32>
    %622 = vector.multi_reduction <add>, %619, %cst_225 [1] : vector<8x32xf32> to vector<8xf32>
    %623 = vector.shape_cast %622 : vector<8xf32> to vector<8x1xf32>
    %cst_226 = arith.constant 3.200000e+01 : f32
    %624 = vector.broadcast %cst_226 : f32 to vector<8x1xf32>
    %625 = arith.divf %623, %624 : vector<8x1xf32>
    %626 = vector.broadcast %625 : vector<8x1xf32> to vector<8x32xf32>
    %627 = arith.subf %619, %626 : vector<8x32xf32>
    %628 = arith.mulf %627, %627 : vector<8x32xf32>
    %cst_227 = arith.constant dense<0.000000e+00> : vector<8xf32>
    %629 = vector.multi_reduction <add>, %628, %cst_227 [1] : vector<8x32xf32> to vector<8xf32>
    %630 = vector.shape_cast %629 : vector<8xf32> to vector<8x1xf32>
    %cst_228 = arith.constant 3.200000e+01 : f32
    %631 = vector.broadcast %cst_228 : f32 to vector<8x1xf32>
    %632 = arith.divf %630, %631 : vector<8x1xf32>
    %cst_229 = arith.constant 9.99999974E-6 : f32
    %633 = vector.broadcast %cst_229 : f32 to vector<8x1xf32>
    %634 = arith.addf %632, %633 : vector<8x1xf32>
    %635 = math.rsqrt %634 : vector<8x1xf32>
    %636 = vector.broadcast %635 : vector<8x1xf32> to vector<8x32xf32>
    %637 = arith.mulf %627, %636 : vector<8x32xf32>
    %638 = vector.broadcast %620 : vector<1x32xf32> to vector<8x32xf32>
    %639 = arith.mulf %637, %638 : vector<8x32xf32>
    %640 = vector.broadcast %621 : vector<1x32xf32> to vector<8x32xf32>
    %641 = arith.addf %639, %640 : vector<8x32xf32>
    %c13_230 = arith.constant 13 : index
    %c0_231 = arith.constant 0 : index
    %c0_232 = arith.constant 0 : index
    %642 = vector.load %arg4[%c13_230, %c0_231, %c0_232] : memref<16x64x64xbf16, #tpu.memory_space<vmem>>, vector<1x64x64xbf16>
    %643 = vector.shape_cast %642 : vector<1x64x64xbf16> to vector<64x64xbf16>
    %644 = vector.extract_strided_slice %643 {offsets = [0, 0], sizes = [32, 64], strides = [1, 1]} : vector<64x64xbf16> to vector<32x64xbf16>
    %645 = arith.truncf %641 : vector<8x32xf32> to vector<8x32xbf16>
    %cst_233 = arith.constant dense<0.000000e+00> : vector<8x64xf32>
    %646 = tpu.matmul %645, %644, %cst_233 {dimension_numbers = #tpu.dot_dimension_numbers<[1], [0], [0], [1], [0, 0, 1, 1], [], []>} : vector<8x32xbf16>, vector<32x64xbf16>, vector<8x64xf32> -> vector<8x64xf32>
    %c25 = arith.constant 25 : index
    %c0_234 = arith.constant 0 : index
    %647 = vector.load %arg6[%c25, %c0_234] : memref<47x256xf32, #tpu.memory_space<vmem>>, vector<1x64xf32>
    %648 = vector.broadcast %647 : vector<1x64xf32> to vector<8x64xf32>
    %649 = arith.addf %646, %648 : vector<8x64xf32>
    %cst_235 = arith.constant 0.000000e+00 : f32
    %650 = vector.broadcast %cst_235 : f32 to vector<8x64xf32>
    %651 = arith.maximumf %649, %650 : vector<8x64xf32>
    %c14_236 = arith.constant 14 : index
    %c0_237 = arith.constant 0 : index
    %c0_238 = arith.constant 0 : index
    %652 = vector.load %arg4[%c14_236, %c0_237, %c0_238] : memref<16x64x64xbf16, #tpu.memory_space<vmem>>, vector<1x64x64xbf16>
    %653 = vector.shape_cast %652 : vector<1x64x64xbf16> to vector<64x64xbf16>
    %654 = vector.extract_strided_slice %653 {offsets = [0, 0], sizes = [64, 32], strides = [1, 1]} : vector<64x64xbf16> to vector<64x32xbf16>
    %655 = arith.truncf %651 : vector<8x64xf32> to vector<8x64xbf16>
    %cst_239 = arith.constant dense<0.000000e+00> : vector<8x32xf32>
    %656 = tpu.matmul %655, %654, %cst_239 {dimension_numbers = #tpu.dot_dimension_numbers<[1], [0], [0], [1], [0, 0, 1, 1], [], []>} : vector<8x64xbf16>, vector<64x32xbf16>, vector<8x32xf32> -> vector<8x32xf32>
    %c26 = arith.constant 26 : index
    %c0_240 = arith.constant 0 : index
    %657 = vector.load %arg6[%c26, %c0_240] : memref<47x256xf32, #tpu.memory_space<vmem>>, vector<1x32xf32>
    %658 = vector.broadcast %657 : vector<1x32xf32> to vector<8x32xf32>
    %659 = arith.addf %656, %658 : vector<8x32xf32>
    %660 = arith.addf %641, %659 : vector<8x32xf32>
    %c27 = arith.constant 27 : index
    %c0_241 = arith.constant 0 : index
    %661 = vector.load %arg6[%c27, %c0_241] : memref<47x256xf32, #tpu.memory_space<vmem>>, vector<1x32xf32>
    %c28 = arith.constant 28 : index
    %c0_242 = arith.constant 0 : index
    %662 = vector.load %arg6[%c28, %c0_242] : memref<47x256xf32, #tpu.memory_space<vmem>>, vector<1x32xf32>
    %cst_243 = arith.constant dense<0.000000e+00> : vector<8xf32>
    %663 = vector.multi_reduction <add>, %660, %cst_243 [1] : vector<8x32xf32> to vector<8xf32>
    %664 = vector.shape_cast %663 : vector<8xf32> to vector<8x1xf32>
    %cst_244 = arith.constant 3.200000e+01 : f32
    %665 = vector.broadcast %cst_244 : f32 to vector<8x1xf32>
    %666 = arith.divf %664, %665 : vector<8x1xf32>
    %667 = vector.broadcast %666 : vector<8x1xf32> to vector<8x32xf32>
    %668 = arith.subf %660, %667 : vector<8x32xf32>
    %669 = arith.mulf %668, %668 : vector<8x32xf32>
    %cst_245 = arith.constant dense<0.000000e+00> : vector<8xf32>
    %670 = vector.multi_reduction <add>, %669, %cst_245 [1] : vector<8x32xf32> to vector<8xf32>
    %671 = vector.shape_cast %670 : vector<8xf32> to vector<8x1xf32>
    %cst_246 = arith.constant 3.200000e+01 : f32
    %672 = vector.broadcast %cst_246 : f32 to vector<8x1xf32>
    %673 = arith.divf %671, %672 : vector<8x1xf32>
    %cst_247 = arith.constant 9.99999974E-6 : f32
    %674 = vector.broadcast %cst_247 : f32 to vector<8x1xf32>
    %675 = arith.addf %673, %674 : vector<8x1xf32>
    %676 = math.rsqrt %675 : vector<8x1xf32>
    %677 = vector.broadcast %676 : vector<8x1xf32> to vector<8x32xf32>
    %678 = arith.mulf %668, %677 : vector<8x32xf32>
    %679 = vector.broadcast %661 : vector<1x32xf32> to vector<8x32xf32>
    %680 = arith.mulf %678, %679 : vector<8x32xf32>
    %681 = vector.broadcast %662 : vector<1x32xf32> to vector<8x32xf32>
    %682 = arith.addf %680, %681 : vector<8x32xf32>
    %cst_248 = arith.constant dense<0.000000e+00> : vector<8xf32>
    %683 = vector.multi_reduction <add>, %682, %cst_248 [1] : vector<8x32xf32> to vector<8xf32>
    %684 = vector.shape_cast %683 : vector<8xf32> to vector<8x1xf32>
    %cst_249 = arith.constant dense<0.000000e+00> : vector<8xf32>
    %685 = vector.multi_reduction <add>, %54, %cst_249 [1] : vector<8x32xf32> to vector<8xf32>
    %686 = vector.shape_cast %685 : vector<8xf32> to vector<8x1xf32>
    %687 = arith.addf %684, %686 : vector<8x1xf32>
    %cst_250 = arith.constant 6.400000e+01 : f32
    %688 = vector.broadcast %cst_250 : f32 to vector<8x1xf32>
    %689 = arith.divf %687, %688 : vector<8x1xf32>
    %690 = vector.broadcast %689 : vector<8x1xf32> to vector<8x32xf32>
    %691 = arith.subf %682, %690 : vector<8x32xf32>
    %692 = vector.broadcast %689 : vector<8x1xf32> to vector<8x32xf32>
    %693 = arith.subf %54, %692 : vector<8x32xf32>
    %694 = arith.mulf %691, %691 : vector<8x32xf32>
    %cst_251 = arith.constant dense<0.000000e+00> : vector<8xf32>
    %695 = vector.multi_reduction <add>, %694, %cst_251 [1] : vector<8x32xf32> to vector<8xf32>
    %696 = vector.shape_cast %695 : vector<8xf32> to vector<8x1xf32>
    %697 = arith.mulf %693, %693 : vector<8x32xf32>
    %cst_252 = arith.constant dense<0.000000e+00> : vector<8xf32>
    %698 = vector.multi_reduction <add>, %697, %cst_252 [1] : vector<8x32xf32> to vector<8xf32>
    %699 = vector.shape_cast %698 : vector<8xf32> to vector<8x1xf32>
    %700 = arith.addf %696, %699 : vector<8x1xf32>
    %cst_253 = arith.constant 6.400000e+01 : f32
    %701 = vector.broadcast %cst_253 : f32 to vector<8x1xf32>
    %702 = arith.divf %700, %701 : vector<8x1xf32>
    %cst_254 = arith.constant 9.99999974E-6 : f32
    %703 = vector.broadcast %cst_254 : f32 to vector<8x1xf32>
    %704 = arith.addf %702, %703 : vector<8x1xf32>
    %705 = math.rsqrt %704 : vector<8x1xf32>
    %706 = vector.broadcast %705 : vector<8x1xf32> to vector<8x32xf32>
    %707 = arith.mulf %691, %706 : vector<8x32xf32>
    %c29 = arith.constant 29 : index
    %c0_255 = arith.constant 0 : index
    %708 = vector.load %arg6[%c29, %c0_255] : memref<47x256xf32, #tpu.memory_space<vmem>>, vector<1x32xf32>
    %709 = vector.broadcast %708 : vector<1x32xf32> to vector<8x32xf32>
    %710 = arith.mulf %707, %709 : vector<8x32xf32>
    %c31 = arith.constant 31 : index
    %c0_256 = arith.constant 0 : index
    %711 = vector.load %arg6[%c31, %c0_256] : memref<47x256xf32, #tpu.memory_space<vmem>>, vector<1x32xf32>
    %712 = vector.broadcast %711 : vector<1x32xf32> to vector<8x32xf32>
    %713 = arith.addf %710, %712 : vector<8x32xf32>
    %714 = vector.broadcast %705 : vector<8x1xf32> to vector<8x32xf32>
    %715 = arith.mulf %693, %714 : vector<8x32xf32>
    %c30 = arith.constant 30 : index
    %c0_257 = arith.constant 0 : index
    %716 = vector.load %arg6[%c30, %c0_257] : memref<47x256xf32, #tpu.memory_space<vmem>>, vector<1x32xf32>
    %717 = vector.broadcast %716 : vector<1x32xf32> to vector<8x32xf32>
    %718 = arith.mulf %715, %717 : vector<8x32xf32>
    %c32 = arith.constant 32 : index
    %c0_258 = arith.constant 0 : index
    %719 = vector.load %arg6[%c32, %c0_258] : memref<47x256xf32, #tpu.memory_space<vmem>>, vector<1x32xf32>
    %720 = vector.broadcast %719 : vector<1x32xf32> to vector<8x32xf32>
    %721 = arith.addf %718, %720 : vector<8x32xf32>
    %c15_259 = arith.constant 15 : index
    %c0_260 = arith.constant 0 : index
    %c0_261 = arith.constant 0 : index
    %722 = vector.load %arg4[%c15_259, %c0_260, %c0_261] : memref<16x64x64xbf16, #tpu.memory_space<vmem>>, vector<1x64x64xbf16>
    %723 = vector.shape_cast %722 : vector<1x64x64xbf16> to vector<64x64xbf16>
    %724 = vector.extract_strided_slice %723 {offsets = [0, 0], sizes = [32, 64], strides = [1, 1]} : vector<64x64xbf16> to vector<32x64xbf16>
    %725 = arith.truncf %713 : vector<8x32xf32> to vector<8x32xbf16>
    %cst_262 = arith.constant dense<0.000000e+00> : vector<8x64xf32>
    %726 = tpu.matmul %725, %724, %cst_262 {dimension_numbers = #tpu.dot_dimension_numbers<[1], [0], [0], [1], [0, 0, 1, 1], [], []>} : vector<8x32xbf16>, vector<32x64xbf16>, vector<8x64xf32> -> vector<8x64xf32>
    %727 = vector.extract_strided_slice %723 {offsets = [32, 0], sizes = [32, 64], strides = [1, 1]} : vector<64x64xbf16> to vector<32x64xbf16>
    %728 = arith.truncf %721 : vector<8x32xf32> to vector<8x32xbf16>
    %cst_263 = arith.constant dense<0.000000e+00> : vector<8x64xf32>
    %729 = tpu.matmul %728, %727, %cst_263 {dimension_numbers = #tpu.dot_dimension_numbers<[1], [0], [0], [1], [0, 0, 1, 1], [], []>} : vector<8x32xbf16>, vector<32x64xbf16>, vector<8x64xf32> -> vector<8x64xf32>
    %730 = arith.addf %726, %729 : vector<8x64xf32>
    %c33 = arith.constant 33 : index
    %c0_264 = arith.constant 0 : index
    %731 = vector.load %arg6[%c33, %c0_264] : memref<47x256xf32, #tpu.memory_space<vmem>>, vector<1x64xf32>
    %732 = vector.broadcast %731 : vector<1x64xf32> to vector<8x64xf32>
    %733 = arith.addf %730, %732 : vector<8x64xf32>
    %cst_265 = arith.constant 0.000000e+00 : f32
    %734 = vector.broadcast %cst_265 : f32 to vector<8x64xf32>
    %735 = arith.maximumf %733, %734 : vector<8x64xf32>
    %c34 = arith.constant 34 : index
    %c0_266 = arith.constant 0 : index
    %736 = vector.load %arg6[%c34, %c0_266] : memref<47x256xf32, #tpu.memory_space<vmem>>, vector<1x64xf32>
    %c35 = arith.constant 35 : index
    %c0_267 = arith.constant 0 : index
    %737 = vector.load %arg6[%c35, %c0_267] : memref<47x256xf32, #tpu.memory_space<vmem>>, vector<1x64xf32>
    %cst_268 = arith.constant dense<0.000000e+00> : vector<8xf32>
    %738 = vector.multi_reduction <add>, %735, %cst_268 [1] : vector<8x64xf32> to vector<8xf32>
    %739 = vector.shape_cast %738 : vector<8xf32> to vector<8x1xf32>
    %cst_269 = arith.constant 6.400000e+01 : f32
    %740 = vector.broadcast %cst_269 : f32 to vector<8x1xf32>
    %741 = arith.divf %739, %740 : vector<8x1xf32>
    %742 = vector.broadcast %741 : vector<8x1xf32> to vector<8x64xf32>
    %743 = arith.subf %735, %742 : vector<8x64xf32>
    %744 = arith.mulf %743, %743 : vector<8x64xf32>
    %cst_270 = arith.constant dense<0.000000e+00> : vector<8xf32>
    %745 = vector.multi_reduction <add>, %744, %cst_270 [1] : vector<8x64xf32> to vector<8xf32>
    %746 = vector.shape_cast %745 : vector<8xf32> to vector<8x1xf32>
    %cst_271 = arith.constant 6.400000e+01 : f32
    %747 = vector.broadcast %cst_271 : f32 to vector<8x1xf32>
    %748 = arith.divf %746, %747 : vector<8x1xf32>
    %cst_272 = arith.constant 9.99999974E-6 : f32
    %749 = vector.broadcast %cst_272 : f32 to vector<8x1xf32>
    %750 = arith.addf %748, %749 : vector<8x1xf32>
    %751 = math.rsqrt %750 : vector<8x1xf32>
    %752 = vector.broadcast %751 : vector<8x1xf32> to vector<8x64xf32>
    %753 = arith.mulf %743, %752 : vector<8x64xf32>
    %754 = vector.broadcast %736 : vector<1x64xf32> to vector<8x64xf32>
    %755 = arith.mulf %753, %754 : vector<8x64xf32>
    %756 = vector.broadcast %737 : vector<1x64xf32> to vector<8x64xf32>
    %757 = arith.addf %755, %756 : vector<8x64xf32>
    %c0_273 = arith.constant 0 : index
    %c0_274 = arith.constant 0 : index
    %758 = vector.load %arg5[%c0_273, %c0_274] : memref<64x256xbf16, #tpu.memory_space<vmem>>, vector<64x256xbf16>
    %759 = arith.truncf %757 : vector<8x64xf32> to vector<8x64xbf16>
    %cst_275 = arith.constant dense<0.000000e+00> : vector<8x256xf32>
    %760 = tpu.matmul %759, %758, %cst_275 {dimension_numbers = #tpu.dot_dimension_numbers<[1], [0], [0], [1], [0, 0, 1, 1], [], []>} : vector<8x64xbf16>, vector<64x256xbf16>, vector<8x256xf32> -> vector<8x256xf32>
    %c36 = arith.constant 36 : index
    %c0_276 = arith.constant 0 : index
    %761 = vector.load %arg6[%c36, %c0_276] : memref<47x256xf32, #tpu.memory_space<vmem>>, vector<1x256xf32>
    %762 = vector.broadcast %761 : vector<1x256xf32> to vector<8x256xf32>
    %763 = arith.addf %760, %762 : vector<8x256xf32>
    %cst_277 = arith.constant 0.000000e+00 : f32
    %764 = vector.broadcast %cst_277 : f32 to vector<8x256xf32>
    %765 = arith.maximumf %763, %764 : vector<8x256xf32>
    %c37 = arith.constant 37 : index
    %c0_278 = arith.constant 0 : index
    %766 = vector.load %arg6[%c37, %c0_278] : memref<47x256xf32, #tpu.memory_space<vmem>>, vector<1x256xf32>
    %c38 = arith.constant 38 : index
    %c0_279 = arith.constant 0 : index
    %767 = vector.load %arg6[%c38, %c0_279] : memref<47x256xf32, #tpu.memory_space<vmem>>, vector<1x256xf32>
    %cst_280 = arith.constant dense<0.000000e+00> : vector<8xf32>
    %768 = vector.multi_reduction <add>, %765, %cst_280 [1] : vector<8x256xf32> to vector<8xf32>
    %769 = vector.shape_cast %768 : vector<8xf32> to vector<8x1xf32>
    %cst_281 = arith.constant 2.560000e+02 : f32
    %770 = vector.broadcast %cst_281 : f32 to vector<8x1xf32>
    %771 = arith.divf %769, %770 : vector<8x1xf32>
    %772 = vector.broadcast %771 : vector<8x1xf32> to vector<8x256xf32>
    %773 = arith.subf %765, %772 : vector<8x256xf32>
    %774 = arith.mulf %773, %773 : vector<8x256xf32>
    %cst_282 = arith.constant dense<0.000000e+00> : vector<8xf32>
    %775 = vector.multi_reduction <add>, %774, %cst_282 [1] : vector<8x256xf32> to vector<8xf32>
    %776 = vector.shape_cast %775 : vector<8xf32> to vector<8x1xf32>
    %cst_283 = arith.constant 2.560000e+02 : f32
    %777 = vector.broadcast %cst_283 : f32 to vector<8x1xf32>
    %778 = arith.divf %776, %777 : vector<8x1xf32>
    %cst_284 = arith.constant 9.99999974E-6 : f32
    %779 = vector.broadcast %cst_284 : f32 to vector<8x1xf32>
    %780 = arith.addf %778, %779 : vector<8x1xf32>
    %781 = math.rsqrt %780 : vector<8x1xf32>
    %782 = vector.broadcast %781 : vector<8x1xf32> to vector<8x256xf32>
    %783 = arith.mulf %773, %782 : vector<8x256xf32>
    %784 = vector.broadcast %766 : vector<1x256xf32> to vector<8x256xf32>
    %785 = arith.mulf %783, %784 : vector<8x256xf32>
    %786 = vector.broadcast %767 : vector<1x256xf32> to vector<8x256xf32>
    %787 = arith.addf %785, %786 : vector<8x256xf32>
    %c39 = arith.constant 39 : index
    %c0_285 = arith.constant 0 : index
    %788 = vector.load %arg6[%c39, %c0_285] : memref<47x256xf32, #tpu.memory_space<vmem>>, vector<1x256xf32>
    %789 = vector.broadcast %788 : vector<1x256xf32> to vector<8x256xf32>
    %790 = arith.mulf %787, %789 : vector<8x256xf32>
    %cst_286 = arith.constant dense<0.000000e+00> : vector<8xf32>
    %791 = vector.multi_reduction <add>, %790, %cst_286 [1] : vector<8x256xf32> to vector<8xf32>
    %792 = vector.shape_cast %791 : vector<8xf32> to vector<8x1xf32>
    %c40 = arith.constant 40 : index
    %c0_287 = arith.constant 0 : index
    %793 = vector.load %arg6[%c40, %c0_287] : memref<47x256xf32, #tpu.memory_space<vmem>>, vector<1x1xf32>
    %794 = vector.broadcast %793 : vector<1x1xf32> to vector<8x1xf32>
    %795 = arith.addf %792, %794 : vector<8x1xf32>
    %796 = vector.shape_cast %795 : vector<8x1xf32> to vector<8x1xf32>
    %797 = vector.broadcast %796 : vector<8x1xf32> to vector<8x128xf32>
    %c0_288 = arith.constant 0 : index
    %c0_289 = arith.constant 0 : index
    %798 = vector.load %arg7[%c0_288, %c0_289] : memref<8x128xf32, #tpu.memory_space<vmem>>, vector<8x128xf32>
    tpu.vector_store %arg7[%c0_288, %c0_289], %797 {strides = array<i32>} : memref<8x128xf32, #tpu.memory_space<vmem>>, vector<8x128xf32>,
    return
  }
  func.func @transform_0(%arg0: i32) -> (i32, i32, i32) {
    %c0_i32 = arith.constant 0 : i32
    %c0_i32_0 = arith.constant 0 : i32
    %c0_i32_1 = arith.constant 0 : i32
    return %arg0, %c0_i32, %c0_i32_0 : i32, i32, i32
  }
  func.func @transform_1(%arg0: i32) -> (i32, i32, i32) {
    %c0_i32 = arith.constant 0 : i32
    %c0_i32_0 = arith.constant 0 : i32
    %c0_i32_1 = arith.constant 0 : i32
    return %arg0, %c0_i32, %c0_i32_0 : i32, i32, i32
  }
  func.func @transform_2(%arg0: i32) -> (i32, i32, i32) {
    %c0_i32 = arith.constant 0 : i32
    %c0_i32_0 = arith.constant 0 : i32
    %c0_i32_1 = arith.constant 0 : i32
    return %arg0, %c0_i32, %c0_i32_0 : i32, i32, i32
  }
  func.func @transform_3(%arg0: i32) -> (i32, i32, i32) {
    %c0_i32 = arith.constant 0 : i32
    %c0_i32_0 = arith.constant 0 : i32
    %c0_i32_1 = arith.constant 0 : i32
    %c0_i32_2 = arith.constant 0 : i32
    return %c0_i32, %c0_i32_0, %c0_i32_1 : i32, i32, i32
  }
  func.func @transform_4(%arg0: i32) -> (i32, i32) {
    %c0_i32 = arith.constant 0 : i32
    %c0_i32_0 = arith.constant 0 : i32
    %c0_i32_1 = arith.constant 0 : i32
    return %c0_i32, %c0_i32_0 : i32, i32
  }
  func.func @transform_5(%arg0: i32) -> (i32, i32) {
    %c0_i32 = arith.constant 0 : i32
    %c0_i32_0 = arith.constant 0 : i32
    %c0_i32_1 = arith.constant 0 : i32
    return %c0_i32, %c0_i32_0 : i32, i32
  }
  func.func @transform_6(%arg0: i32) -> (i32, i32) {
    %c0_i32 = arith.constant 0 : i32
    %c0_i32_0 = arith.constant 0 : i32
    return %arg0, %c0_i32 : i32, i32
  }
}

</mosaic_0001>

<llo_original>
// kernel: qakt_forward.1
$region0: #{qakt_forward.1}
  #allocation0 [shape = 'u32[]', space=smem, size = 0x4, offset = 0x4, fixed_abs, tag = 'smem constant byte address 0x4 - core index']
  #allocation1 [shape = 'u32[144,128]{1,0:T(1,128)}', space=vmem, size = 0x12000, scoped, tag = 'internal scratch']
  %s0 = inlined_call_operand.vmem [shape: f32[2,8,16], index: 0, kind: input, shape index: {}]
  %s1 = inlined_call_operand.vmem [shape: f32[2,8,32], index: 1, kind: input, shape index: {}]
  %s2 = inlined_call_operand.vmem [shape: f32[2,8,1], index: 2, kind: input, shape index: {}]
  %s3 = inlined_call_operand.vmem [shape: bf16[16,64,64], index: 3, kind: input, shape index: {}]
  %s4 = inlined_call_operand.vmem [shape: bf16[64,256], index: 4, kind: input, shape index: {}]
  %s5 = inlined_call_operand.vmem [shape: f32[47,256], index: 5, kind: input, shape index: {}]
  %s6 = inlined_call_operand.vmem [shape: f32[16,128], index: 6, kind: output, shape index: {}]
  %s7 = sld [smem:[#allocation0]]
  $region57: #{qakt_forward.1} parent=0
    _
  %s9 = ssub.s32 1, %s7
  %s10 = scalar_select 0, %s9, %s7
  loop: start=0, step=1, limit=4
  $region2: #{qakt_forward.1} parent=0 // loop_pre_header
    _
  $region3: #{qakt_forward.1} parent=0 // loop_header
    %s12 = sphi 0, %s16
    %p13 = scmp.ge.s32.totalorder %s12, 4
    %s22 = sphi 0, %s24
    %s25 = sphi 0, %s22
    %s26 = sphi 0, %s25
    %s42 = sphi 0, %s26
    %s48 = sphi 0, %s50
    %s51 = sphi 0, %s48
    %s52 = sphi 0, %s51
    %s68 = sphi 0, %s52
    %s74 = sphi 0, %s76
    %s77 = sphi 0, %s74
    %s78 = sphi 0, %s77
    %s94 = sphi 0, %s78
    %s98 = sphi 0, %s98
    %s100 = sphi 0, %s98
    %s101 = sphi 0, %s100
    %s115 = sphi 0, %s101
    %s119 = sphi 0, %s119
    %s121 = sphi 0, %s119
    %s122 = sphi 0, %s121
    %s136 = sphi 0, %s122
    %s140 = sphi 0, %s140
    %s142 = sphi 0, %s140
    %s143 = sphi 0, %s142
    %s157 = sphi 0, %s143
    %s163 = sphi 0, %s165
    %s166 = sphi 0, %s163
    %s167 = sphi 0, %s166
    %s183 = sphi 0, %s167
  $region4: #{qakt_forward.1} parent=0 // loop_header_branch
    %15 = sbr.rel (%p13) target = $region8
  $region5: #{qakt_forward.1} parent=0 // loop_body
    %s17 = ssub.s32 %s12, 1
    %s18 = ssub.s32 %s12, 2
    %s19 = sadd.s32 %s12, 1
    %s20 = ssub.s32 %s12, %s19
    %p21 = scmp.eq.s32.totalorder %s20, 0
    %s23 = sadd.s32 %s22, 1
    %s24 = scalar_select %p21, %s22, %s23
    %p27 = pneg %p21
    %p28 = scmp.eq.s32.totalorder %s12, 1
    %p29 = por %p27, %p28
    %p30 = scmp.ne.s32.totalorder %s22, %s25
    %p31 = scmp.eq.s32.totalorder %s12, 0
    %p32 = por %p30, %p31
    %p33 = scmp.ne.s32.totalorder %s22, %s25
    %p34 = scmp.eq.s32.totalorder %s17, 1
    %p35 = por %p33, %p34
    %p36 = scmp.ne.s32.totalorder %s25, %s26
    %p37 = scmp.eq.s32.totalorder %s17, 0
    %p38 = por %p36, %p37
    %p39 = scmp.ne.s32.totalorder %s25, %s26
    %p40 = scmp.eq.s32.totalorder %s18, 1
    %p41 = por %p39, %p40
    %p43 = scmp.ne.s32.totalorder %s26, %s42
    %p44 = scmp.eq.s32.totalorder %s18, 0
    %p45 = por %p43, %p44
    %s46 = ssub.s32 %s12, %s19
    %p47 = scmp.eq.s32.totalorder %s46, 0
    %s49 = sadd.s32 %s48, 1
    %s50 = scalar_select %p47, %s48, %s49
    %p53 = pneg %p47
    %p54 = scmp.eq.s32.totalorder %s12, 1
    %p55 = por %p53, %p54
    %p56 = scmp.ne.s32.totalorder %s48, %s51
    %p57 = scmp.eq.s32.totalorder %s12, 0
    %p58 = por %p56, %p57
    %p59 = scmp.ne.s32.totalorder %s48, %s51
    %p60 = scmp.eq.s32.totalorder %s17, 1
    %p61 = por %p59, %p60
    %p62 = scmp.ne.s32.totalorder %s51, %s52
    %p63 = scmp.eq.s32.totalorder %s17, 0
    %p64 = por %p62, %p63
    %p65 = scmp.ne.s32.totalorder %s51, %s52
    %p66 = scmp.eq.s32.totalorder %s18, 1
    %p67 = por %p65, %p66
    %p69 = scmp.ne.s32.totalorder %s52, %s68
    %p70 = scmp.eq.s32.totalorder %s18, 0
    %p71 = por %p69, %p70
    %s72 = ssub.s32 %s12, %s19
    %p73 = scmp.eq.s32.totalorder %s72, 0
    %s75 = sadd.s32 %s74, 1
    %s76 = scalar_select %p73, %s74, %s75
    %p79 = pneg %p73
    %p80 = scmp.eq.s32.totalorder %s12, 1
    %p81 = por %p79, %p80
    %p82 = scmp.ne.s32.totalorder %s74, %s77
    %p83 = scmp.eq.s32.totalorder %s12, 0
    %p84 = por %p82, %p83
    %p85 = scmp.ne.s32.totalorder %s74, %s77
    %p86 = scmp.eq.s32.totalorder %s17, 1
    %p87 = por %p85, %p86
    %p88 = scmp.ne.s32.totalorder %s77, %s78
    %p89 = scmp.eq.s32.totalorder %s17, 0
    %p90 = por %p88, %p89
    %p91 = scmp.ne.s32.totalorder %s77, %s78
    %p92 = scmp.eq.s32.totalorder %s18, 1
    %p93 = por %p91, %p92
    %p95 = scmp.ne.s32.totalorder %s78, %s94
    %p96 = scmp.eq.s32.totalorder %s18, 0
    %p97 = por %p95, %p96
    %s99 = sadd.s32 %s98, 1
    %p102 = scmp.eq.s32.totalorder %s12, 1
    %p103 = scmp.ne.s32.totalorder %s98, %s100
    %p104 = scmp.eq.s32.totalorder %s12, 0
    %p105 = por %p103, %p104
    %p106 = scmp.ne.s32.totalorder %s98, %s100
    %p107 = scmp.eq.s32.totalorder %s17, 1
    %p108 = por %p106, %p107
    %p109 = scmp.ne.s32.totalorder %s100, %s101
    %p110 = scmp.eq.s32.totalorder %s17, 0
    %p111 = por %p109, %p110
    %p112 = scmp.ne.s32.totalorder %s100, %s101
    %p113 = scmp.eq.s32.totalorder %s18, 1
    %p114 = por %p112, %p113
    %p116 = scmp.ne.s32.totalorder %s101, %s115
    %p117 = scmp.eq.s32.totalorder %s18, 0
    %p118 = por %p116, %p117
    %s120 = sadd.s32 %s119, 1
    %p123 = scmp.eq.s32.totalorder %s12, 1
    %p124 = scmp.ne.s32.totalorder %s119, %s121
    %p125 = scmp.eq.s32.totalorder %s12, 0
    %p126 = por %p124, %p125
    %p127 = scmp.ne.s32.totalorder %s119, %s121
    %p128 = scmp.eq.s32.totalorder %s17, 1
    %p129 = por %p127, %p128
    %p130 = scmp.ne.s32.totalorder %s121, %s122
    %p131 = scmp.eq.s32.totalorder %s17, 0
    %p132 = por %p130, %p131
    %p133 = scmp.ne.s32.totalorder %s121, %s122
    %p134 = scmp.eq.s32.totalorder %s18, 1
    %p135 = por %p133, %p134
    %p137 = scmp.ne.s32.totalorder %s122, %s136
    %p138 = scmp.eq.s32.totalorder %s18, 0
    %p139 = por %p137, %p138
    %s141 = sadd.s32 %s140, 1
    %p144 = scmp.eq.s32.totalorder %s12, 1
    %p145 = scmp.ne.s32.totalorder %s140, %s142
    %p146 = scmp.eq.s32.totalorder %s12, 0
    %p147 = por %p145, %p146
    %p148 = scmp.ne.s32.totalorder %s140, %s142
    %p149 = scmp.eq.s32.totalorder %s17, 1
    %p150 = por %p148, %p149
    %p151 = scmp.ne.s32.totalorder %s142, %s143
    %p152 = scmp.eq.s32.totalorder %s17, 0
    %p153 = por %p151, %p152
    %p154 = scmp.ne.s32.totalorder %s142, %s143
    %p155 = scmp.eq.s32.totalorder %s18, 1
    %p156 = por %p154, %p155
    %p158 = scmp.ne.s32.totalorder %s143, %s157
    %p159 = scmp.eq.s32.totalorder %s18, 0
    %p160 = por %p158, %p159
    %s161 = ssub.s32 %s12, %s19
    %p162 = scmp.eq.s32.totalorder %s161, 0
    %s164 = sadd.s32 %s163, 1
    %s165 = scalar_select %p162, %s163, %s164
    %p168 = pneg %p162
    %p169 = scmp.eq.s32.totalorder %s12, 1
    %p170 = por %p168, %p169
    %p171 = scmp.ne.s32.totalorder %s163, %s166
    %p172 = scmp.eq.s32.totalorder %s12, 0
    %p173 = por %p171, %p172
    %p174 = scmp.ne.s32.totalorder %s163, %s166
    %p175 = scmp.eq.s32.totalorder %s17, 1
    %p176 = por %p174, %p175
    %p177 = scmp.ne.s32.totalorder %s166, %s167
    %p178 = scmp.eq.s32.totalorder %s17, 0
    %p179 = por %p177, %p178
    %p180 = scmp.ne.s32.totalorder %s166, %s167
    %p181 = scmp.eq.s32.totalorder %s18, 1
    %p182 = por %p180, %p181
    %p184 = scmp.ne.s32.totalorder %s167, %s183
    %p185 = scmp.eq.s32.totalorder %s18, 0
    %p186 = por %p184, %p185
    %p187 = scmp.le.s32.totalorder 1, %s12
    %p188 = scmp.lt.s32.totalorder %s12, 3
    %p189 = pnand %p187, %p188
    %p190 = pneg %p189
    // Predicated region
    $region9: #{qakt_forward.1} parent=5 // pred_check
      _
    $region10: #{qakt_forward.1} parent=5 // pred_check_branch
      %192 = sbr.rel (%p189) target = $region12
    $region11: #{qakt_forward.1} parent=5 // pred_region
      %s193 = ssub.s32 %s12, 1
      // Predicated region
      $region13: #{qakt_forward.1} parent=11 // pred_check
        %p194 = pneg %p111
      $region14: #{qakt_forward.1} parent=11 // pred_check_branch
        %196 = sbr.rel (%p194) target = $region16
      $region15: #{qakt_forward.1} parent=11 // pred_region
        _
      $region16: #{qakt_forward.1} parent=11 // pred_fallthru
        _
      // Predicated region
      $region17: #{qakt_forward.1} parent=11 // pred_check
        %p197 = pneg %p132
      $region18: #{qakt_forward.1} parent=11 // pred_check_branch
        %199 = sbr.rel (%p197) target = $region20
      $region19: #{qakt_forward.1} parent=11 // pred_region
        _
      $region20: #{qakt_forward.1} parent=11 // pred_fallthru
        _
      // Predicated region
      $region21: #{qakt_forward.1} parent=11 // pred_check
        %p200 = pneg %p153
      $region22: #{qakt_forward.1} parent=11 // pred_check_branch
        %202 = sbr.rel (%p200) target = $region24
      $region23: #{qakt_forward.1} parent=11 // pred_region
        _
      $region24: #{qakt_forward.1} parent=11 // pred_fallthru
        _
    $region12: #{qakt_forward.1} parent=5 // pred_fallthru
      _
    %p203 = scmp.lt.s32.totalorder %s12, 2
    // Predicated region
    $region25: #{qakt_forward.1} parent=5 // pred_check
      %p204 = pneg %p203
    $region26: #{qakt_forward.1} parent=5 // pred_check_branch
      %206 = sbr.rel (%p204) target = $region28
    $region27: #{qakt_forward.1} parent=5 // pred_region
      // Predicated region
      $region29: #{qakt_forward.1} parent=27 // pred_check
        %p207 = pneg %p32
      $region30: #{qakt_forward.1} parent=27 // pred_check_branch
        %209 = sbr.rel (%p207) target = $region32
      $region31: #{qakt_forward.1} parent=27 // pred_region
        %p210 = scmp.lt.s32.totalorder %s12, 1
        %s211 = scalar_select %p210, %s12, 1
        %s212 = smul.addr %s211, 8
        %s213 = scalar_lea.vmem %s0, %s212
      $region32: #{qakt_forward.1} parent=27 // pred_fallthru
        _
      // Predicated region
      $region33: #{qakt_forward.1} parent=27 // pred_check
        %p214 = pneg %p58
      $region34: #{qakt_forward.1} parent=27 // pred_check_branch
        %216 = sbr.rel (%p214) target = $region36
      $region35: #{qakt_forward.1} parent=27 // pred_region
        %p217 = scmp.lt.s32.totalorder %s12, 1
        %s218 = scalar_select %p217, %s12, 1
        %s219 = smul.addr %s218, 8
        %s220 = scalar_lea.vmem %s1, %s219
      $region36: #{qakt_forward.1} parent=27 // pred_fallthru
        _
      // Predicated region
      $region37: #{qakt_forward.1} parent=27 // pred_check
        %p221 = pneg %p84
      $region38: #{qakt_forward.1} parent=27 // pred_check_branch
        %223 = sbr.rel (%p221) target = $region40
      $region39: #{qakt_forward.1} parent=27 // pred_region
        %p224 = scmp.lt.s32.totalorder %s12, 1
        %s225 = scalar_select %p224, %s12, 1
        %s226 = smul.addr %s225, 8
        %s227 = scalar_lea.vmem %s2, %s226
      $region40: #{qakt_forward.1} parent=27 // pred_fallthru
        _
    $region28: #{qakt_forward.1} parent=5 // pred_fallthru
      _
    %p228 = scmp.le.s32.totalorder 1, %s12
    %p229 = scmp.lt.s32.totalorder %s12, 3
    %p230 = pnand %p228, %p229
    %p231 = pneg %p230
    // Predicated region
    $region41: #{qakt_forward.1} parent=5 // pred_check
      _
    $region42: #{qakt_forward.1} parent=5 // pred_check_branch
      %233 = sbr.rel (%p230) target = $region44
    $region43: #{qakt_forward.1} parent=5 // pred_region
      %s234 = ssub.s32 %s12, 1
      %p235 = scmp.lt.s32.totalorder %s17, 1
      %s236 = scalar_select %p235, %s17, 1
      %s237 = smul.addr %s236, 8
      %s238 = scalar_lea.vmem %s0, %s237
      %p239 = pneg %p38
      %p240 = pneg %p35
      %p241 = scmp.lt.s32.totalorder %s17, 1
      %s242 = scalar_select %p241, %s17, 1
      %s243 = smul.addr %s242, 8
      %s244 = scalar_lea.vmem %s1, %s243
      %p245 = pneg %p64
      %p246 = pneg %p61
      %p247 = scmp.lt.s32.totalorder %s17, 1
      %s248 = scalar_select %p247, %s17, 1
      %s249 = smul.addr %s248, 8
      %s250 = scalar_lea.vmem %s2, %s249
      %p251 = pneg %p90
      %p252 = pneg %p87
      %p253 = pneg %p111
      %p254 = pneg %p108
      %p255 = pneg %p132
      %p256 = pneg %p129
      %p257 = pneg %p153
      %p258 = pneg %p150
      %p259 = pneg %p179
      %p260 = pneg %p176
      %p261 = scmp.lt.s32.totalorder %s17, 1
      %s262 = scalar_select %p261, %s17, 1
      %s263 = smul.addr %s262, 8
      %s264 = scalar_lea.vmem %s6, %s263
      %p265 = scmp.lt.s32.totalorder %s17, 1
      %s266 = scalar_select %p265, %s17, 1
      %s267 = smul.addr %s266, 8
      %s268 = scalar_lea.vmem %s0, %s267
      %p269 = scmp.lt.s32.totalorder %s17, 1
      %s270 = scalar_select %p269, %s17, 1
      %s271 = smul.addr %s270, 8
      %s272 = scalar_lea.vmem %s1, %s271
      %p273 = scmp.lt.s32.totalorder %s17, 1
      %s274 = scalar_select %p273, %s17, 1
      %s275 = smul.addr %s274, 8
      %s276 = scalar_lea.vmem %s2, %s275
      %p277 = scmp.lt.s32.totalorder %s17, 1
      %s278 = scalar_select %p277, %s17, 1
      %s279 = smul.addr %s278, 8
      %s280 = scalar_lea.vmem %s6, %s279
      %v282 = vlaneseq
      %v283 = vshrl.u32 %v282, 7
      %v284 = vlaneseq
      %v285 = vand.u32 %v284, 127
      %vm286 = vcmp.le.s32.totalorder %v285, %v283
      %vm287 = vcmp.lt.s32.totalorder %v285, %v283
      %vm288 = vcmp.le.s32.totalorder %v283, %v285
      %v289 = vsel %vm288, 1, 0
      %v290 = vcvt.s32.f32 %v289
      %v291 = vsub.s32 %v283, %v285
      %vm292 = vcmp.lt.s32.totalorder %v291, 0
      %v293 = vsub.s32 0, %v291
      %v294 = vsel %vm292, %v293, %v291
      %v295 = vcvt.s32.f32 %v294
      %v296 = vld [vmem:[%s268] sm:$0xff]
      %v297 = vld [vmem:[%s272] sm:$0xff]
      %v298 = vld [vmem:[%s276] sm:$0xff]
      %vm299 = vcmask 130048
      %v300 = vsel %vm299, %v296, 0.0
      %301 = vadd.xlane.f32.xlu0 %v300
      %v302 = vpop.xlane.xlu0 %301
      %v303 = vld [vmem:[%s3] sm:$0xf]
      %v304 = vld [vmem:[%s3 + $0x4] sm:$0xf]
      %v305 = vpack.c.bf16 %v296, %v296
      %v306 = vld [vmem:[%s5] ss:$0 sm:$0xff]
      %v309 = vunpack.c.l.b16 %v303
      %v310 = vunpack.c.l.b16 %v304
      %v311 = vpack.c.b16 %v310, %v309
      %v314 = vsel %vm299, %v305, 0
      %316 = vmatprep.subr.bf16.mxu0 0
      %317 = vmatpush1.bf16.msra.mxu0 0
      %318 = vmatprep.subr.bf16.mxu0 0
      %319 = vmatpush1.bf16.msra.mxu0 0
      %320 = vmatprep.subr.bf16.mxu0 0
      %321 = vmatpush1.bf16.msra.mxu0 0
      %322 = vmatprep.subr.bf16.mxu0 0
      %323 = vmatpush1.bf16.msra.mxu0 0
      %324 = vmatprep.subr.bf16.mxu0 0
      %325 = vmatpush1.bf16.msra.mxu0 0
      %326 = vmatprep.subr.bf16.mxu0 0
      %327 = vmatpush1.bf16.msra.mxu0 0
      %328 = vmatprep.subr.bf16.mxu0 0
      %329 = vmatpush1.bf16.msra.mxu0 0
      %330 = vmatprep.subr.bf16.mxu0 0
      %331 = vmatpush1.bf16.msra.mxu0 %v311
      %332 = vmatprep.subr.bf16.mxu0 0
      %333 = vmatpush2.bf16.msra.mxu0 0
      %334 = vmatprep.subr.bf16.mxu0 0
      %335 = vmatpush2.bf16.msra.mxu0 0
      %336 = vmatprep.subr.bf16.mxu0 0
      %337 = vmatpush2.bf16.msra.mxu0 0
      %338 = vmatprep.subr.bf16.mxu0 0
      %339 = vmatpush2.bf16.msra.mxu0 0
      %340 = vmatprep.subr.bf16.mxu0 0
      %341 = vmatpush2.bf16.msra.mxu0 0
      %342 = vmatprep.subr.bf16.mxu0 0
      %343 = vmatpush2.bf16.msra.mxu0 0
      %344 = vmatprep.subr.bf16.mxu0 0
      %345 = vmatpush2.bf16.msra.mxu0 0
      %346 = vmatprep.subr.bf16.mxu0 0
      %347 = vmatpush2.bf16.msra.mxu0 0
      %348 = vmatprep.mubr.bf16.mxu0 0
      %349 = vmatmul.mubr.bf16.gmra.mxu0 %v314
      %v350 = vpop.f32.mrf.mxu0
      %v351 = vadd.f32 %v306, %v350
      %v352 = vpop.f32.mrf.mxu0
      %v353 = vpop.f32.mrf.mxu0
      %v354 = vpop.f32.mrf.mxu0
      %355 = vdwg.mxu0
      %v356 = vmax.f32 %v351, 0.0
      %v357 = vrcp.pop %v302
      %v358 = vmul.f32 %v356, %v357
      %360 = vset.pattern.permute.xlu0 0
      %361 = vperm.xlu0 %360, %v298
      %v362 = vpop.permute.xlu0 %361
      %v364 = vadd.f32 %v358, %v362
      %v365 = vld [vmem:[%s5 + $0x2] ss:$0 sm:$0xff]
      %v366 = vld [vmem:[%s5 + $0x3] ss:$0 sm:$0xff]
      %vm367 = vcmask 261120
      %v368 = vsel %vm367, %v364, 0.0
      %369 = vadd.xlane.f32.xlu0 %v368
      %v370 = vpop.xlane.xlu0 %369
      %v371 = vrcp.pop 32.0
      %v372 = vmul.f32 %v370, %v371
      %v373 = vsub.f32 %v364, %v372
      %v374 = vmul.f32 %v373, %v373
      %v375 = vsel %vm367, %v374, 0.0
      %376 = vadd.xlane.f32.xlu0 %v375
      %v377 = vpop.xlane.xlu0 %376
      %v378 = vmul.f32 %v377, %v371
      %v379 = vadd.f32 %v378, 1e-05
      %v380 = vrsqrt.pop %v379
      %v381 = vmul.f32 %v373, %v380
      %v382 = vmul.f32 %v381, %v365
      %v383 = vadd.f32 %v382, %v366
      %vm384 = vcmp.lt.s32.totalorder %v285, 16
      %v385 = vsel %vm384, %v297, 0.0
      %v386 = vsel %vm367, %v385, 0.0
      %387 = vadd.xlane.f32.xlu0 %v386
      %v388 = vpop.xlane.xlu0 %387
      %v389 = vsel %vm367, %v297, 0.0
      %390 = vadd.xlane.f32.xlu0 %v389
      %v391 = vpop.xlane.xlu0 %390
      %v392 = vsub.f32 %v391, %v388
      %s393 = scalar_lea.vmem %s3, 32
      %v394 = vld [vmem:[%s393] sm:$0xf]
      %v395 = vld [vmem:[%s393 + $0x4] sm:$0xf]
      %v396 = vld [vmem:[%s393 + $0x8] sm:$0xf]
      %v397 = vld [vmem:[%s393 + $0xc] sm:$0xf]
      %v398 = vpack.c.bf16 %v297, %v297
      %v399 = vld [vmem:[%s5 + $0x1] ss:$0 sm:$0xff]
      %v404 = vunpack.c.l.b16 %v394
      %v405 = vunpack.c.l.b16 %v395
      %v406 = vunpack.c.l.b16 %v396
      %v407 = vunpack.c.l.b16 %v397
      %v408 = vpack.c.b16 %v405, %v404
      %v409 = vpack.c.b16 %v407, %v406
      %v413 = vsel %vm367, %v398, 0
      %415 = vmatprep.subr.bf16.mxu0 0
      %416 = vmatpush1.bf16.msra.mxu0 0
      %417 = vmatprep.subr.bf16.mxu0 0
      %418 = vmatpush1.bf16.msra.mxu0 0
      %419 = vmatprep.subr.bf16.mxu0 0
      %420 = vmatpush1.bf16.msra.mxu0 0
      %421 = vmatprep.subr.bf16.mxu0 0
      %422 = vmatpush1.bf16.msra.mxu0 0
      %423 = vmatprep.subr.bf16.mxu0 0
      %424 = vmatpush1.bf16.msra.mxu0 0
      %425 = vmatprep.subr.bf16.mxu0 0
      %426 = vmatpush1.bf16.msra.mxu0 0
      %427 = vmatprep.subr.bf16.mxu0 0
      %428 = vmatpush1.bf16.msra.mxu0 %v409
      %429 = vmatprep.subr.bf16.mxu0 0
      %430 = vmatpush1.bf16.msra.mxu0 %v408
      %431 = vmatprep.subr.bf16.mxu0 0
      %432 = vmatpush2.bf16.msra.mxu0 0
      %433 = vmatprep.subr.bf16.mxu0 0
      %434 = vmatpush2.bf16.msra.mxu0 0
      %435 = vmatprep.subr.bf16.mxu0 0
      %436 = vmatpush2.bf16.msra.mxu0 0
      %437 = vmatprep.subr.bf16.mxu0 0
      %438 = vmatpush2.bf16.msra.mxu0 0
      %439 = vmatprep.subr.bf16.mxu0 0
      %440 = vmatpush2.bf16.msra.mxu0 0
      %441 = vmatprep.subr.bf16.mxu0 0
      %442 = vmatpush2.bf16.msra.mxu0 0
      %443 = vmatprep.subr.bf16.mxu0 0
      %444 = vmatpush2.bf16.msra.mxu0 0
      %445 = vmatprep.subr.bf16.mxu0 0
      %446 = vmatpush2.bf16.msra.mxu0 0
      %447 = vmatprep.mubr.bf16.mxu0 0
      %448 = vmatmul.mubr.bf16.gmra.mxu0 %v413
      %v449 = vpop.f32.mrf.mxu0
      %v450 = vadd.f32 %v399, %v449
      %v451 = vpop.f32.mrf.mxu0
      %v452 = vpop.f32.mrf.mxu0
      %v453 = vpop.f32.mrf.mxu0
      %454 = vdwg.mxu0
      %v455 = vmax.f32 %v450, 0.0
      %vm456 = vcmp.lt.s32.totalorder %v285, 32
      %v457 = vsel %vm456, %v388, %v392
      %v458 = vrcp.pop %v457
      %v459 = vmul.f32 %v455, %v458
      %v460 = vadd.f32 %v459, %v362
      %v461 = vld [vmem:[%s5 + $0x4] ss:$0 sm:$0xff]
      %v462 = vld [vmem:[%s5 + $0x5] ss:$0 sm:$0xff]
      %vm463 = vcmask 523264
      %v464 = vsel %vm463, %v460, 0.0
      %465 = vadd.xlane.f32.xlu0 %v464
      %v466 = vpop.xlane.xlu0 %465
      %v467 = vrcp.pop 64.0
      %v468 = vmul.f32 %v466, %v467
      %v469 = vsub.f32 %v460, %v468
      %v470 = vmul.f32 %v469, %v469
      %v471 = vsel %vm463, %v470, 0.0
      %472 = vadd.xlane.f32.xlu0 %v471
      %v473 = vpop.xlane.xlu0 %472
      %v474 = vmul.f32 %v473, %v467
      %v475 = vadd.f32 %v474, 1e-05
      %v476 = vrsqrt.pop %v475
      %v477 = vmul.f32 %v469, %v476
      %v478 = vmul.f32 %v477, %v461
      %v479 = vadd.f32 %v478, %v462
      %v480 = vsel %vm286, 1, 0
      %v481 = vcvt.s32.f32 %v480
      %s482 = scalar_lea.vmem %s3, 64
      %v483 = vld [vmem:[%s482] sm:$0xf]
      %v484 = vld [vmem:[%s482 + $0x4] sm:$0xf]
      %v485 = vld [vmem:[%s482 + $0x8] sm:$0xf]
      %v486 = vld [vmem:[%s482 + $0xc] sm:$0xf]
      %v487 = vld [vmem:[%s482 + $0x10] sm:$0xf]
      %v488 = vld [vmem:[%s482 + $0x14] sm:$0xf]
      %v489 = vld [vmem:[%s482 + $0x18] sm:$0xf]
      %v490 = vld [vmem:[%s482 + $0x1c] sm:$0xf]
      %v491 = vpack.c.bf16 %v479, %v479
      %v492 = vld [vmem:[%s5 + $0x6] ss:$0 sm:$0xff]
      %v501 = vunpack.c.l.b16 %v483
      %v502 = vunpack.c.l.b16 %v484
      %v503 = vunpack.c.l.b16 %v485
      %v504 = vunpack.c.l.b16 %v486
      %v505 = vunpack.c.l.b16 %v487
      %v506 = vunpack.c.l.b16 %v488
      %v507 = vunpack.c.l.b16 %v489
      %v508 = vunpack.c.l.b16 %v490
      %v509 = vpack.c.b16 %v502, %v501
      %v510 = vpack.c.b16 %v504, %v503
      %v511 = vpack.c.b16 %v506, %v505
      %v512 = vpack.c.b16 %v508, %v507
      %v518 = vsel %vm463, %v491, 0
      %520 = vmatprep.subr.bf16.mxu0 0
      %521 = vmatpush1.bf16.msra.mxu0 0
      %522 = vmatprep.subr.bf16.mxu0 0
      %523 = vmatpush1.bf16.msra.mxu0 0
      %524 = vmatprep.subr.bf16.mxu0 0
      %525 = vmatpush1.bf16.msra.mxu0 0
      %526 = vmatprep.subr.bf16.mxu0 0
      %527 = vmatpush1.bf16.msra.mxu0 0
      %528 = vmatprep.subr.bf16.mxu0 0
      %529 = vmatpush1.bf16.msra.mxu0 %v512
      %530 = vmatprep.subr.bf16.mxu0 0
      %531 = vmatpush1.bf16.msra.mxu0 %v511
      %532 = vmatprep.subr.bf16.mxu0 0
      %533 = vmatpush1.bf16.msra.mxu0 %v510
      %534 = vmatprep.subr.bf16.mxu0 0
      %535 = vmatpush1.bf16.msra.mxu0 %v509
      %536 = vmatprep.subr.bf16.mxu0 0
      %537 = vmatpush2.bf16.msra.mxu0 0
      %538 = vmatprep.subr.bf16.mxu0 0
      %539 = vmatpush2.bf16.msra.mxu0 0
      %540 = vmatprep.subr.bf16.mxu0 0
      %541 = vmatpush2.bf16.msra.mxu0 0
      %542 = vmatprep.subr.bf16.mxu0 0
      %543 = vmatpush2.bf16.msra.mxu0 0
      %544 = vmatprep.subr.bf16.mxu0 0
      %545 = vmatpush2.bf16.msra.mxu0 0
      %546 = vmatprep.subr.bf16.mxu0 0
      %547 = vmatpush2.bf16.msra.mxu0 0
      %548 = vmatprep.subr.bf16.mxu0 0
      %549 = vmatpush2.bf16.msra.mxu0 0
      %550 = vmatprep.subr.bf16.mxu0 0
      %551 = vmatpush2.bf16.msra.mxu0 0
      %552 = vmatprep.mubr.bf16.mxu0 0
      %553 = vmatmul.mubr.bf16.gmra.mxu0 %v518
      %v554 = vpop.f32.mrf.mxu0
      %v555 = vadd.f32 %v492, %v554
      %v556 = vpop.f32.mrf.mxu0
      %v557 = vpop.f32.mrf.mxu0
      %v558 = vpop.f32.mrf.mxu0
      %559 = vdwg.mxu0
      %s560 = scalar_lea.vmem %s3, 96
      %v561 = vld [vmem:[%s560] sm:$0xf]
      %v562 = vld [vmem:[%s560 + $0x4] sm:$0xf]
      %v563 = vld [vmem:[%s560 + $0x8] sm:$0xf]
      %v564 = vld [vmem:[%s560 + $0xc] sm:$0xf]
      %v565 = vld [vmem:[%s560 + $0x10] sm:$0xf]
      %v566 = vld [vmem:[%s560 + $0x14] sm:$0xf]
      %v567 = vld [vmem:[%s560 + $0x18] sm:$0xf]
      %v568 = vld [vmem:[%s560 + $0x1c] sm:$0xf]
      %v569 = vld [vmem:[%s5 + $0x7] ss:$0 sm:$0xff]
      %v578 = vunpack.c.l.b16 %v561
      %v579 = vunpack.c.l.b16 %v562
      %v580 = vunpack.c.l.b16 %v563
      %v581 = vunpack.c.l.b16 %v564
      %v582 = vunpack.c.l.b16 %v565
      %v583 = vunpack.c.l.b16 %v566
      %v584 = vunpack.c.l.b16 %v567
      %v585 = vunpack.c.l.b16 %v568
      %v586 = vpack.c.b16 %v579, %v578
      %v587 = vpack.c.b16 %v581, %v580
      %v588 = vpack.c.b16 %v583, %v582
      %v589 = vpack.c.b16 %v585, %v584
      %594 = vmatprep.subr.bf16.mxu0 0
      %595 = vmatpush1.bf16.msra.mxu0 0
      %596 = vmatprep.subr.bf16.mxu0 0
      %597 = vmatpush1.bf16.msra.mxu0 0
      %598 = vmatprep.subr.bf16.mxu0 0
      %599 = vmatpush1.bf16.msra.mxu0 0
      %600 = vmatprep.subr.bf16.mxu0 0
      %601 = vmatpush1.bf16.msra.mxu0 0
      %602 = vmatprep.subr.bf16.mxu0 0
      %603 = vmatpush1.bf16.msra.mxu0 %v589
      %604 = vmatprep.subr.bf16.mxu0 0
      %605 = vmatpush1.bf16.msra.mxu0 %v588
      %606 = vmatprep.subr.bf16.mxu0 0
      %607 = vmatpush1.bf16.msra.mxu0 %v587
      %608 = vmatprep.subr.bf16.mxu0 0
      %609 = vmatpush1.bf16.msra.mxu0 %v586
      %610 = vmatprep.subr.bf16.mxu0 0
      %611 = vmatpush2.bf16.msra.mxu0 0
      %612 = vmatprep.subr.bf16.mxu0 0
      %613 = vmatpush2.bf16.msra.mxu0 0
      %614 = vmatprep.subr.bf16.mxu0 0
      %615 = vmatpush2.bf16.msra.mxu0 0
      %616 = vmatprep.subr.bf16.mxu0 0
      %617 = vmatpush2.bf16.msra.mxu0 0
      %618 = vmatprep.subr.bf16.mxu0 0
      %619 = vmatpush2.bf16.msra.mxu0 0
      %620 = vmatprep.subr.bf16.mxu0 0
      %621 = vmatpush2.bf16.msra.mxu0 0
      %622 = vmatprep.subr.bf16.mxu0 0
      %623 = vmatpush2.bf16.msra.mxu0 0
      %624 = vmatprep.subr.bf16.mxu0 0
      %625 = vmatpush2.bf16.msra.mxu0 0
      %626 = vmatprep.mubr.bf16.mxu0 0
      %627 = vmatmul.mubr.bf16.gmra.mxu0 %v518
      %v628 = vpop.f32.mrf.mxu0
      %v629 = vadd.f32 %v569, %v628
      %v630 = vpop.f32.mrf.mxu0
      %v631 = vpop.f32.mrf.mxu0
      %v632 = vpop.f32.mrf.mxu0
      %633 = vdwg.mxu0
      %v634 = vpack.c.bf16 %v555, %v555
      %v636 = vsel %vm367, %v634, 0
      %638 = vmatprep.subr.bf16.mxu0 0
      %639 = vmatpush1.bf16.xpose.msra.mxu0 0
      %640 = vmatprep.subr.bf16.mxu0 0
      %641 = vmatpush1.bf16.xpose.msra.mxu0 0
      %642 = vmatprep.subr.bf16.mxu0 0
      %643 = vmatpush1.bf16.xpose.msra.mxu0 0
      %644 = vmatprep.subr.bf16.mxu0 0
      %645 = vmatpush1.bf16.xpose.msra.mxu0 0
      %646 = vmatprep.subr.bf16.mxu0 0
      %647 = vmatpush1.bf16.xpose.msra.mxu0 0
      %648 = vmatprep.subr.bf16.mxu0 0
      %649 = vmatpush1.bf16.xpose.msra.mxu0 0
      %650 = vmatprep.subr.bf16.mxu0 0
      %651 = vmatpush1.bf16.xpose.msra.mxu0 0
      %652 = vmatprep.subr.bf16.mxu0 0
      %653 = vmatpush1.bf16.xpose.msra.mxu0 %v636
      %654 = vmatprep.subr.bf16.mxu0 0
      %655 = vmatpush2.bf16.xpose.msra.mxu0 0
      %656 = vmatprep.subr.bf16.mxu0 0
      %657 = vmatpush2.bf16.xpose.msra.mxu0 0
      %658 = vmatprep.subr.bf16.mxu0 0
      %659 = vmatpush2.bf16.xpose.msra.mxu0 0
      %660 = vmatprep.subr.bf16.mxu0 0
      %661 = vmatpush2.bf16.xpose.msra.mxu0 0
      %662 = vmatprep.subr.bf16.mxu0 0
      %663 = vmatpush2.bf16.xpose.msra.mxu0 0
      %664 = vmatprep.subr.bf16.mxu0 0
      %665 = vmatpush2.bf16.xpose.msra.mxu0 0
      %666 = vmatprep.subr.bf16.mxu0 0
      %667 = vmatpush2.bf16.xpose.msra.mxu0 0
      %668 = vmatprep.subr.bf16.mxu0 0
      %669 = vmatpush2.bf16.xpose.msra.mxu0 0
      %670 = vmatprep.mubr.bf16.mxu0 0
      %671 = vmatmul.mubr.bf16.gmra.mxu0 %v636
      %v672 = vpop.f32.mrf.mxu0
      %v673 = vadd.f32 0.0, %v672
      %v674 = vpop.f32.mrf.mxu0
      %v675 = vpop.f32.mrf.mxu0
      %v676 = vpop.f32.mrf.mxu0
      %677 = vdwg.mxu0
      %v678 = vmul.f32 %v673, 0.17677669
      %v679 = vsel %vm286, %v678, -1e+32
      %vm680 = vcmask 64512
      %v681 = vsel %vm680, %v679, -inf
      %682 = vmax.xlane.f32.xlu0 %v681
      %v683 = vpop.xlane.xlu0 %682
      %v684 = vsub.f32 %v679, %v683
      %v685 = vmul.f32 %v684, 1.442695
      %v686 = vpow.pop %v685
      %v687 = vsel %vm680, %v686, 0.0
      %688 = vadd.xlane.f32.xlu0 %v687
      %v689 = vpop.xlane.xlu0 %688
      %v690 = vrcp.pop %v689
      %v691 = vmul.f32 %v686, %v690
      %v692 = vmul.f32 %v691, %v481
      %v694 = vsel %vm680, %v692, 0
      %696 = vmatprep.subr.mxu0 0.0
      %697 = vmatpush1.msra.mxu0 0.0
      %698 = vmatprep.subr.mxu0 0.0
      %699 = vmatpush1.msra.mxu0 0.0
      %700 = vmatprep.subr.mxu0 0.0
      %701 = vmatpush1.msra.mxu0 0.0
      %702 = vmatprep.subr.mxu0 0.0
      %703 = vmatpush1.msra.mxu0 0.0
      %704 = vmatprep.subr.mxu0 0.0
      %705 = vmatpush1.msra.mxu0 0.0
      %706 = vmatprep.subr.mxu0 0.0
      %707 = vmatpush1.msra.mxu0 0.0
      %708 = vmatprep.subr.mxu0 0.0
      %709 = vmatpush1.msra.mxu0 0.0
      %710 = vmatprep.subr.mxu0 0.0
      %711 = vmatpush1.msra.mxu0 0.0
      %712 = vmatprep.subr.mxu0 0.0
      %713 = vmatpush1.msra.mxu0 0.0
      %714 = vmatprep.subr.mxu0 0.0
      %715 = vmatpush1.msra.mxu0 0.0
      %716 = vmatprep.subr.mxu0 0.0
      %717 = vmatpush1.msra.mxu0 0.0
      %718 = vmatprep.subr.mxu0 0.0
      %719 = vmatpush1.msra.mxu0 0.0
      %720 = vmatprep.subr.mxu0 0.0
      %721 = vmatpush1.msra.mxu0 0.0
      %722 = vmatprep.subr.mxu0 0.0
      %723 = vmatpush1.msra.mxu0 0.0
      %724 = vmatprep.subr.mxu0 0.0
      %725 = vmatpush1.msra.mxu0 0.0
      %726 = vmatprep.subr.mxu0 0.0
      %727 = vmatpush1.msra.mxu0 %v290
      %728 = vmatprep.subr.mxu0 0.0
      %729 = vmatpush2.msra.mxu0 0.0
      %730 = vmatprep.subr.mxu0 0.0
      %731 = vmatpush2.msra.mxu0 0.0
      %732 = vmatprep.subr.mxu0 0.0
      %733 = vmatpush2.msra.mxu0 0.0
      %734 = vmatprep.subr.mxu0 0.0
      %735 = vmatpush2.msra.mxu0 0.0
      %736 = vmatprep.subr.mxu0 0.0
      %737 = vmatpush2.msra.mxu0 0.0
      %738 = vmatprep.subr.mxu0 0.0
      %739 = vmatpush2.msra.mxu0 0.0
      %740 = vmatprep.subr.mxu0 0.0
      %741 = vmatpush2.msra.mxu0 0.0
      %742 = vmatprep.subr.mxu0 0.0
      %743 = vmatpush2.msra.mxu0 0.0
      %744 = vmatprep.subr.mxu0 0.0
      %745 = vmatpush2.msra.mxu0 0.0
      %746 = vmatprep.subr.mxu0 0.0
      %747 = vmatpush2.msra.mxu0 0.0
      %748 = vmatprep.subr.mxu0 0.0
      %749 = vmatpush2.msra.mxu0 0.0
      %750 = vmatprep.subr.mxu0 0.0
      %751 = vmatpush2.msra.mxu0 0.0
      %752 = vmatprep.subr.mxu0 0.0
      %753 = vmatpush2.msra.mxu0 0.0
      %754 = vmatprep.subr.mxu0 0.0
      %755 = vmatpush2.msra.mxu0 0.0
      %756 = vmatprep.subr.mxu0 0.0
      %757 = vmatpush2.msra.mxu0 0.0
      %758 = vmatprep.subr.mxu0 0.0
      %759 = vmatpush2.msra.mxu0 0.0
      %760 = vmatprep.mubr.f32.mxu0 0.0
      %761 = vmatmul.mubr.f32.gmra.mxu0 %v694
      %v762 = vpop.f32.mrf.mxu0
      %v763 = vadd.f32 0.0, %v762
      %v764 = vpop.f32.mrf.mxu0
      %765 = vdwg.mxu0
      %v766 = vsel %vm680, %v692, 0.0
      %767 = vadd.xlane.f32.xlu0 %v766
      %v768 = vpop.xlane.xlu0 %767
      %v769 = vsub.f32 %v768, %v763
      %v770 = vmul.f32 %v769, %v295
      %v771 = vmax.f32 %v770, 0.0
      %v772 = vrsqrt.pop %v771
      %v773 = vmul.f32 %v771, %v772
      %vm774 = vcmp.eq.f32.partialorder %v771, inf
      %v775 = vsel %vm774, %v771, %v773
      %vm776 = vcmp.eq.f32.partialorder %v771, 0.0
      %v777 = vand.u32 %v771, 2147483648
      %v778 = vsel %vm776, %v777, %v775
      %v779 = vld [vmem:[%s5 + $0x51] ss:$0 sm:$0xff]
      %781 = vset.pattern.permute.xlu0 0
      %782 = vperm.xlu0 %781, %v779
      %v783 = vpop.permute.xlu0 %782
      %v785 = vmul.f32 %v778, %v783
      %v786 = vmul.f32 %v785, 1.442695
      %v787 = vpow.pop %v786
      %v788 = vmax.f32 %v787, 1e-05
      %v789 = vmin.f32 %v788, 100000.0
      %v790 = vmul.f32 %v678, %v789
      %v791 = vsel %vm286, %v790, -1e+32
      %v792 = vsel %vm680, %v791, -inf
      %793 = vmax.xlane.f32.xlu0 %v792
      %v794 = vpop.xlane.xlu0 %793
      %v795 = vsub.f32 %v791, %v794
      %v796 = vmul.f32 %v795, 1.442695
      %v797 = vpow.pop %v796
      %v798 = vsel %vm680, %v797, 0.0
      %799 = vadd.xlane.f32.xlu0 %v798
      %v800 = vpop.xlane.xlu0 %799
      %v801 = vrcp.pop %v800
      %v802 = vmul.f32 %v797, %v801
      %v803 = vpack.c.bf16 %v802, %v802
      %v804 = vpack.c.bf16 %v629, %v629
      %v806 = vsel %vm680, %v803, 0
      %vm808 = vcmask 1043456
      %v810 = vsel %vm808, %v804, 0
      %812 = vmatprep.subr.bf16.mxu0 0
      %813 = vmatpush1.bf16.msra.mxu0 0
      %814 = vmatprep.subr.bf16.mxu0 0
      %815 = vmatpush1.bf16.msra.mxu0 0
      %816 = vmatprep.subr.bf16.mxu0 0
      %817 = vmatpush1.bf16.msra.mxu0 0
      %818 = vmatprep.subr.bf16.mxu0 0
      %819 = vmatpush1.bf16.msra.mxu0 0
      %820 = vmatprep.subr.bf16.mxu0 0
      %821 = vmatpush1.bf16.msra.mxu0 0
      %822 = vmatprep.subr.bf16.mxu0 0
      %823 = vmatpush1.bf16.msra.mxu0 0
      %824 = vmatprep.subr.bf16.mxu0 0
      %825 = vmatpush1.bf16.msra.mxu0 0
      %826 = vmatprep.subr.bf16.mxu0 0
      %827 = vmatpush1.bf16.msra.mxu0 %v810
      %828 = vmatprep.subr.bf16.mxu0 0
      %829 = vmatpush2.bf16.msra.mxu0 0
      %830 = vmatprep.subr.bf16.mxu0 0
      %831 = vmatpush2.bf16.msra.mxu0 0
      %832 = vmatprep.subr.bf16.mxu0 0
      %833 = vmatpush2.bf16.msra.mxu0 0
      %834 = vmatprep.subr.bf16.mxu0 0
      %835 = vmatpush2.bf16.msra.mxu0 0
      %836 = vmatprep.subr.bf16.mxu0 0
      %837 = vmatpush2.bf16.msra.mxu0 0
      %838 = vmatprep.subr.bf16.mxu0 0
      %839 = vmatpush2.bf16.msra.mxu0 0
      %840 = vmatprep.subr.bf16.mxu0 0
      %841 = vmatpush2.bf16.msra.mxu0 0
      %842 = vmatprep.subr.bf16.mxu0 0
      %843 = vmatpush2.bf16.msra.mxu0 0
      %844 = vmatprep.mubr.bf16.mxu0 0
      %845 = vmatmul.mubr.bf16.gmra.mxu0 %v806
      %v846 = vpop.f32.mrf.mxu0
      %v847 = vadd.f32 0.0, %v846
      %v848 = vpop.f32.mrf.mxu0
      %v849 = vpop.f32.mrf.mxu0
      %v850 = vpop.f32.mrf.mxu0
      %851 = vdwg.mxu0
      %s852 = scalar_lea.vmem %s3, 128
      %v853 = vld [vmem:[%s852] sm:$0xf]
      %v854 = vld [vmem:[%s852 + $0x4] sm:$0xf]
      %v855 = vld [vmem:[%s852 + $0x8] sm:$0xf]
      %v856 = vld [vmem:[%s852 + $0xc] sm:$0xf]
      %v857 = vpack.c.bf16 %v847, %v847
      %859 = vrot.lane.b32.xlu0 %v634, 96
      %v860 = vpop.permute.xlu0 %859
      %v862 = vsel %vm367, %v860, 0
      %864 = vmatprep.subr.bf16.mxu0 0
      %865 = vmatpush1.bf16.xpose.msra.mxu0 0
      %866 = vmatprep.subr.bf16.mxu0 0
      %867 = vmatpush1.bf16.xpose.msra.mxu0 0
      %868 = vmatprep.subr.bf16.mxu0 0
      %869 = vmatpush1.bf16.xpose.msra.mxu0 0
      %870 = vmatprep.subr.bf16.mxu0 0
      %871 = vmatpush1.bf16.xpose.msra.mxu0 0
      %872 = vmatprep.subr.bf16.mxu0 0
      %873 = vmatpush1.bf16.xpose.msra.mxu0 0
      %874 = vmatprep.subr.bf16.mxu0 0
      %875 = vmatpush1.bf16.xpose.msra.mxu0 0
      %876 = vmatprep.subr.bf16.mxu0 0
      %877 = vmatpush1.bf16.xpose.msra.mxu0 0
      %878 = vmatprep.subr.bf16.mxu0 0
      %879 = vmatpush1.bf16.xpose.msra.mxu0 %v862
      %880 = vmatprep.subr.bf16.mxu0 0
      %881 = vmatpush2.bf16.xpose.msra.mxu0 0
      %882 = vmatprep.subr.bf16.mxu0 0
      %883 = vmatpush2.bf16.xpose.msra.mxu0 0
      %884 = vmatprep.subr.bf16.mxu0 0
      %885 = vmatpush2.bf16.xpose.msra.mxu0 0
      %886 = vmatprep.subr.bf16.mxu0 0
      %887 = vmatpush2.bf16.xpose.msra.mxu0 0
      %888 = vmatprep.subr.bf16.mxu0 0
      %889 = vmatpush2.bf16.xpose.msra.mxu0 0
      %890 = vmatprep.subr.bf16.mxu0 0
      %891 = vmatpush2.bf16.xpose.msra.mxu0 0
      %892 = vmatprep.subr.bf16.mxu0 0
      %893 = vmatpush2.bf16.xpose.msra.mxu0 0
      %894 = vmatprep.subr.bf16.mxu0 0
      %895 = vmatpush2.bf16.xpose.msra.mxu0 0
      %896 = vmatprep.mubr.bf16.mxu0 0
      %897 = vmatmul.mubr.bf16.gmra.mxu0 %v862
      %v898 = vpop.f32.mrf.mxu0
      %v899 = vadd.f32 0.0, %v898
      %v900 = vpop.f32.mrf.mxu0
      %v901 = vpop.f32.mrf.mxu0
      %v902 = vpop.f32.mrf.mxu0
      %903 = vdwg.mxu0
      %v904 = vmul.f32 %v899, 0.17677669
      %v905 = vsel %vm286, %v904, -1e+32
      %v906 = vsel %vm680, %v905, -inf
      %907 = vmax.xlane.f32.xlu0 %v906
      %v908 = vpop.xlane.xlu0 %907
      %v909 = vsub.f32 %v905, %v908
      %v910 = vmul.f32 %v909, 1.442695
      %v911 = vpow.pop %v910
      %v912 = vsel %vm680, %v911, 0.0
      %913 = vadd.xlane.f32.xlu0 %v912
      %v914 = vpop.xlane.xlu0 %913
      %v915 = vrcp.pop %v914
      %v916 = vmul.f32 %v911, %v915
      %v917 = vmul.f32 %v916, %v481
      %v919 = vsel %vm680, %v917, 0
      %921 = vmatprep.subr.mxu0 0.0
      %922 = vmatpush1.msra.mxu0 0.0
      %923 = vmatprep.subr.mxu0 0.0
      %924 = vmatpush1.msra.mxu0 0.0
      %925 = vmatprep.subr.mxu0 0.0
      %926 = vmatpush1.msra.mxu0 0.0
      %927 = vmatprep.subr.mxu0 0.0
      %928 = vmatpush1.msra.mxu0 0.0
      %929 = vmatprep.subr.mxu0 0.0
      %930 = vmatpush1.msra.mxu0 0.0
      %931 = vmatprep.subr.mxu0 0.0
      %932 = vmatpush1.msra.mxu0 0.0
      %933 = vmatprep.subr.mxu0 0.0
      %934 = vmatpush1.msra.mxu0 0.0
      %935 = vmatprep.subr.mxu0 0.0
      %936 = vmatpush1.msra.mxu0 0.0
      %937 = vmatprep.subr.mxu0 0.0
      %938 = vmatpush1.msra.mxu0 0.0
      %939 = vmatprep.subr.mxu0 0.0
      %940 = vmatpush1.msra.mxu0 0.0
      %941 = vmatprep.subr.mxu0 0.0
      %942 = vmatpush1.msra.mxu0 0.0
      %943 = vmatprep.subr.mxu0 0.0
      %944 = vmatpush1.msra.mxu0 0.0
      %945 = vmatprep.subr.mxu0 0.0
      %946 = vmatpush1.msra.mxu0 0.0
      %947 = vmatprep.subr.mxu0 0.0
      %948 = vmatpush1.msra.mxu0 0.0
      %949 = vmatprep.subr.mxu0 0.0
      %950 = vmatpush1.msra.mxu0 0.0
      %951 = vmatprep.subr.mxu0 0.0
      %952 = vmatpush1.msra.mxu0 %v290
      %953 = vmatprep.subr.mxu0 0.0
      %954 = vmatpush2.msra.mxu0 0.0
      %955 = vmatprep.subr.mxu0 0.0
      %956 = vmatpush2.msra.mxu0 0.0
      %957 = vmatprep.subr.mxu0 0.0
      %958 = vmatpush2.msra.mxu0 0.0
      %959 = vmatprep.subr.mxu0 0.0
      %960 = vmatpush2.msra.mxu0 0.0
      %961 = vmatprep.subr.mxu0 0.0
      %962 = vmatpush2.msra.mxu0 0.0
      %963 = vmatprep.subr.mxu0 0.0
      %964 = vmatpush2.msra.mxu0 0.0
      %965 = vmatprep.subr.mxu0 0.0
      %966 = vmatpush2.msra.mxu0 0.0
      %967 = vmatprep.subr.mxu0 0.0
      %968 = vmatpush2.msra.mxu0 0.0
      %969 = vmatprep.subr.mxu0 0.0
      %970 = vmatpush2.msra.mxu0 0.0
      %971 = vmatprep.subr.mxu0 0.0
      %972 = vmatpush2.msra.mxu0 0.0
      %973 = vmatprep.subr.mxu0 0.0
      %974 = vmatpush2.msra.mxu0 0.0
      %975 = vmatprep.subr.mxu0 0.0
      %976 = vmatpush2.msra.mxu0 0.0
      %977 = vmatprep.subr.mxu0 0.0
      %978 = vmatpush2.msra.mxu0 0.0
      %979 = vmatprep.subr.mxu0 0.0
      %980 = vmatpush2.msra.mxu0 0.0
      %981 = vmatprep.subr.mxu0 0.0
      %982 = vmatpush2.msra.mxu0 0.0
      %983 = vmatprep.subr.mxu0 0.0
      %984 = vmatpush2.msra.mxu0 0.0
      %985 = vmatprep.mubr.f32.mxu0 0.0
      %986 = vmatmul.mubr.f32.gmra.mxu0 %v919
      %v987 = vpop.f32.mrf.mxu0
      %v988 = vadd.f32 0.0, %v987
      %v989 = vpop.f32.mrf.mxu0
      %990 = vdwg.mxu0
      %v991 = vsel %vm680, %v917, 0.0
      %992 = vadd.xlane.f32.xlu0 %v991
      %v993 = vpop.xlane.xlu0 %992
      %v994 = vsub.f32 %v993, %v988
      %v995 = vmul.f32 %v994, %v295
      %v996 = vmax.f32 %v995, 0.0
      %v997 = vrsqrt.pop %v996
      %v998 = vmul.f32 %v996, %v997
      %vm999 = vcmp.eq.f32.partialorder %v996, inf
      %v1000 = vsel %vm999, %v996, %v998
      %vm1001 = vcmp.eq.f32.partialorder %v996, 0.0
      %v1002 = vand.u32 %v996, 2147483648
      %v1003 = vsel %vm1001, %v1002, %v1000
      %v1004 = vld [vmem:[%s5 + $0x52] ss:$0 sm:$0xff]
      %1006 = vset.pattern.permute.xlu0 0
      %1007 = vperm.xlu0 %1006, %v1004
      %v1008 = vpop.permute.xlu0 %1007
      %v1010 = vmul.f32 %v1003, %v1008
      %v1011 = vmul.f32 %v1010, 1.442695
      %v1012 = vpow.pop %v1011
      %v1013 = vmax.f32 %v1012, 1e-05
      %v1014 = vmin.f32 %v1013, 100000.0
      %v1015 = vmul.f32 %v904, %v1014
      %v1016 = vsel %vm286, %v1015, -1e+32
      %v1017 = vsel %vm680, %v1016, -inf
      %1018 = vmax.xlane.f32.xlu0 %v1017
      %v1019 = vpop.xlane.xlu0 %1018
      %v1020 = vsub.f32 %v1016, %v1019
      %v1021 = vmul.f32 %v1020, 1.442695
      %v1022 = vpow.pop %v1021
      %v1023 = vsel %vm680, %v1022, 0.0
      %1024 = vadd.xlane.f32.xlu0 %v1023
      %v1025 = vpop.xlane.xlu0 %1024
      %v1026 = vrcp.pop %v1025
      %v1027 = vmul.f32 %v1022, %v1026
      %v1028 = vpack.c.bf16 %v1027, %v1027
      %1030 = vrot.lane.b32.xlu0 %v804, 96
      %v1031 = vpop.permute.xlu0 %1030
      %v1033 = vsel %vm680, %v1028, 0
      %v1036 = vsel %vm808, %v1031, 0
      %1038 = vmatprep.subr.bf16.mxu0 0
      %1039 = vmatpush1.bf16.msra.mxu0 0
      %1040 = vmatprep.subr.bf16.mxu0 0
      %1041 = vmatpush1.bf16.msra.mxu0 0
      %1042 = vmatprep.subr.bf16.mxu0 0
      %1043 = vmatpush1.bf16.msra.mxu0 0
      %1044 = vmatprep.subr.bf16.mxu0 0
      %1045 = vmatpush1.bf16.msra.mxu0 0
      %1046 = vmatprep.subr.bf16.mxu0 0
      %1047 = vmatpush1.bf16.msra.mxu0 0
      %1048 = vmatprep.subr.bf16.mxu0 0
      %1049 = vmatpush1.bf16.msra.mxu0 0
      %1050 = vmatprep.subr.bf16.mxu0 0
      %1051 = vmatpush1.bf16.msra.mxu0 0
      %1052 = vmatprep.subr.bf16.mxu0 0
      %1053 = vmatpush1.bf16.msra.mxu0 %v1036
      %1054 = vmatprep.subr.bf16.mxu0 0
      %1055 = vmatpush2.bf16.msra.mxu0 0
      %1056 = vmatprep.subr.bf16.mxu0 0
      %1057 = vmatpush2.bf16.msra.mxu0 0
      %1058 = vmatprep.subr.bf16.mxu0 0
      %1059 = vmatpush2.bf16.msra.mxu0 0
      %1060 = vmatprep.subr.bf16.mxu0 0
      %1061 = vmatpush2.bf16.msra.mxu0 0
      %1062 = vmatprep.subr.bf16.mxu0 0
      %1063 = vmatpush2.bf16.msra.mxu0 0
      %1064 = vmatprep.subr.bf16.mxu0 0
      %1065 = vmatpush2.bf16.msra.mxu0 0
      %1066 = vmatprep.subr.bf16.mxu0 0
      %1067 = vmatpush2.bf16.msra.mxu0 0
      %1068 = vmatprep.subr.bf16.mxu0 0
      %1069 = vmatpush2.bf16.msra.mxu0 0
      %1070 = vmatprep.mubr.bf16.mxu0 0
      %1071 = vmatmul.mubr.bf16.gmra.mxu0 %v1033
      %v1072 = vpop.f32.mrf.mxu0
      %v1073 = vadd.f32 0.0, %v1072
      %v1074 = vpop.f32.mrf.mxu0
      %v1075 = vpop.f32.mrf.mxu0
      %v1076 = vpop.f32.mrf.mxu0
      %1077 = vdwg.mxu0
      %v1078 = vld [vmem:[%s852 + $0x10] sm:$0xf]
      %v1079 = vld [vmem:[%s852 + $0x14] sm:$0xf]
      %v1080 = vld [vmem:[%s852 + $0x18] sm:$0xf]
      %v1081 = vld [vmem:[%s852 + $0x1c] sm:$0xf]
      %v1082 = vpack.c.bf16 %v1073, %v1073
      %v1087 = vunpack.c.l.b16 %v1078
      %v1088 = vunpack.c.l.b16 %v1079
      %v1089 = vunpack.c.l.b16 %v1080
      %v1090 = vunpack.c.l.b16 %v1081
      %v1091 = vpack.c.b16 %v1088, %v1087
      %v1092 = vpack.c.b16 %v1090, %v1089
      %v1096 = vsel %vm367, %v1082, 0
      %1098 = vmatprep.subr.bf16.mxu0 0
      %1099 = vmatpush1.bf16.msra.mxu0 0
      %1100 = vmatprep.subr.bf16.mxu0 0
      %1101 = vmatpush1.bf16.msra.mxu0 0
      %1102 = vmatprep.subr.bf16.mxu0 0
      %1103 = vmatpush1.bf16.msra.mxu0 0
      %1104 = vmatprep.subr.bf16.mxu0 0
      %1105 = vmatpush1.bf16.msra.mxu0 0
      %1106 = vmatprep.subr.bf16.mxu0 0
      %1107 = vmatpush1.bf16.msra.mxu0 0
      %1108 = vmatprep.subr.bf16.mxu0 0
      %1109 = vmatpush1.bf16.msra.mxu0 0
      %1110 = vmatprep.subr.bf16.mxu0 0
      %1111 = vmatpush1.bf16.msra.mxu0 %v1092
      %1112 = vmatprep.subr.bf16.mxu0 0
      %1113 = vmatpush1.bf16.msra.mxu0 %v1091
      %1114 = vmatprep.subr.bf16.mxu0 0
      %1115 = vmatpush2.bf16.msra.mxu0 0
      %1116 = vmatprep.subr.bf16.mxu0 0
      %1117 = vmatpush2.bf16.msra.mxu0 0
      %1118 = vmatprep.subr.bf16.mxu0 0
      %1119 = vmatpush2.bf16.msra.mxu0 0
      %1120 = vmatprep.subr.bf16.mxu0 0
      %1121 = vmatpush2.bf16.msra.mxu0 0
      %1122 = vmatprep.subr.bf16.mxu0 0
      %1123 = vmatpush2.bf16.msra.mxu0 0
      %1124 = vmatprep.subr.bf16.mxu0 0
      %1125 = vmatpush2.bf16.msra.mxu0 0
      %1126 = vmatprep.subr.bf16.mxu0 0
      %1127 = vmatpush2.bf16.msra.mxu0 0
      %1128 = vmatprep.subr.bf16.mxu0 0
      %1129 = vmatpush2.bf16.msra.mxu0 0
      %1130 = vmatprep.mubr.bf16.mxu0 0
      %1131 = vmatmul.mubr.bf16.gmra.mxu0 %v1096
      %v1132 = vpop.f32.mrf.mxu0
      %v1133 = vadd.f32 0.0, %v1132
      %v1134 = vpop.f32.mrf.mxu0
      %v1135 = vpop.f32.mrf.mxu0
      %v1136 = vpop.f32.mrf.mxu0
      %1137 = vdwg.mxu0
      %v1142 = vunpack.c.l.b16 %v853
      %v1143 = vunpack.c.l.b16 %v854
      %v1144 = vunpack.c.l.b16 %v855
      %v1145 = vunpack.c.l.b16 %v856
      %v1146 = vpack.c.b16 %v1143, %v1142
      %v1147 = vpack.c.b16 %v1145, %v1144
      %v1151 = vsel %vm367, %v857, 0
      %1153 = vmatprep.subr.bf16.mxu0 0
      %1154 = vmatpush1.bf16.msra.mxu0 0
      %1155 = vmatprep.subr.bf16.mxu0 0
      %1156 = vmatpush1.bf16.msra.mxu0 0
      %1157 = vmatprep.subr.bf16.mxu0 0
      %1158 = vmatpush1.bf16.msra.mxu0 0
      %1159 = vmatprep.subr.bf16.mxu0 0
      %1160 = vmatpush1.bf16.msra.mxu0 0
      %1161 = vmatprep.subr.bf16.mxu0 0
      %1162 = vmatpush1.bf16.msra.mxu0 0
      %1163 = vmatprep.subr.bf16.mxu0 0
      %1164 = vmatpush1.bf16.msra.mxu0 0
      %1165 = vmatprep.subr.bf16.mxu0 0
      %1166 = vmatpush1.bf16.msra.mxu0 %v1147
      %1167 = vmatprep.subr.bf16.mxu0 0
      %1168 = vmatpush1.bf16.msra.mxu0 %v1146
      %1169 = vmatprep.subr.bf16.mxu0 0
      %1170 = vmatpush2.bf16.msra.mxu0 0
      %1171 = vmatprep.subr.bf16.mxu0 0
      %1172 = vmatpush2.bf16.msra.mxu0 0
      %1173 = vmatprep.subr.bf16.mxu0 0
      %1174 = vmatpush2.bf16.msra.mxu0 0
      %1175 = vmatprep.subr.bf16.mxu0 0
      %1176 = vmatpush2.bf16.msra.mxu0 0
      %1177 = vmatprep.subr.bf16.mxu0 0
      %1178 = vmatpush2.bf16.msra.mxu0 0
      %1179 = vmatprep.subr.bf16.mxu0 0
      %1180 = vmatpush2.bf16.msra.mxu0 0
      %1181 = vmatprep.subr.bf16.mxu0 0
      %1182 = vmatpush2.bf16.msra.mxu0 0
      %1183 = vmatprep.subr.bf16.mxu0 0
      %1184 = vmatpush2.bf16.msra.mxu0 0
      %1185 = vmatprep.mubr.bf16.mxu0 0
      %1186 = vmatmul.mubr.bf16.gmra.mxu0 %v1151
      %v1187 = vpop.f32.mrf.mxu0
      %v1188 = vadd.f32 %v1133, %v1187
      %v1189 = vpop.f32.mrf.mxu0
      %v1190 = vpop.f32.mrf.mxu0
      %v1191 = vpop.f32.mrf.mxu0
      %1192 = vdwg.mxu0
      %v1193 = vadd.f32 %v479, %v1188
      %v1194 = vld [vmem:[%s5 + $0x10] ss:$0 sm:$0xff]
      %v1195 = vadd.f32 %v1193, %v1194
      %v1196 = vld [vmem:[%s5 + $0x11] ss:$0 sm:$0xff]
      %v1197 = vld [vmem:[%s5 + $0x12] ss:$0 sm:$0xff]
      %v1198 = vsel %vm463, %v1195, 0.0
      %1199 = vadd.xlane.f32.xlu0 %v1198
      %v1200 = vpop.xlane.xlu0 %1199
      %v1201 = vmul.f32 %v1200, %v467
      %v1202 = vsub.f32 %v1195, %v1201
      %v1203 = vmul.f32 %v1202, %v1202
      %v1204 = vsel %vm463, %v1203, 0.0
      %1205 = vadd.xlane.f32.xlu0 %v1204
      %v1206 = vpop.xlane.xlu0 %1205
      %v1207 = vmul.f32 %v1206, %v467
      %v1208 = vadd.f32 %v1207, 1e-05
      %v1209 = vrsqrt.pop %v1208
      %v1210 = vmul.f32 %v1202, %v1209
      %v1211 = vmul.f32 %v1210, %v1196
      %v1212 = vadd.f32 %v1211, %v1197
      %s1213 = scalar_lea.vmem %s3, 160
      %v1214 = vld [vmem:[%s1213] sm:$0xf]
      %v1215 = vld [vmem:[%s1213 + $0x4] sm:$0xf]
      %v1216 = vld [vmem:[%s1213 + $0x8] sm:$0xf]
      %v1217 = vld [vmem:[%s1213 + $0xc] sm:$0xf]
      %v1218 = vld [vmem:[%s1213 + $0x10] sm:$0xf]
      %v1219 = vld [vmem:[%s1213 + $0x14] sm:$0xf]
      %v1220 = vld [vmem:[%s1213 + $0x18] sm:$0xf]
      %v1221 = vld [vmem:[%s1213 + $0x1c] sm:$0xf]
      %v1222 = vpack.c.bf16 %v1212, %v1212
      %v1223 = vld [vmem:[%s5 + $0x13] ss:$0 sm:$0xff]
      %v1232 = vunpack.c.l.b16 %v1214
      %v1233 = vunpack.c.l.b16 %v1215
      %v1234 = vunpack.c.l.b16 %v1216
      %v1235 = vunpack.c.l.b16 %v1217
      %v1236 = vunpack.c.l.b16 %v1218
      %v1237 = vunpack.c.l.b16 %v1219
      %v1238 = vunpack.c.l.b16 %v1220
      %v1239 = vunpack.c.l.b16 %v1221
      %v1240 = vpack.c.b16 %v1233, %v1232
      %v1241 = vpack.c.b16 %v1235, %v1234
      %v1242 = vpack.c.b16 %v1237, %v1236
      %v1243 = vpack.c.b16 %v1239, %v1238
      %v1249 = vsel %vm463, %v1222, 0
      %1251 = vmatprep.subr.bf16.mxu0 0
      %1252 = vmatpush1.bf16.msra.mxu0 0
      %1253 = vmatprep.subr.bf16.mxu0 0
      %1254 = vmatpush1.bf16.msra.mxu0 0
      %1255 = vmatprep.subr.bf16.mxu0 0
      %1256 = vmatpush1.bf16.msra.mxu0 0
      %1257 = vmatprep.subr.bf16.mxu0 0
      %1258 = vmatpush1.bf16.msra.mxu0 0
      %1259 = vmatprep.subr.bf16.mxu0 0
      %1260 = vmatpush1.bf16.msra.mxu0 %v1243
      %1261 = vmatprep.subr.bf16.mxu0 0
      %1262 = vmatpush1.bf16.msra.mxu0 %v1242
      %1263 = vmatprep.subr.bf16.mxu0 0
      %1264 = vmatpush1.bf16.msra.mxu0 %v1241
      %1265 = vmatprep.subr.bf16.mxu0 0
      %1266 = vmatpush1.bf16.msra.mxu0 %v1240
      %1267 = vmatprep.subr.bf16.mxu0 0
      %1268 = vmatpush2.bf16.msra.mxu0 0
      %1269 = vmatprep.subr.bf16.mxu0 0
      %1270 = vmatpush2.bf16.msra.mxu0 0
      %1271 = vmatprep.subr.bf16.mxu0 0
      %1272 = vmatpush2.bf16.msra.mxu0 0
      %1273 = vmatprep.subr.bf16.mxu0 0
      %1274 = vmatpush2.bf16.msra.mxu0 0
      %1275 = vmatprep.subr.bf16.mxu0 0
      %1276 = vmatpush2.bf16.msra.mxu0 0
      %1277 = vmatprep.subr.bf16.mxu0 0
      %1278 = vmatpush2.bf16.msra.mxu0 0
      %1279 = vmatprep.subr.bf16.mxu0 0
      %1280 = vmatpush2.bf16.msra.mxu0 0
      %1281 = vmatprep.subr.bf16.mxu0 0
      %1282 = vmatpush2.bf16.msra.mxu0 0
      %1283 = vmatprep.mubr.bf16.mxu0 0
      %1284 = vmatmul.mubr.bf16.gmra.mxu0 %v1249
      %v1285 = vpop.f32.mrf.mxu0
      %v1286 = vadd.f32 %v1223, %v1285
      %v1287 = vpop.f32.mrf.mxu0
      %v1288 = vpop.f32.mrf.mxu0
      %v1289 = vpop.f32.mrf.mxu0
      %1290 = vdwg.mxu0
      %v1291 = vmax.f32 %v1286, 0.0
      %s1292 = scalar_lea.vmem %s3, 192
      %v1293 = vld [vmem:[%s1292] sm:$0xf]
      %v1294 = vld [vmem:[%s1292 + $0x4] sm:$0xf]
      %v1295 = vld [vmem:[%s1292 + $0x8] sm:$0xf]
      %v1296 = vld [vmem:[%s1292 + $0xc] sm:$0xf]
      %v1297 = vld [vmem:[%s1292 + $0x10] sm:$0xf]
      %v1298 = vld [vmem:[%s1292 + $0x14] sm:$0xf]
      %v1299 = vld [vmem:[%s1292 + $0x18] sm:$0xf]
      %v1300 = vld [vmem:[%s1292 + $0x1c] sm:$0xf]
      %v1301 = vpack.c.bf16 %v1291, %v1291
      %v1302 = vld [vmem:[%s5 + $0x14] ss:$0 sm:$0xff]
      %v1311 = vunpack.c.l.b16 %v1293
      %v1312 = vunpack.c.l.b16 %v1294
      %v1313 = vunpack.c.l.b16 %v1295
      %v1314 = vunpack.c.l.b16 %v1296
      %v1315 = vunpack.c.l.b16 %v1297
      %v1316 = vunpack.c.l.b16 %v1298
      %v1317 = vunpack.c.l.b16 %v1299
      %v1318 = vunpack.c.l.b16 %v1300
      %v1319 = vpack.c.b16 %v1312, %v1311
      %v1320 = vpack.c.b16 %v1314, %v1313
      %v1321 = vpack.c.b16 %v1316, %v1315
      %v1322 = vpack.c.b16 %v1318, %v1317
      %v1328 = vsel %vm463, %v1301, 0
      %1330 = vmatprep.subr.bf16.mxu0 0
      %1331 = vmatpush1.bf16.msra.mxu0 0
      %1332 = vmatprep.subr.bf16.mxu0 0
      %1333 = vmatpush1.bf16.msra.mxu0 0
      %1334 = vmatprep.subr.bf16.mxu0 0
      %1335 = vmatpush1.bf16.msra.mxu0 0
      %1336 = vmatprep.subr.bf16.mxu0 0
      %1337 = vmatpush1.bf16.msra.mxu0 0
      %1338 = vmatprep.subr.bf16.mxu0 0
      %1339 = vmatpush1.bf16.msra.mxu0 %v1322
      %1340 = vmatprep.subr.bf16.mxu0 0
      %1341 = vmatpush1.bf16.msra.mxu0 %v1321
      %1342 = vmatprep.subr.bf16.mxu0 0
      %1343 = vmatpush1.bf16.msra.mxu0 %v1320
      %1344 = vmatprep.subr.bf16.mxu0 0
      %1345 = vmatpush1.bf16.msra.mxu0 %v1319
      %1346 = vmatprep.subr.bf16.mxu0 0
      %1347 = vmatpush2.bf16.msra.mxu0 0
      %1348 = vmatprep.subr.bf16.mxu0 0
      %1349 = vmatpush2.bf16.msra.mxu0 0
      %1350 = vmatprep.subr.bf16.mxu0 0
      %1351 = vmatpush2.bf16.msra.mxu0 0
      %1352 = vmatprep.subr.bf16.mxu0 0
      %1353 = vmatpush2.bf16.msra.mxu0 0
      %1354 = vmatprep.subr.bf16.mxu0 0
      %1355 = vmatpush2.bf16.msra.mxu0 0
      %1356 = vmatprep.subr.bf16.mxu0 0
      %1357 = vmatpush2.bf16.msra.mxu0 0
      %1358 = vmatprep.subr.bf16.mxu0 0
      %1359 = vmatpush2.bf16.msra.mxu0 0
      %1360 = vmatprep.subr.bf16.mxu0 0
      %1361 = vmatpush2.bf16.msra.mxu0 0
      %1362 = vmatprep.mubr.bf16.mxu0 0
      %1363 = vmatmul.mubr.bf16.gmra.mxu0 %v1328
      %v1364 = vpop.f32.mrf.mxu0
      %v1365 = vadd.f32 %v1302, %v1364
      %v1366 = vpop.f32.mrf.mxu0
      %v1367 = vpop.f32.mrf.mxu0
      %v1368 = vpop.f32.mrf.mxu0
      %1369 = vdwg.mxu0
      %v1370 = vadd.f32 %v1212, %v1365
      %v1371 = vld [vmem:[%s5 + $0x15] ss:$0 sm:$0xff]
      %v1372 = vld [vmem:[%s5 + $0x16] ss:$0 sm:$0xff]
      %v1373 = vsel %vm463, %v1370, 0.0
      %1374 = vadd.xlane.f32.xlu0 %v1373
      %v1375 = vpop.xlane.xlu0 %1374
      %v1376 = vmul.f32 %v1375, %v467
      %v1377 = vsub.f32 %v1370, %v1376
      %v1378 = vmul.f32 %v1377, %v1377
      %v1379 = vsel %vm463, %v1378, 0.0
      %1380 = vadd.xlane.f32.xlu0 %v1379
      %v1381 = vpop.xlane.xlu0 %1380
      %v1382 = vmul.f32 %v1381, %v467
      %v1383 = vadd.f32 %v1382, 1e-05
      %v1384 = vrsqrt.pop %v1383
      %v1385 = vmul.f32 %v1377, %v1384
      %v1386 = vmul.f32 %v1385, %v1371
      %v1387 = vadd.f32 %v1386, %v1372
      %s1388 = scalar_lea.vmem %s3, 224
      %v1389 = vld [vmem:[%s1388] sm:$0xf]
      %v1390 = vld [vmem:[%s1388 + $0x4] sm:$0xf]
      %v1391 = vld [vmem:[%s1388 + $0x8] sm:$0xf]
      %v1392 = vld [vmem:[%s1388 + $0xc] sm:$0xf]
      %v1393 = vpack.c.bf16 %v383, %v383
      %v1394 = vld [vmem:[%s5 + $0x17] ss:$0 sm:$0xff]
      %v1399 = vunpack.c.l.b16 %v1389
      %v1400 = vunpack.c.l.b16 %v1390
      %v1401 = vunpack.c.l.b16 %v1391
      %v1402 = vunpack.c.l.b16 %v1392
      %v1403 = vpack.c.b16 %v1400, %v1399
      %v1404 = vpack.c.b16 %v1402, %v1401
      %v1408 = vsel %vm367, %v1393, 0
      %1410 = vmatprep.subr.bf16.mxu0 0
      %1411 = vmatpush1.bf16.msra.mxu0 0
      %1412 = vmatprep.subr.bf16.mxu0 0
      %1413 = vmatpush1.bf16.msra.mxu0 0
      %1414 = vmatprep.subr.bf16.mxu0 0
      %1415 = vmatpush1.bf16.msra.mxu0 0
      %1416 = vmatprep.subr.bf16.mxu0 0
      %1417 = vmatpush1.bf16.msra.mxu0 0
      %1418 = vmatprep.subr.bf16.mxu0 0
      %1419 = vmatpush1.bf16.msra.mxu0 0
      %1420 = vmatprep.subr.bf16.mxu0 0
      %1421 = vmatpush1.bf16.msra.mxu0 0
      %1422 = vmatprep.subr.bf16.mxu0 0
      %1423 = vmatpush1.bf16.msra.mxu0 %v1404
      %1424 = vmatprep.subr.bf16.mxu0 0
      %1425 = vmatpush1.bf16.msra.mxu0 %v1403
      %1426 = vmatprep.subr.bf16.mxu0 0
      %1427 = vmatpush2.bf16.msra.mxu0 0
      %1428 = vmatprep.subr.bf16.mxu0 0
      %1429 = vmatpush2.bf16.msra.mxu0 0
      %1430 = vmatprep.subr.bf16.mxu0 0
      %1431 = vmatpush2.bf16.msra.mxu0 0
      %1432 = vmatprep.subr.bf16.mxu0 0
      %1433 = vmatpush2.bf16.msra.mxu0 0
      %1434 = vmatprep.subr.bf16.mxu0 0
      %1435 = vmatpush2.bf16.msra.mxu0 0
      %1436 = vmatprep.subr.bf16.mxu0 0
      %1437 = vmatpush2.bf16.msra.mxu0 0
      %1438 = vmatprep.subr.bf16.mxu0 0
      %1439 = vmatpush2.bf16.msra.mxu0 0
      %1440 = vmatprep.subr.bf16.mxu0 0
      %1441 = vmatpush2.bf16.msra.mxu0 0
      %1442 = vmatprep.mubr.bf16.mxu0 0
      %1443 = vmatmul.mubr.bf16.gmra.mxu0 %v1408
      %v1444 = vpop.f32.mrf.mxu0
      %v1445 = vadd.f32 %v1394, %v1444
      %v1446 = vpop.f32.mrf.mxu0
      %v1447 = vpop.f32.mrf.mxu0
      %v1448 = vpop.f32.mrf.mxu0
      %1449 = vdwg.mxu0
      %s1450 = scalar_lea.vmem %s3, 256
      %v1451 = vld [vmem:[%s1450] sm:$0xf]
      %v1452 = vld [vmem:[%s1450 + $0x4] sm:$0xf]
      %v1453 = vld [vmem:[%s1450 + $0x8] sm:$0xf]
      %v1454 = vld [vmem:[%s1450 + $0xc] sm:$0xf]
      %v1455 = vld [vmem:[%s5 + $0x20] ss:$0 sm:$0xff]
      %v1460 = vunpack.c.l.b16 %v1451
      %v1461 = vunpack.c.l.b16 %v1452
      %v1462 = vunpack.c.l.b16 %v1453
      %v1463 = vunpack.c.l.b16 %v1454
      %v1464 = vpack.c.b16 %v1461, %v1460
      %v1465 = vpack.c.b16 %v1463, %v1462
      %1468 = vmatprep.subr.bf16.mxu0 0
      %1469 = vmatpush1.bf16.msra.mxu0 0
      %1470 = vmatprep.subr.bf16.mxu0 0
      %1471 = vmatpush1.bf16.msra.mxu0 0
      %1472 = vmatprep.subr.bf16.mxu0 0
      %1473 = vmatpush1.bf16.msra.mxu0 0
      %1474 = vmatprep.subr.bf16.mxu0 0
      %1475 = vmatpush1.bf16.msra.mxu0 0
      %1476 = vmatprep.subr.bf16.mxu0 0
      %1477 = vmatpush1.bf16.msra.mxu0 0
      %1478 = vmatprep.subr.bf16.mxu0 0
      %1479 = vmatpush1.bf16.msra.mxu0 0
      %1480 = vmatprep.subr.bf16.mxu0 0
      %1481 = vmatpush1.bf16.msra.mxu0 %v1465
      %1482 = vmatprep.subr.bf16.mxu0 0
      %1483 = vmatpush1.bf16.msra.mxu0 %v1464
      %1484 = vmatprep.subr.bf16.mxu0 0
      %1485 = vmatpush2.bf16.msra.mxu0 0
      %1486 = vmatprep.subr.bf16.mxu0 0
      %1487 = vmatpush2.bf16.msra.mxu0 0
      %1488 = vmatprep.subr.bf16.mxu0 0
      %1489 = vmatpush2.bf16.msra.mxu0 0
      %1490 = vmatprep.subr.bf16.mxu0 0
      %1491 = vmatpush2.bf16.msra.mxu0 0
      %1492 = vmatprep.subr.bf16.mxu0 0
      %1493 = vmatpush2.bf16.msra.mxu0 0
      %1494 = vmatprep.subr.bf16.mxu0 0
      %1495 = vmatpush2.bf16.msra.mxu0 0
      %1496 = vmatprep.subr.bf16.mxu0 0
      %1497 = vmatpush2.bf16.msra.mxu0 0
      %1498 = vmatprep.subr.bf16.mxu0 0
      %1499 = vmatpush2.bf16.msra.mxu0 0
      %1500 = vmatprep.mubr.bf16.mxu0 0
      %1501 = vmatmul.mubr.bf16.gmra.mxu0 %v1408
      %v1502 = vpop.f32.mrf.mxu0
      %v1503 = vadd.f32 %v1455, %v1502
      %v1504 = vpop.f32.mrf.mxu0
      %v1505 = vpop.f32.mrf.mxu0
      %v1506 = vpop.f32.mrf.mxu0
      %1507 = vdwg.mxu0
      %v1508 = vpack.c.bf16 %v1445, %v1445
      %v1510 = vsel %vm299, %v1508, 0
      %1512 = vmatprep.subr.bf16.mxu0 0
      %1513 = vmatpush1.bf16.xpose.msra.mxu0 0
      %1514 = vmatprep.subr.bf16.mxu0 0
      %1515 = vmatpush1.bf16.xpose.msra.mxu0 0
      %1516 = vmatprep.subr.bf16.mxu0 0
      %1517 = vmatpush1.bf16.xpose.msra.mxu0 0
      %1518 = vmatprep.subr.bf16.mxu0 0
      %1519 = vmatpush1.bf16.xpose.msra.mxu0 0
      %1520 = vmatprep.subr.bf16.mxu0 0
      %1521 = vmatpush1.bf16.xpose.msra.mxu0 0
      %1522 = vmatprep.subr.bf16.mxu0 0
      %1523 = vmatpush1.bf16.xpose.msra.mxu0 0
      %1524 = vmatprep.subr.bf16.mxu0 0
      %1525 = vmatpush1.bf16.xpose.msra.mxu0 0
      %1526 = vmatprep.subr.bf16.mxu0 0
      %1527 = vmatpush1.bf16.xpose.msra.mxu0 %v1510
      %1528 = vmatprep.subr.bf16.mxu0 0
      %1529 = vmatpush2.bf16.xpose.msra.mxu0 0
      %1530 = vmatprep.subr.bf16.mxu0 0
      %1531 = vmatpush2.bf16.xpose.msra.mxu0 0
      %1532 = vmatprep.subr.bf16.mxu0 0
      %1533 = vmatpush2.bf16.xpose.msra.mxu0 0
      %1534 = vmatprep.subr.bf16.mxu0 0
      %1535 = vmatpush2.bf16.xpose.msra.mxu0 0
      %1536 = vmatprep.subr.bf16.mxu0 0
      %1537 = vmatpush2.bf16.xpose.msra.mxu0 0
      %1538 = vmatprep.subr.bf16.mxu0 0
      %1539 = vmatpush2.bf16.xpose.msra.mxu0 0
      %1540 = vmatprep.subr.bf16.mxu0 0
      %1541 = vmatpush2.bf16.xpose.msra.mxu0 0
      %1542 = vmatprep.subr.bf16.mxu0 0
      %1543 = vmatpush2.bf16.xpose.msra.mxu0 0
      %1544 = vmatprep.mubr.bf16.mxu0 0
      %1545 = vmatmul.mubr.bf16.gmra.mxu0 %v1510
      %v1546 = vpop.f32.mrf.mxu0
      %v1547 = vadd.f32 0.0, %v1546
      %v1548 = vpop.f32.mrf.mxu0
      %v1549 = vpop.f32.mrf.mxu0
      %v1550 = vpop.f32.mrf.mxu0
      %1551 = vdwg.mxu0
      %v1552 = vmul.f32 %v1547, 0.25
      %v1553 = vsel %vm286, %v1552, -1e+32
      %v1554 = vsel %vm680, %v1553, -inf
      %1555 = vmax.xlane.f32.xlu0 %v1554
      %v1556 = vpop.xlane.xlu0 %1555
      %v1557 = vsub.f32 %v1553, %v1556
      %v1558 = vmul.f32 %v1557, 1.442695
      %v1559 = vpow.pop %v1558
      %v1560 = vsel %vm680, %v1559, 0.0
      %1561 = vadd.xlane.f32.xlu0 %v1560
      %v1562 = vpop.xlane.xlu0 %1561
      %v1563 = vrcp.pop %v1562
      %v1564 = vmul.f32 %v1559, %v1563
      %v1565 = vmul.f32 %v1564, %v481
      %v1567 = vsel %vm680, %v1565, 0
      %1569 = vmatprep.subr.mxu0 0.0
      %1570 = vmatpush1.msra.mxu0 0.0
      %1571 = vmatprep.subr.mxu0 0.0
      %1572 = vmatpush1.msra.mxu0 0.0
      %1573 = vmatprep.subr.mxu0 0.0
      %1574 = vmatpush1.msra.mxu0 0.0
      %1575 = vmatprep.subr.mxu0 0.0
      %1576 = vmatpush1.msra.mxu0 0.0
      %1577 = vmatprep.subr.mxu0 0.0
      %1578 = vmatpush1.msra.mxu0 0.0
      %1579 = vmatprep.subr.mxu0 0.0
      %1580 = vmatpush1.msra.mxu0 0.0
      %1581 = vmatprep.subr.mxu0 0.0
      %1582 = vmatpush1.msra.mxu0 0.0
      %1583 = vmatprep.subr.mxu0 0.0
      %1584 = vmatpush1.msra.mxu0 0.0
      %1585 = vmatprep.subr.mxu0 0.0
      %1586 = vmatpush1.msra.mxu0 0.0
      %1587 = vmatprep.subr.mxu0 0.0
      %1588 = vmatpush1.msra.mxu0 0.0
      %1589 = vmatprep.subr.mxu0 0.0
      %1590 = vmatpush1.msra.mxu0 0.0
      %1591 = vmatprep.subr.mxu0 0.0
      %1592 = vmatpush1.msra.mxu0 0.0
      %1593 = vmatprep.subr.mxu0 0.0
      %1594 = vmatpush1.msra.mxu0 0.0
      %1595 = vmatprep.subr.mxu0 0.0
      %1596 = vmatpush1.msra.mxu0 0.0
      %1597 = vmatprep.subr.mxu0 0.0
      %1598 = vmatpush1.msra.mxu0 0.0
      %1599 = vmatprep.subr.mxu0 0.0
      %1600 = vmatpush1.msra.mxu0 %v290
      %1601 = vmatprep.subr.mxu0 0.0
      %1602 = vmatpush2.msra.mxu0 0.0
      %1603 = vmatprep.subr.mxu0 0.0
      %1604 = vmatpush2.msra.mxu0 0.0
      %1605 = vmatprep.subr.mxu0 0.0
      %1606 = vmatpush2.msra.mxu0 0.0
      %1607 = vmatprep.subr.mxu0 0.0
      %1608 = vmatpush2.msra.mxu0 0.0
      %1609 = vmatprep.subr.mxu0 0.0
      %1610 = vmatpush2.msra.mxu0 0.0
      %1611 = vmatprep.subr.mxu0 0.0
      %1612 = vmatpush2.msra.mxu0 0.0
      %1613 = vmatprep.subr.mxu0 0.0
      %1614 = vmatpush2.msra.mxu0 0.0
      %1615 = vmatprep.subr.mxu0 0.0
      %1616 = vmatpush2.msra.mxu0 0.0
      %1617 = vmatprep.subr.mxu0 0.0
      %1618 = vmatpush2.msra.mxu0 0.0
      %1619 = vmatprep.subr.mxu0 0.0
      %1620 = vmatpush2.msra.mxu0 0.0
      %1621 = vmatprep.subr.mxu0 0.0
      %1622 = vmatpush2.msra.mxu0 0.0
      %1623 = vmatprep.subr.mxu0 0.0
      %1624 = vmatpush2.msra.mxu0 0.0
      %1625 = vmatprep.subr.mxu0 0.0
      %1626 = vmatpush2.msra.mxu0 0.0
      %1627 = vmatprep.subr.mxu0 0.0
      %1628 = vmatpush2.msra.mxu0 0.0
      %1629 = vmatprep.subr.mxu0 0.0
      %1630 = vmatpush2.msra.mxu0 0.0
      %1631 = vmatprep.subr.mxu0 0.0
      %1632 = vmatpush2.msra.mxu0 0.0
      %1633 = vmatprep.mubr.f32.mxu0 0.0
      %1634 = vmatmul.mubr.f32.gmra.mxu0 %v1567
      %v1635 = vpop.f32.mrf.mxu0
      %v1636 = vadd.f32 0.0, %v1635
      %v1637 = vpop.f32.mrf.mxu0
      %1638 = vdwg.mxu0
      %v1639 = vsel %vm680, %v1565, 0.0
      %1640 = vadd.xlane.f32.xlu0 %v1639
      %v1641 = vpop.xlane.xlu0 %1640
      %v1642 = vsub.f32 %v1641, %v1636
      %v1643 = vmul.f32 %v1642, %v295
      %v1644 = vmax.f32 %v1643, 0.0
      %v1645 = vrsqrt.pop %v1644
      %v1646 = vmul.f32 %v1644, %v1645
      %vm1647 = vcmp.eq.f32.partialorder %v1644, inf
      %v1648 = vsel %vm1647, %v1644, %v1646
      %vm1649 = vcmp.eq.f32.partialorder %v1644, 0.0
      %v1650 = vand.u32 %v1644, 2147483648
      %v1651 = vsel %vm1649, %v1650, %v1648
      %v1652 = vld [vmem:[%s5 + $0x53] ss:$0 sm:$0xff]
      %1654 = vset.pattern.permute.xlu0 0
      %1655 = vperm.xlu0 %1654, %v1652
      %v1656 = vpop.permute.xlu0 %1655
      %v1658 = vmul.f32 %v1651, %v1656
      %v1659 = vmul.f32 %v1658, 1.442695
      %v1660 = vpow.pop %v1659
      %v1661 = vmax.f32 %v1660, 1e-05
      %v1662 = vmin.f32 %v1661, 100000.0
      %v1663 = vmul.f32 %v1552, %v1662
      %v1664 = vsel %vm286, %v1663, -1e+32
      %v1665 = vsel %vm680, %v1664, -inf
      %1666 = vmax.xlane.f32.xlu0 %v1665
      %v1667 = vpop.xlane.xlu0 %1666
      %v1668 = vsub.f32 %v1664, %v1667
      %v1669 = vmul.f32 %v1668, 1.442695
      %v1670 = vpow.pop %v1669
      %v1671 = vsel %vm680, %v1670, 0.0
      %1672 = vadd.xlane.f32.xlu0 %v1671
      %v1673 = vpop.xlane.xlu0 %1672
      %v1674 = vrcp.pop %v1673
      %v1675 = vmul.f32 %v1670, %v1674
      %v1676 = vpack.c.bf16 %v1675, %v1675
      %v1677 = vpack.c.bf16 %v1503, %v1503
      %v1679 = vsel %vm680, %v1676, 0
      %v1682 = vsel %vm808, %v1677, 0
      %1684 = vmatprep.subr.bf16.mxu0 0
      %1685 = vmatpush1.bf16.msra.mxu0 0
      %1686 = vmatprep.subr.bf16.mxu0 0
      %1687 = vmatpush1.bf16.msra.mxu0 0
      %1688 = vmatprep.subr.bf16.mxu0 0
      %1689 = vmatpush1.bf16.msra.mxu0 0
      %1690 = vmatprep.subr.bf16.mxu0 0
      %1691 = vmatpush1.bf16.msra.mxu0 0
      %1692 = vmatprep.subr.bf16.mxu0 0
      %1693 = vmatpush1.bf16.msra.mxu0 0
      %1694 = vmatprep.subr.bf16.mxu0 0
      %1695 = vmatpush1.bf16.msra.mxu0 0
      %1696 = vmatprep.subr.bf16.mxu0 0
      %1697 = vmatpush1.bf16.msra.mxu0 0
      %1698 = vmatprep.subr.bf16.mxu0 0
      %1699 = vmatpush1.bf16.msra.mxu0 %v1682
      %1700 = vmatprep.subr.bf16.mxu0 0
      %1701 = vmatpush2.bf16.msra.mxu0 0
      %1702 = vmatprep.subr.bf16.mxu0 0
      %1703 = vmatpush2.bf16.msra.mxu0 0
      %1704 = vmatprep.subr.bf16.mxu0 0
      %1705 = vmatpush2.bf16.msra.mxu0 0
      %1706 = vmatprep.subr.bf16.mxu0 0
      %1707 = vmatpush2.bf16.msra.mxu0 0
      %1708 = vmatprep.subr.bf16.mxu0 0
      %1709 = vmatpush2.bf16.msra.mxu0 0
      %1710 = vmatprep.subr.bf16.mxu0 0
      %1711 = vmatpush2.bf16.msra.mxu0 0
      %1712 = vmatprep.subr.bf16.mxu0 0
      %1713 = vmatpush2.bf16.msra.mxu0 0
      %1714 = vmatprep.subr.bf16.mxu0 0
      %1715 = vmatpush2.bf16.msra.mxu0 0
      %1716 = vmatprep.mubr.bf16.mxu0 0
      %1717 = vmatmul.mubr.bf16.gmra.mxu0 %v1679
      %v1718 = vpop.f32.mrf.mxu0
      %v1719 = vadd.f32 0.0, %v1718
      %v1720 = vpop.f32.mrf.mxu0
      %v1721 = vpop.f32.mrf.mxu0
      %v1722 = vpop.f32.mrf.mxu0
      %1723 = vdwg.mxu0
      %s1724 = scalar_lea.vmem %s3, 288
      %v1725 = vld [vmem:[%s1724] sm:$0xf]
      %v1726 = vld [vmem:[%s1724 + $0x4] sm:$0xf]
      %v1727 = vpack.c.bf16 %v1719, %v1719
      %1729 = vrot.lane.b32.xlu0 %v1508, 112
      %v1730 = vpop.permute.xlu0 %1729
      %v1732 = vsel %vm299, %v1730, 0
      %1734 = vmatprep.subr.bf16.mxu0 0
      %1735 = vmatpush1.bf16.xpose.msra.mxu0 0
      %1736 = vmatprep.subr.bf16.mxu0 0
      %1737 = vmatpush1.bf16.xpose.msra.mxu0 0
      %1738 = vmatprep.subr.bf16.mxu0 0
      %1739 = vmatpush1.bf16.xpose.msra.mxu0 0
      %1740 = vmatprep.subr.bf16.mxu0 0
      %1741 = vmatpush1.bf16.xpose.msra.mxu0 0
      %1742 = vmatprep.subr.bf16.mxu0 0
      %1743 = vmatpush1.bf16.xpose.msra.mxu0 0
      %1744 = vmatprep.subr.bf16.mxu0 0
      %1745 = vmatpush1.bf16.xpose.msra.mxu0 0
      %1746 = vmatprep.subr.bf16.mxu0 0
      %1747 = vmatpush1.bf16.xpose.msra.mxu0 0
      %1748 = vmatprep.subr.bf16.mxu0 0
      %1749 = vmatpush1.bf16.xpose.msra.mxu0 %v1732
      %1750 = vmatprep.subr.bf16.mxu0 0
      %1751 = vmatpush2.bf16.xpose.msra.mxu0 0
      %1752 = vmatprep.subr.bf16.mxu0 0
      %1753 = vmatpush2.bf16.xpose.msra.mxu0 0
      %1754 = vmatprep.subr.bf16.mxu0 0
      %1755 = vmatpush2.bf16.xpose.msra.mxu0 0
      %1756 = vmatprep.subr.bf16.mxu0 0
      %1757 = vmatpush2.bf16.xpose.msra.mxu0 0
      %1758 = vmatprep.subr.bf16.mxu0 0
      %1759 = vmatpush2.bf16.xpose.msra.mxu0 0
      %1760 = vmatprep.subr.bf16.mxu0 0
      %1761 = vmatpush2.bf16.xpose.msra.mxu0 0
      %1762 = vmatprep.subr.bf16.mxu0 0
      %1763 = vmatpush2.bf16.xpose.msra.mxu0 0
      %1764 = vmatprep.subr.bf16.mxu0 0
      %1765 = vmatpush2.bf16.xpose.msra.mxu0 0
      %1766 = vmatprep.mubr.bf16.mxu0 0
      %1767 = vmatmul.mubr.bf16.gmra.mxu0 %v1732
      %v1768 = vpop.f32.mrf.mxu0
      %v1769 = vadd.f32 0.0, %v1768
      %v1770 = vpop.f32.mrf.mxu0
      %v1771 = vpop.f32.mrf.mxu0
      %v1772 = vpop.f32.mrf.mxu0
      %1773 = vdwg.mxu0
      %v1774 = vmul.f32 %v1769, 0.25
      %v1775 = vsel %vm286, %v1774, -1e+32
      %v1776 = vsel %vm680, %v1775, -inf
      %1777 = vmax.xlane.f32.xlu0 %v1776
      %v1778 = vpop.xlane.xlu0 %1777
      %v1779 = vsub.f32 %v1775, %v1778
      %v1780 = vmul.f32 %v1779, 1.442695
      %v1781 = vpow.pop %v1780
      %v1782 = vsel %vm680, %v1781, 0.0
      %1783 = vadd.xlane.f32.xlu0 %v1782
      %v1784 = vpop.xlane.xlu0 %1783
      %v1785 = vrcp.pop %v1784
      %v1786 = vmul.f32 %v1781, %v1785
      %v1787 = vmul.f32 %v1786, %v481
      %v1789 = vsel %vm680, %v1787, 0
      %1791 = vmatprep.subr.mxu0 0.0
      %1792 = vmatpush1.msra.mxu0 0.0
      %1793 = vmatprep.subr.mxu0 0.0
      %1794 = vmatpush1.msra.mxu0 0.0
      %1795 = vmatprep.subr.mxu0 0.0
      %1796 = vmatpush1.msra.mxu0 0.0
      %1797 = vmatprep.subr.mxu0 0.0
      %1798 = vmatpush1.msra.mxu0 0.0
      %1799 = vmatprep.subr.mxu0 0.0
      %1800 = vmatpush1.msra.mxu0 0.0
      %1801 = vmatprep.subr.mxu0 0.0
      %1802 = vmatpush1.msra.mxu0 0.0
      %1803 = vmatprep.subr.mxu0 0.0
      %1804 = vmatpush1.msra.mxu0 0.0
      %1805 = vmatprep.subr.mxu0 0.0
      %1806 = vmatpush1.msra.mxu0 0.0
      %1807 = vmatprep.subr.mxu0 0.0
      %1808 = vmatpush1.msra.mxu0 0.0
      %1809 = vmatprep.subr.mxu0 0.0
      %1810 = vmatpush1.msra.mxu0 0.0
      %1811 = vmatprep.subr.mxu0 0.0
      %1812 = vmatpush1.msra.mxu0 0.0
      %1813 = vmatprep.subr.mxu0 0.0
      %1814 = vmatpush1.msra.mxu0 0.0
      %1815 = vmatprep.subr.mxu0 0.0
      %1816 = vmatpush1.msra.mxu0 0.0
      %1817 = vmatprep.subr.mxu0 0.0
      %1818 = vmatpush1.msra.mxu0 0.0
      %1819 = vmatprep.subr.mxu0 0.0
      %1820 = vmatpush1.msra.mxu0 0.0
      %1821 = vmatprep.subr.mxu0 0.0
      %1822 = vmatpush1.msra.mxu0 %v290
      %1823 = vmatprep.subr.mxu0 0.0
      %1824 = vmatpush2.msra.mxu0 0.0
      %1825 = vmatprep.subr.mxu0 0.0
      %1826 = vmatpush2.msra.mxu0 0.0
      %1827 = vmatprep.subr.mxu0 0.0
      %1828 = vmatpush2.msra.mxu0 0.0
      %1829 = vmatprep.subr.mxu0 0.0
      %1830 = vmatpush2.msra.mxu0 0.0
      %1831 = vmatprep.subr.mxu0 0.0
      %1832 = vmatpush2.msra.mxu0 0.0
      %1833 = vmatprep.subr.mxu0 0.0
      %1834 = vmatpush2.msra.mxu0 0.0
      %1835 = vmatprep.subr.mxu0 0.0
      %1836 = vmatpush2.msra.mxu0 0.0
      %1837 = vmatprep.subr.mxu0 0.0
      %1838 = vmatpush2.msra.mxu0 0.0
      %1839 = vmatprep.subr.mxu0 0.0
      %1840 = vmatpush2.msra.mxu0 0.0
      %1841 = vmatprep.subr.mxu0 0.0
      %1842 = vmatpush2.msra.mxu0 0.0
      %1843 = vmatprep.subr.mxu0 0.0
      %1844 = vmatpush2.msra.mxu0 0.0
      %1845 = vmatprep.subr.mxu0 0.0
      %1846 = vmatpush2.msra.mxu0 0.0
      %1847 = vmatprep.subr.mxu0 0.0
      %1848 = vmatpush2.msra.mxu0 0.0
      %1849 = vmatprep.subr.mxu0 0.0
      %1850 = vmatpush2.msra.mxu0 0.0
      %1851 = vmatprep.subr.mxu0 0.0
      %1852 = vmatpush2.msra.mxu0 0.0
      %1853 = vmatprep.subr.mxu0 0.0
      %1854 = vmatpush2.msra.mxu0 0.0
      %1855 = vmatprep.mubr.f32.mxu0 0.0
      %1856 = vmatmul.mubr.f32.gmra.mxu0 %v1789
      %v1857 = vpop.f32.mrf.mxu0
      %v1858 = vadd.f32 0.0, %v1857
      %v1859 = vpop.f32.mrf.mxu0
      %1860 = vdwg.mxu0
      %v1861 = vsel %vm680, %v1787, 0.0
      %1862 = vadd.xlane.f32.xlu0 %v1861
      %v1863 = vpop.xlane.xlu0 %1862
      %v1864 = vsub.f32 %v1863, %v1858
      %v1865 = vmul.f32 %v1864, %v295
      %v1866 = vmax.f32 %v1865, 0.0
      %v1867 = vrsqrt.pop %v1866
      %v1868 = vmul.f32 %v1866, %v1867
      %vm1869 = vcmp.eq.f32.partialorder %v1866, inf
      %v1870 = vsel %vm1869, %v1866, %v1868
      %vm1871 = vcmp.eq.f32.partialorder %v1866, 0.0
      %v1872 = vand.u32 %v1866, 2147483648
      %v1873 = vsel %vm1871, %v1872, %v1870
      %v1874 = vld [vmem:[%s5 + $0x54] ss:$0 sm:$0xff]
      %1876 = vset.pattern.permute.xlu0 0
      %1877 = vperm.xlu0 %1876, %v1874
      %v1878 = vpop.permute.xlu0 %1877
      %v1880 = vmul.f32 %v1873, %v1878
      %v1881 = vmul.f32 %v1880, 1.442695
      %v1882 = vpow.pop %v1881
      %v1883 = vmax.f32 %v1882, 1e-05
      %v1884 = vmin.f32 %v1883, 100000.0
      %v1885 = vmul.f32 %v1774, %v1884
      %v1886 = vsel %vm286, %v1885, -1e+32
      %v1887 = vsel %vm680, %v1886, -inf
      %1888 = vmax.xlane.f32.xlu0 %v1887
      %v1889 = vpop.xlane.xlu0 %1888
      %v1890 = vsub.f32 %v1886, %v1889
      %v1891 = vmul.f32 %v1890, 1.442695
      %v1892 = vpow.pop %v1891
      %v1893 = vsel %vm680, %v1892, 0.0
      %1894 = vadd.xlane.f32.xlu0 %v1893
      %v1895 = vpop.xlane.xlu0 %1894
      %v1896 = vrcp.pop %v1895
      %v1897 = vmul.f32 %v1892, %v1896
      %v1898 = vpack.c.bf16 %v1897, %v1897
      %1900 = vrot.lane.b32.xlu0 %v1677, 112
      %v1901 = vpop.permute.xlu0 %1900
      %v1903 = vsel %vm680, %v1898, 0
      %v1906 = vsel %vm808, %v1901, 0
      %1908 = vmatprep.subr.bf16.mxu0 0
      %1909 = vmatpush1.bf16.msra.mxu0 0
      %1910 = vmatprep.subr.bf16.mxu0 0
      %1911 = vmatpush1.bf16.msra.mxu0 0
      %1912 = vmatprep.subr.bf16.mxu0 0
      %1913 = vmatpush1.bf16.msra.mxu0 0
      %1914 = vmatprep.subr.bf16.mxu0 0
      %1915 = vmatpush1.bf16.msra.mxu0 0
      %1916 = vmatprep.subr.bf16.mxu0 0
      %1917 = vmatpush1.bf16.msra.mxu0 0
      %1918 = vmatprep.subr.bf16.mxu0 0
      %1919 = vmatpush1.bf16.msra.mxu0 0
      %1920 = vmatprep.subr.bf16.mxu0 0
      %1921 = vmatpush1.bf16.msra.mxu0 0
      %1922 = vmatprep.subr.bf16.mxu0 0
      %1923 = vmatpush1.bf16.msra.mxu0 %v1906
      %1924 = vmatprep.subr.bf16.mxu0 0
      %1925 = vmatpush2.bf16.msra.mxu0 0
      %1926 = vmatprep.subr.bf16.mxu0 0
      %1927 = vmatpush2.bf16.msra.mxu0 0
      %1928 = vmatprep.subr.bf16.mxu0 0
      %1929 = vmatpush2.bf16.msra.mxu0 0
      %1930 = vmatprep.subr.bf16.mxu0 0
      %1931 = vmatpush2.bf16.msra.mxu0 0
      %1932 = vmatprep.subr.bf16.mxu0 0
      %1933 = vmatpush2.bf16.msra.mxu0 0
      %1934 = vmatprep.subr.bf16.mxu0 0
      %1935 = vmatpush2.bf16.msra.mxu0 0
      %1936 = vmatprep.subr.bf16.mxu0 0
      %1937 = vmatpush2.bf16.msra.mxu0 0
      %1938 = vmatprep.subr.bf16.mxu0 0
      %1939 = vmatpush2.bf16.msra.mxu0 0
      %1940 = vmatprep.mubr.bf16.mxu0 0
      %1941 = vmatmul.mubr.bf16.gmra.mxu0 %v1903
      %v1942 = vpop.f32.mrf.mxu0
      %v1943 = vadd.f32 0.0, %v1942
      %v1944 = vpop.f32.mrf.mxu0
      %v1945 = vpop.f32.mrf.mxu0
      %v1946 = vpop.f32.mrf.mxu0
      %1947 = vdwg.mxu0
      %v1948 = vld [vmem:[%s1724 + $0x8] sm:$0xf]
      %v1949 = vld [vmem:[%s1724 + $0xc] sm:$0xf]
      %v1950 = vpack.c.bf16 %v1943, %v1943
      %v1953 = vunpack.c.l.b16 %v1948
      %v1954 = vunpack.c.l.b16 %v1949
      %v1955 = vpack.c.b16 %v1954, %v1953
      %v1958 = vsel %vm299, %v1950, 0
      %1960 = vmatprep.subr.bf16.mxu0 0
      %1961 = vmatpush1.bf16.msra.mxu0 0
      %1962 = vmatprep.subr.bf16.mxu0 0
      %1963 = vmatpush1.bf16.msra.mxu0 0
      %1964 = vmatprep.subr.bf16.mxu0 0
      %1965 = vmatpush1.bf16.msra.mxu0 0
      %1966 = vmatprep.subr.bf16.mxu0 0
      %1967 = vmatpush1.bf16.msra.mxu0 0
      %1968 = vmatprep.subr.bf16.mxu0 0
      %1969 = vmatpush1.bf16.msra.mxu0 0
      %1970 = vmatprep.subr.bf16.mxu0 0
      %1971 = vmatpush1.bf16.msra.mxu0 0
      %1972 = vmatprep.subr.bf16.mxu0 0
      %1973 = vmatpush1.bf16.msra.mxu0 0
      %1974 = vmatprep.subr.bf16.mxu0 0
      %1975 = vmatpush1.bf16.msra.mxu0 %v1955
      %1976 = vmatprep.subr.bf16.mxu0 0
      %1977 = vmatpush2.bf16.msra.mxu0 0
      %1978 = vmatprep.subr.bf16.mxu0 0
      %1979 = vmatpush2.bf16.msra.mxu0 0
      %1980 = vmatprep.subr.bf16.mxu0 0
      %1981 = vmatpush2.bf16.msra.mxu0 0
      %1982 = vmatprep.subr.bf16.mxu0 0
      %1983 = vmatpush2.bf16.msra.mxu0 0
      %1984 = vmatprep.subr.bf16.mxu0 0
      %1985 = vmatpush2.bf16.msra.mxu0 0
      %1986 = vmatprep.subr.bf16.mxu0 0
      %1987 = vmatpush2.bf16.msra.mxu0 0
      %1988 = vmatprep.subr.bf16.mxu0 0
      %1989 = vmatpush2.bf16.msra.mxu0 0
      %1990 = vmatprep.subr.bf16.mxu0 0
      %1991 = vmatpush2.bf16.msra.mxu0 0
      %1992 = vmatprep.mubr.bf16.mxu0 0
      %1993 = vmatmul.mubr.bf16.gmra.mxu0 %v1958
      %v1994 = vpop.f32.mrf.mxu0
      %v1995 = vadd.f32 0.0, %v1994
      %v1996 = vpop.f32.mrf.mxu0
      %v1997 = vpop.f32.mrf.mxu0
      %v1998 = vpop.f32.mrf.mxu0
      %1999 = vdwg.mxu0
      %v2002 = vunpack.c.l.b16 %v1725
      %v2003 = vunpack.c.l.b16 %v1726
      %v2004 = vpack.c.b16 %v2003, %v2002
      %v2007 = vsel %vm299, %v1727, 0
      %2009 = vmatprep.subr.bf16.mxu0 0
      %2010 = vmatpush1.bf16.msra.mxu0 0
      %2011 = vmatprep.subr.bf16.mxu0 0
      %2012 = vmatpush1.bf16.msra.mxu0 0
      %2013 = vmatprep.subr.bf16.mxu0 0
      %2014 = vmatpush1.bf16.msra.mxu0 0
      %2015 = vmatprep.subr.bf16.mxu0 0
      %2016 = vmatpush1.bf16.msra.mxu0 0
      %2017 = vmatprep.subr.bf16.mxu0 0
      %2018 = vmatpush1.bf16.msra.mxu0 0
      %2019 = vmatprep.subr.bf16.mxu0 0
      %2020 = vmatpush1.bf16.msra.mxu0 0
      %2021 = vmatprep.subr.bf16.mxu0 0
      %2022 = vmatpush1.bf16.msra.mxu0 0
      %2023 = vmatprep.subr.bf16.mxu0 0
      %2024 = vmatpush1.bf16.msra.mxu0 %v2004
      %2025 = vmatprep.subr.bf16.mxu0 0
      %2026 = vmatpush2.bf16.msra.mxu0 0
      %2027 = vmatprep.subr.bf16.mxu0 0
      %2028 = vmatpush2.bf16.msra.mxu0 0
      %2029 = vmatprep.subr.bf16.mxu0 0
      %2030 = vmatpush2.bf16.msra.mxu0 0
      %2031 = vmatprep.subr.bf16.mxu0 0
      %2032 = vmatpush2.bf16.msra.mxu0 0
      %2033 = vmatprep.subr.bf16.mxu0 0
      %2034 = vmatpush2.bf16.msra.mxu0 0
      %2035 = vmatprep.subr.bf16.mxu0 0
      %2036 = vmatpush2.bf16.msra.mxu0 0
      %2037 = vmatprep.subr.bf16.mxu0 0
      %2038 = vmatpush2.bf16.msra.mxu0 0
      %2039 = vmatprep.subr.bf16.mxu0 0
      %2040 = vmatpush2.bf16.msra.mxu0 0
      %2041 = vmatprep.mubr.bf16.mxu0 0
      %2042 = vmatmul.mubr.bf16.gmra.mxu0 %v2007
      %v2043 = vpop.f32.mrf.mxu0
      %v2044 = vadd.f32 %v1995, %v2043
      %v2045 = vpop.f32.mrf.mxu0
      %v2046 = vpop.f32.mrf.mxu0
      %v2047 = vpop.f32.mrf.mxu0
      %2048 = vdwg.mxu0
      %v2049 = vadd.f32 %v383, %v2044
      %v2050 = vld [vmem:[%s5 + $0x21] ss:$0 sm:$0xff]
      %v2051 = vadd.f32 %v2049, %v2050
      %v2052 = vld [vmem:[%s5 + $0x22] ss:$0 sm:$0xff]
      %v2053 = vld [vmem:[%s5 + $0x23] ss:$0 sm:$0xff]
      %v2054 = vsel %vm367, %v2051, 0.0
      %2055 = vadd.xlane.f32.xlu0 %v2054
      %v2056 = vpop.xlane.xlu0 %2055
      %v2057 = vmul.f32 %v2056, %v371
      %v2058 = vsub.f32 %v2051, %v2057
      %v2059 = vmul.f32 %v2058, %v2058
      %v2060 = vsel %vm367, %v2059, 0.0
      %2061 = vadd.xlane.f32.xlu0 %v2060
      %v2062 = vpop.xlane.xlu0 %2061
      %v2063 = vmul.f32 %v2062, %v371
      %v2064 = vadd.f32 %v2063, 1e-05
      %v2065 = vrsqrt.pop %v2064
      %v2066 = vmul.f32 %v2058, %v2065
      %v2067 = vmul.f32 %v2066, %v2052
      %v2068 = vadd.f32 %v2067, %v2053
      %v2069 = vsel %vm287, 1, 0
      %v2070 = vcvt.s32.f32 %v2069
      %s2071 = scalar_lea.vmem %s3, 320
      %v2072 = vld [vmem:[%s2071] sm:$0xf]
      %v2073 = vld [vmem:[%s2071 + $0x4] sm:$0xf]
      %v2074 = vld [vmem:[%s2071 + $0x8] sm:$0xf]
      %v2075 = vld [vmem:[%s2071 + $0xc] sm:$0xf]
      %v2076 = vpack.c.bf16 %v2068, %v2068
      %v2077 = vld [vmem:[%s5 + $0x24] ss:$0 sm:$0xff]
      %v2082 = vunpack.c.l.b16 %v2072
      %v2083 = vunpack.c.l.b16 %v2073
      %v2084 = vunpack.c.l.b16 %v2074
      %v2085 = vunpack.c.l.b16 %v2075
      %v2086 = vpack.c.b16 %v2083, %v2082
      %v2087 = vpack.c.b16 %v2085, %v2084
      %v2091 = vsel %vm367, %v2076, 0
      %2093 = vmatprep.subr.bf16.mxu0 0
      %2094 = vmatpush1.bf16.msra.mxu0 0
      %2095 = vmatprep.subr.bf16.mxu0 0
      %2096 = vmatpush1.bf16.msra.mxu0 0
      %2097 = vmatprep.subr.bf16.mxu0 0
      %2098 = vmatpush1.bf16.msra.mxu0 0
      %2099 = vmatprep.subr.bf16.mxu0 0
      %2100 = vmatpush1.bf16.msra.mxu0 0
      %2101 = vmatprep.subr.bf16.mxu0 0
      %2102 = vmatpush1.bf16.msra.mxu0 0
      %2103 = vmatprep.subr.bf16.mxu0 0
      %2104 = vmatpush1.bf16.msra.mxu0 0
      %2105 = vmatprep.subr.bf16.mxu0 0
      %2106 = vmatpush1.bf16.msra.mxu0 %v2087
      %2107 = vmatprep.subr.bf16.mxu0 0
      %2108 = vmatpush1.bf16.msra.mxu0 %v2086
      %2109 = vmatprep.subr.bf16.mxu0 0
      %2110 = vmatpush2.bf16.msra.mxu0 0
      %2111 = vmatprep.subr.bf16.mxu0 0
      %2112 = vmatpush2.bf16.msra.mxu0 0
      %2113 = vmatprep.subr.bf16.mxu0 0
      %2114 = vmatpush2.bf16.msra.mxu0 0
      %2115 = vmatprep.subr.bf16.mxu0 0
      %2116 = vmatpush2.bf16.msra.mxu0 0
      %2117 = vmatprep.subr.bf16.mxu0 0
      %2118 = vmatpush2.bf16.msra.mxu0 0
      %2119 = vmatprep.subr.bf16.mxu0 0
      %2120 = vmatpush2.bf16.msra.mxu0 0
      %2121 = vmatprep.subr.bf16.mxu0 0
      %2122 = vmatpush2.bf16.msra.mxu0 0
      %2123 = vmatprep.subr.bf16.mxu0 0
      %2124 = vmatpush2.bf16.msra.mxu0 0
      %2125 = vmatprep.mubr.bf16.mxu0 0
      %2126 = vmatmul.mubr.bf16.gmra.mxu0 %v2091
      %v2127 = vpop.f32.mrf.mxu0
      %v2128 = vadd.f32 %v2077, %v2127
      %v2129 = vpop.f32.mrf.mxu0
      %v2130 = vpop.f32.mrf.mxu0
      %v2131 = vpop.f32.mrf.mxu0
      %2132 = vdwg.mxu0
      %s2133 = scalar_lea.vmem %s3, 352
      %v2134 = vld [vmem:[%s2133] sm:$0xf]
      %v2135 = vld [vmem:[%s2133 + $0x4] sm:$0xf]
      %v2136 = vld [vmem:[%s2133 + $0x8] sm:$0xf]
      %v2137 = vld [vmem:[%s2133 + $0xc] sm:$0xf]
      %v2138 = vld [vmem:[%s2133 + $0x10] sm:$0xf]
      %v2139 = vld [vmem:[%s2133 + $0x14] sm:$0xf]
      %v2140 = vld [vmem:[%s2133 + $0x18] sm:$0xf]
      %v2141 = vld [vmem:[%s2133 + $0x1c] sm:$0xf]
      %v2142 = vpack.c.bf16 %v1387, %v1387
      %v2143 = vld [vmem:[%s5 + $0x25] ss:$0 sm:$0xff]
      %v2152 = vunpack.c.l.b16 %v2134
      %v2153 = vunpack.c.l.b16 %v2135
      %v2154 = vunpack.c.l.b16 %v2136
      %v2155 = vunpack.c.l.b16 %v2137
      %v2156 = vunpack.c.l.b16 %v2138
      %v2157 = vunpack.c.l.b16 %v2139
      %v2158 = vunpack.c.l.b16 %v2140
      %v2159 = vunpack.c.l.b16 %v2141
      %v2160 = vpack.c.b16 %v2153, %v2152
      %v2161 = vpack.c.b16 %v2155, %v2154
      %v2162 = vpack.c.b16 %v2157, %v2156
      %v2163 = vpack.c.b16 %v2159, %v2158
      %v2169 = vsel %vm463, %v2142, 0
      %2171 = vmatprep.subr.bf16.mxu0 0
      %2172 = vmatpush1.bf16.msra.mxu0 0
      %2173 = vmatprep.subr.bf16.mxu0 0
      %2174 = vmatpush1.bf16.msra.mxu0 0
      %2175 = vmatprep.subr.bf16.mxu0 0
      %2176 = vmatpush1.bf16.msra.mxu0 0
      %2177 = vmatprep.subr.bf16.mxu0 0
      %2178 = vmatpush1.bf16.msra.mxu0 0
      %2179 = vmatprep.subr.bf16.mxu0 0
      %2180 = vmatpush1.bf16.msra.mxu0 %v2163
      %2181 = vmatprep.subr.bf16.mxu0 0
      %2182 = vmatpush1.bf16.msra.mxu0 %v2162
      %2183 = vmatprep.subr.bf16.mxu0 0
      %2184 = vmatpush1.bf16.msra.mxu0 %v2161
      %2185 = vmatprep.subr.bf16.mxu0 0
      %2186 = vmatpush1.bf16.msra.mxu0 %v2160
      %2187 = vmatprep.subr.bf16.mxu0 0
      %2188 = vmatpush2.bf16.msra.mxu0 0
      %2189 = vmatprep.subr.bf16.mxu0 0
      %2190 = vmatpush2.bf16.msra.mxu0 0
      %2191 = vmatprep.subr.bf16.mxu0 0
      %2192 = vmatpush2.bf16.msra.mxu0 0
      %2193 = vmatprep.subr.bf16.mxu0 0
      %2194 = vmatpush2.bf16.msra.mxu0 0
      %2195 = vmatprep.subr.bf16.mxu0 0
      %2196 = vmatpush2.bf16.msra.mxu0 0
      %2197 = vmatprep.subr.bf16.mxu0 0
      %2198 = vmatpush2.bf16.msra.mxu0 0
      %2199 = vmatprep.subr.bf16.mxu0 0
      %2200 = vmatpush2.bf16.msra.mxu0 0
      %2201 = vmatprep.subr.bf16.mxu0 0
      %2202 = vmatpush2.bf16.msra.mxu0 0
      %2203 = vmatprep.mubr.bf16.mxu0 0
      %2204 = vmatmul.mubr.bf16.gmra.mxu0 %v2169
      %v2205 = vpop.f32.mrf.mxu0
      %v2206 = vadd.f32 %v2143, %v2205
      %v2207 = vpop.f32.mrf.mxu0
      %v2208 = vpop.f32.mrf.mxu0
      %v2209 = vpop.f32.mrf.mxu0
      %2210 = vdwg.mxu0
      %v2211 = vpack.c.bf16 %v2128, %v2128
      %v2213 = vsel %vm299, %v2211, 0
      %2215 = vmatprep.subr.bf16.mxu0 0
      %2216 = vmatpush1.bf16.xpose.msra.mxu0 0
      %2217 = vmatprep.subr.bf16.mxu0 0
      %2218 = vmatpush1.bf16.xpose.msra.mxu0 0
      %2219 = vmatprep.subr.bf16.mxu0 0
      %2220 = vmatpush1.bf16.xpose.msra.mxu0 0
      %2221 = vmatprep.subr.bf16.mxu0 0
      %2222 = vmatpush1.bf16.xpose.msra.mxu0 0
      %2223 = vmatprep.subr.bf16.mxu0 0
      %2224 = vmatpush1.bf16.xpose.msra.mxu0 0
      %2225 = vmatprep.subr.bf16.mxu0 0
      %2226 = vmatpush1.bf16.xpose.msra.mxu0 0
      %2227 = vmatprep.subr.bf16.mxu0 0
      %2228 = vmatpush1.bf16.xpose.msra.mxu0 0
      %2229 = vmatprep.subr.bf16.mxu0 0
      %2230 = vmatpush1.bf16.xpose.msra.mxu0 %v2213
      %2231 = vmatprep.subr.bf16.mxu0 0
      %2232 = vmatpush2.bf16.xpose.msra.mxu0 0
      %2233 = vmatprep.subr.bf16.mxu0 0
      %2234 = vmatpush2.bf16.xpose.msra.mxu0 0
      %2235 = vmatprep.subr.bf16.mxu0 0
      %2236 = vmatpush2.bf16.xpose.msra.mxu0 0
      %2237 = vmatprep.subr.bf16.mxu0 0
      %2238 = vmatpush2.bf16.xpose.msra.mxu0 0
      %2239 = vmatprep.subr.bf16.mxu0 0
      %2240 = vmatpush2.bf16.xpose.msra.mxu0 0
      %2241 = vmatprep.subr.bf16.mxu0 0
      %2242 = vmatpush2.bf16.xpose.msra.mxu0 0
      %2243 = vmatprep.subr.bf16.mxu0 0
      %2244 = vmatpush2.bf16.xpose.msra.mxu0 0
      %2245 = vmatprep.subr.bf16.mxu0 0
      %2246 = vmatpush2.bf16.xpose.msra.mxu0 0
      %2247 = vmatprep.mubr.bf16.mxu0 0
      %2248 = vmatmul.mubr.bf16.gmra.mxu0 %v2213
      %v2249 = vpop.f32.mrf.mxu0
      %v2250 = vadd.f32 0.0, %v2249
      %v2251 = vpop.f32.mrf.mxu0
      %v2252 = vpop.f32.mrf.mxu0
      %v2253 = vpop.f32.mrf.mxu0
      %2254 = vdwg.mxu0
      %v2255 = vmul.f32 %v2250, 0.25
      %v2256 = vsel %vm287, %v2255, -1e+32
      %v2257 = vsel %vm680, %v2256, -inf
      %2258 = vmax.xlane.f32.xlu0 %v2257
      %v2259 = vpop.xlane.xlu0 %2258
      %v2260 = vsub.f32 %v2256, %v2259
      %v2261 = vmul.f32 %v2260, 1.442695
      %v2262 = vpow.pop %v2261
      %v2263 = vsel %vm680, %v2262, 0.0
      %2264 = vadd.xlane.f32.xlu0 %v2263
      %v2265 = vpop.xlane.xlu0 %2264
      %v2266 = vrcp.pop %v2265
      %v2267 = vmul.f32 %v2262, %v2266
      %v2268 = vmul.f32 %v2267, %v2070
      %v2270 = vsel %vm680, %v2268, 0
      %2272 = vmatprep.subr.mxu0 0.0
      %2273 = vmatpush1.msra.mxu0 0.0
      %2274 = vmatprep.subr.mxu0 0.0
      %2275 = vmatpush1.msra.mxu0 0.0
      %2276 = vmatprep.subr.mxu0 0.0
      %2277 = vmatpush1.msra.mxu0 0.0
      %2278 = vmatprep.subr.mxu0 0.0
      %2279 = vmatpush1.msra.mxu0 0.0
      %2280 = vmatprep.subr.mxu0 0.0
      %2281 = vmatpush1.msra.mxu0 0.0
      %2282 = vmatprep.subr.mxu0 0.0
      %2283 = vmatpush1.msra.mxu0 0.0
      %2284 = vmatprep.subr.mxu0 0.0
      %2285 = vmatpush1.msra.mxu0 0.0
      %2286 = vmatprep.subr.mxu0 0.0
      %2287 = vmatpush1.msra.mxu0 0.0
      %2288 = vmatprep.subr.mxu0 0.0
      %2289 = vmatpush1.msra.mxu0 0.0
      %2290 = vmatprep.subr.mxu0 0.0
      %2291 = vmatpush1.msra.mxu0 0.0
      %2292 = vmatprep.subr.mxu0 0.0
      %2293 = vmatpush1.msra.mxu0 0.0
      %2294 = vmatprep.subr.mxu0 0.0
      %2295 = vmatpush1.msra.mxu0 0.0
      %2296 = vmatprep.subr.mxu0 0.0
      %2297 = vmatpush1.msra.mxu0 0.0
      %2298 = vmatprep.subr.mxu0 0.0
      %2299 = vmatpush1.msra.mxu0 0.0
      %2300 = vmatprep.subr.mxu0 0.0
      %2301 = vmatpush1.msra.mxu0 0.0
      %2302 = vmatprep.subr.mxu0 0.0
      %2303 = vmatpush1.msra.mxu0 %v290
      %2304 = vmatprep.subr.mxu0 0.0
      %2305 = vmatpush2.msra.mxu0 0.0
      %2306 = vmatprep.subr.mxu0 0.0
      %2307 = vmatpush2.msra.mxu0 0.0
      %2308 = vmatprep.subr.mxu0 0.0
      %2309 = vmatpush2.msra.mxu0 0.0
      %2310 = vmatprep.subr.mxu0 0.0
      %2311 = vmatpush2.msra.mxu0 0.0
      %2312 = vmatprep.subr.mxu0 0.0
      %2313 = vmatpush2.msra.mxu0 0.0
      %2314 = vmatprep.subr.mxu0 0.0
      %2315 = vmatpush2.msra.mxu0 0.0
      %2316 = vmatprep.subr.mxu0 0.0
      %2317 = vmatpush2.msra.mxu0 0.0
      %2318 = vmatprep.subr.mxu0 0.0
      %2319 = vmatpush2.msra.mxu0 0.0
      %2320 = vmatprep.subr.mxu0 0.0
      %2321 = vmatpush2.msra.mxu0 0.0
      %2322 = vmatprep.subr.mxu0 0.0
      %2323 = vmatpush2.msra.mxu0 0.0
      %2324 = vmatprep.subr.mxu0 0.0
      %2325 = vmatpush2.msra.mxu0 0.0
      %2326 = vmatprep.subr.mxu0 0.0
      %2327 = vmatpush2.msra.mxu0 0.0
      %2328 = vmatprep.subr.mxu0 0.0
      %2329 = vmatpush2.msra.mxu0 0.0
      %2330 = vmatprep.subr.mxu0 0.0
      %2331 = vmatpush2.msra.mxu0 0.0
      %2332 = vmatprep.subr.mxu0 0.0
      %2333 = vmatpush2.msra.mxu0 0.0
      %2334 = vmatprep.subr.mxu0 0.0
      %2335 = vmatpush2.msra.mxu0 0.0
      %2336 = vmatprep.mubr.f32.mxu0 0.0
      %2337 = vmatmul.mubr.f32.gmra.mxu0 %v2270
      %v2338 = vpop.f32.mrf.mxu0
      %v2339 = vadd.f32 0.0, %v2338
      %v2340 = vpop.f32.mrf.mxu0
      %2341 = vdwg.mxu0
      %v2342 = vsel %vm680, %v2268, 0.0
      %2343 = vadd.xlane.f32.xlu0 %v2342
      %v2344 = vpop.xlane.xlu0 %2343
      %v2345 = vsub.f32 %v2344, %v2339
      %v2346 = vmul.f32 %v2345, %v295
      %v2347 = vmax.f32 %v2346, 0.0
      %v2348 = vrsqrt.pop %v2347
      %v2349 = vmul.f32 %v2347, %v2348
      %vm2350 = vcmp.eq.f32.partialorder %v2347, inf
      %v2351 = vsel %vm2350, %v2347, %v2349
      %vm2352 = vcmp.eq.f32.partialorder %v2347, 0.0
      %v2353 = vand.u32 %v2347, 2147483648
      %v2354 = vsel %vm2352, %v2353, %v2351
      %v2355 = vld [vmem:[%s5 + $0x55] ss:$0 sm:$0xff]
      %2357 = vset.pattern.permute.xlu0 0
      %2358 = vperm.xlu0 %2357, %v2355
      %v2359 = vpop.permute.xlu0 %2358
      %v2361 = vmul.f32 %v2354, %v2359
      %v2362 = vmul.f32 %v2361, 1.442695
      %v2363 = vpow.pop %v2362
      %v2364 = vmax.f32 %v2363, 1e-05
      %v2365 = vmin.f32 %v2364, 100000.0
      %v2366 = vmul.f32 %v2255, %v2365
      %v2367 = vsel %vm287, %v2366, -1e+32
      %v2368 = vsel %vm680, %v2367, -inf
      %2369 = vmax.xlane.f32.xlu0 %v2368
      %v2370 = vpop.xlane.xlu0 %2369
      %v2371 = vsub.f32 %v2367, %v2370
      %v2372 = vmul.f32 %v2371, 1.442695
      %v2373 = vpow.pop %v2372
      %v2374 = vsel %vm680, %v2373, 0.0
      %2375 = vadd.xlane.f32.xlu0 %v2374
      %v2376 = vpop.xlane.xlu0 %2375
      %v2377 = vrcp.pop %v2376
      %v2378 = vmul.f32 %v2373, %v2377
      %vm2379 = vcmp.eq.s32.totalorder %v283, 0
      %v2380 = vsel %vm2379, 0.0, %v2378
      %v2381 = vpack.c.bf16 %v2380, %v2380
      %v2382 = vpack.c.bf16 %v2206, %v2206
      %v2384 = vsel %vm680, %v2381, 0
      %v2387 = vsel %vm808, %v2382, 0
      %2389 = vmatprep.subr.bf16.mxu0 0
      %2390 = vmatpush1.bf16.msra.mxu0 0
      %2391 = vmatprep.subr.bf16.mxu0 0
      %2392 = vmatpush1.bf16.msra.mxu0 0
      %2393 = vmatprep.subr.bf16.mxu0 0
      %2394 = vmatpush1.bf16.msra.mxu0 0
      %2395 = vmatprep.subr.bf16.mxu0 0
      %2396 = vmatpush1.bf16.msra.mxu0 0
      %2397 = vmatprep.subr.bf16.mxu0 0
      %2398 = vmatpush1.bf16.msra.mxu0 0
      %2399 = vmatprep.subr.bf16.mxu0 0
      %2400 = vmatpush1.bf16.msra.mxu0 0
      %2401 = vmatprep.subr.bf16.mxu0 0
      %2402 = vmatpush1.bf16.msra.mxu0 0
      %2403 = vmatprep.subr.bf16.mxu0 0
      %2404 = vmatpush1.bf16.msra.mxu0 %v2387
      %2405 = vmatprep.subr.bf16.mxu0 0
      %2406 = vmatpush2.bf16.msra.mxu0 0
      %2407 = vmatprep.subr.bf16.mxu0 0
      %2408 = vmatpush2.bf16.msra.mxu0 0
      %2409 = vmatprep.subr.bf16.mxu0 0
      %2410 = vmatpush2.bf16.msra.mxu0 0
      %2411 = vmatprep.subr.bf16.mxu0 0
      %2412 = vmatpush2.bf16.msra.mxu0 0
      %2413 = vmatprep.subr.bf16.mxu0 0
      %2414 = vmatpush2.bf16.msra.mxu0 0
      %2415 = vmatprep.subr.bf16.mxu0 0
      %2416 = vmatpush2.bf16.msra.mxu0 0
      %2417 = vmatprep.subr.bf16.mxu0 0
      %2418 = vmatpush2.bf16.msra.mxu0 0
      %2419 = vmatprep.subr.bf16.mxu0 0
      %2420 = vmatpush2.bf16.msra.mxu0 0
      %2421 = vmatprep.mubr.bf16.mxu0 0
      %2422 = vmatmul.mubr.bf16.gmra.mxu0 %v2384
      %v2423 = vpop.f32.mrf.mxu0
      %v2424 = vadd.f32 0.0, %v2423
      %v2425 = vpop.f32.mrf.mxu0
      %v2426 = vpop.f32.mrf.mxu0
      %v2427 = vpop.f32.mrf.mxu0
      %2428 = vdwg.mxu0
      %s2429 = scalar_lea.vmem %s3, 384
      %v2430 = vld [vmem:[%s2429] sm:$0xf]
      %v2431 = vld [vmem:[%s2429 + $0x4] sm:$0xf]
      %v2432 = vld [vmem:[%s2429 + $0x8] sm:$0xf]
      %v2433 = vld [vmem:[%s2429 + $0xc] sm:$0xf]
      %v2434 = vpack.c.bf16 %v2424, %v2424
      %2436 = vrot.lane.b32.xlu0 %v2211, 112
      %v2437 = vpop.permute.xlu0 %2436
      %v2439 = vsel %vm299, %v2437, 0
      %2441 = vmatprep.subr.bf16.mxu0 0
      %2442 = vmatpush1.bf16.xpose.msra.mxu0 0
      %2443 = vmatprep.subr.bf16.mxu0 0
      %2444 = vmatpush1.bf16.xpose.msra.mxu0 0
      %2445 = vmatprep.subr.bf16.mxu0 0
      %2446 = vmatpush1.bf16.xpose.msra.mxu0 0
      %2447 = vmatprep.subr.bf16.mxu0 0
      %2448 = vmatpush1.bf16.xpose.msra.mxu0 0
      %2449 = vmatprep.subr.bf16.mxu0 0
      %2450 = vmatpush1.bf16.xpose.msra.mxu0 0
      %2451 = vmatprep.subr.bf16.mxu0 0
      %2452 = vmatpush1.bf16.xpose.msra.mxu0 0
      %2453 = vmatprep.subr.bf16.mxu0 0
      %2454 = vmatpush1.bf16.xpose.msra.mxu0 0
      %2455 = vmatprep.subr.bf16.mxu0 0
      %2456 = vmatpush1.bf16.xpose.msra.mxu0 %v2439
      %2457 = vmatprep.subr.bf16.mxu0 0
      %2458 = vmatpush2.bf16.xpose.msra.mxu0 0
      %2459 = vmatprep.subr.bf16.mxu0 0
      %2460 = vmatpush2.bf16.xpose.msra.mxu0 0
      %2461 = vmatprep.subr.bf16.mxu0 0
      %2462 = vmatpush2.bf16.xpose.msra.mxu0 0
      %2463 = vmatprep.subr.bf16.mxu0 0
      %2464 = vmatpush2.bf16.xpose.msra.mxu0 0
      %2465 = vmatprep.subr.bf16.mxu0 0
      %2466 = vmatpush2.bf16.xpose.msra.mxu0 0
      %2467 = vmatprep.subr.bf16.mxu0 0
      %2468 = vmatpush2.bf16.xpose.msra.mxu0 0
      %2469 = vmatprep.subr.bf16.mxu0 0
      %2470 = vmatpush2.bf16.xpose.msra.mxu0 0
      %2471 = vmatprep.subr.bf16.mxu0 0
      %2472 = vmatpush2.bf16.xpose.msra.mxu0 0
      %2473 = vmatprep.mubr.bf16.mxu0 0
      %2474 = vmatmul.mubr.bf16.gmra.mxu0 %v2439
      %v2475 = vpop.f32.mrf.mxu0
      %v2476 = vadd.f32 0.0, %v2475
      %v2477 = vpop.f32.mrf.mxu0
      %v2478 = vpop.f32.mrf.mxu0
      %v2479 = vpop.f32.mrf.mxu0
      %2480 = vdwg.mxu0
      %v2481 = vmul.f32 %v2476, 0.25
      %v2482 = vsel %vm287, %v2481, -1e+32
      %v2483 = vsel %vm680, %v2482, -inf
      %2484 = vmax.xlane.f32.xlu0 %v2483
      %v2485 = vpop.xlane.xlu0 %2484
      %v2486 = vsub.f32 %v2482, %v2485
      %v2487 = vmul.f32 %v2486, 1.442695
      %v2488 = vpow.pop %v2487
      %v2489 = vsel %vm680, %v2488, 0.0
      %2490 = vadd.xlane.f32.xlu0 %v2489
      %v2491 = vpop.xlane.xlu0 %2490
      %v2492 = vrcp.pop %v2491
      %v2493 = vmul.f32 %v2488, %v2492
      %v2494 = vmul.f32 %v2493, %v2070
      %v2496 = vsel %vm680, %v2494, 0
      %2498 = vmatprep.subr.mxu0 0.0
      %2499 = vmatpush1.msra.mxu0 0.0
      %2500 = vmatprep.subr.mxu0 0.0
      %2501 = vmatpush1.msra.mxu0 0.0
      %2502 = vmatprep.subr.mxu0 0.0
      %2503 = vmatpush1.msra.mxu0 0.0
      %2504 = vmatprep.subr.mxu0 0.0
      %2505 = vmatpush1.msra.mxu0 0.0
      %2506 = vmatprep.subr.mxu0 0.0
      %2507 = vmatpush1.msra.mxu0 0.0
      %2508 = vmatprep.subr.mxu0 0.0
      %2509 = vmatpush1.msra.mxu0 0.0
      %2510 = vmatprep.subr.mxu0 0.0
      %2511 = vmatpush1.msra.mxu0 0.0
      %2512 = vmatprep.subr.mxu0 0.0
      %2513 = vmatpush1.msra.mxu0 0.0
      %2514 = vmatprep.subr.mxu0 0.0
      %2515 = vmatpush1.msra.mxu0 0.0
      %2516 = vmatprep.subr.mxu0 0.0
      %2517 = vmatpush1.msra.mxu0 0.0
      %2518 = vmatprep.subr.mxu0 0.0
      %2519 = vmatpush1.msra.mxu0 0.0
      %2520 = vmatprep.subr.mxu0 0.0
      %2521 = vmatpush1.msra.mxu0 0.0
      %2522 = vmatprep.subr.mxu0 0.0
      %2523 = vmatpush1.msra.mxu0 0.0
      %2524 = vmatprep.subr.mxu0 0.0
      %2525 = vmatpush1.msra.mxu0 0.0
      %2526 = vmatprep.subr.mxu0 0.0
      %2527 = vmatpush1.msra.mxu0 0.0
      %2528 = vmatprep.subr.mxu0 0.0
      %2529 = vmatpush1.msra.mxu0 %v290
      %2530 = vmatprep.subr.mxu0 0.0
      %2531 = vmatpush2.msra.mxu0 0.0
      %2532 = vmatprep.subr.mxu0 0.0
      %2533 = vmatpush2.msra.mxu0 0.0
      %2534 = vmatprep.subr.mxu0 0.0
      %2535 = vmatpush2.msra.mxu0 0.0
      %2536 = vmatprep.subr.mxu0 0.0
      %2537 = vmatpush2.msra.mxu0 0.0
      %2538 = vmatprep.subr.mxu0 0.0
      %2539 = vmatpush2.msra.mxu0 0.0
      %2540 = vmatprep.subr.mxu0 0.0
      %2541 = vmatpush2.msra.mxu0 0.0
      %2542 = vmatprep.subr.mxu0 0.0
      %2543 = vmatpush2.msra.mxu0 0.0
      %2544 = vmatprep.subr.mxu0 0.0
      %2545 = vmatpush2.msra.mxu0 0.0
      %2546 = vmatprep.subr.mxu0 0.0
      %2547 = vmatpush2.msra.mxu0 0.0
      %2548 = vmatprep.subr.mxu0 0.0
      %2549 = vmatpush2.msra.mxu0 0.0
      %2550 = vmatprep.subr.mxu0 0.0
      %2551 = vmatpush2.msra.mxu0 0.0
      %2552 = vmatprep.subr.mxu0 0.0
      %2553 = vmatpush2.msra.mxu0 0.0
      %2554 = vmatprep.subr.mxu0 0.0
      %2555 = vmatpush2.msra.mxu0 0.0
      %2556 = vmatprep.subr.mxu0 0.0
      %2557 = vmatpush2.msra.mxu0 0.0
      %2558 = vmatprep.subr.mxu0 0.0
      %2559 = vmatpush2.msra.mxu0 0.0
      %2560 = vmatprep.subr.mxu0 0.0
      %2561 = vmatpush2.msra.mxu0 0.0
      %2562 = vmatprep.mubr.f32.mxu0 0.0
      %2563 = vmatmul.mubr.f32.gmra.mxu0 %v2496
      %v2564 = vpop.f32.mrf.mxu0
      %v2565 = vadd.f32 0.0, %v2564
      %v2566 = vpop.f32.mrf.mxu0
      %2567 = vdwg.mxu0
      %v2568 = vsel %vm680, %v2494, 0.0
      %2569 = vadd.xlane.f32.xlu0 %v2568
      %v2570 = vpop.xlane.xlu0 %2569
      %v2571 = vsub.f32 %v2570, %v2565
      %v2572 = vmul.f32 %v2571, %v295
      %v2573 = vmax.f32 %v2572, 0.0
      %v2574 = vrsqrt.pop %v2573
      %v2575 = vmul.f32 %v2573, %v2574
      %vm2576 = vcmp.eq.f32.partialorder %v2573, inf
      %v2577 = vsel %vm2576, %v2573, %v2575
      %vm2578 = vcmp.eq.f32.partialorder %v2573, 0.0
      %v2579 = vand.u32 %v2573, 2147483648
      %v2580 = vsel %vm2578, %v2579, %v2577
      %v2581 = vld [vmem:[%s5 + $0x56] ss:$0 sm:$0xff]
      %2583 = vset.pattern.permute.xlu0 0
      %2584 = vperm.xlu0 %2583, %v2581
      %v2585 = vpop.permute.xlu0 %2584
      %v2587 = vmul.f32 %v2580, %v2585
      %v2588 = vmul.f32 %v2587, 1.442695
      %v2589 = vpow.pop %v2588
      %v2590 = vmax.f32 %v2589, 1e-05
      %v2591 = vmin.f32 %v2590, 100000.0
      %v2592 = vmul.f32 %v2481, %v2591
      %v2593 = vsel %vm287, %v2592, -1e+32
      %v2594 = vsel %vm680, %v2593, -inf
      %2595 = vmax.xlane.f32.xlu0 %v2594
      %v2596 = vpop.xlane.xlu0 %2595
      %v2597 = vsub.f32 %v2593, %v2596
      %v2598 = vmul.f32 %v2597, 1.442695
      %v2599 = vpow.pop %v2598
      %v2600 = vsel %vm680, %v2599, 0.0
      %2601 = vadd.xlane.f32.xlu0 %v2600
      %v2602 = vpop.xlane.xlu0 %2601
      %v2603 = vrcp.pop %v2602
      %v2604 = vmul.f32 %v2599, %v2603
      %v2605 = vsel %vm2379, 0.0, %v2604
      %v2606 = vpack.c.bf16 %v2605, %v2605
      %2608 = vrot.lane.b32.xlu0 %v2382, 96
      %v2609 = vpop.permute.xlu0 %2608
      %v2611 = vsel %vm680, %v2606, 0
      %v2614 = vsel %vm808, %v2609, 0
      %2616 = vmatprep.subr.bf16.mxu0 0
      %2617 = vmatpush1.bf16.msra.mxu0 0
      %2618 = vmatprep.subr.bf16.mxu0 0
      %2619 = vmatpush1.bf16.msra.mxu0 0
      %2620 = vmatprep.subr.bf16.mxu0 0
      %2621 = vmatpush1.bf16.msra.mxu0 0
      %2622 = vmatprep.subr.bf16.mxu0 0
      %2623 = vmatpush1.bf16.msra.mxu0 0
      %2624 = vmatprep.subr.bf16.mxu0 0
      %2625 = vmatpush1.bf16.msra.mxu0 0
      %2626 = vmatprep.subr.bf16.mxu0 0
      %2627 = vmatpush1.bf16.msra.mxu0 0
      %2628 = vmatprep.subr.bf16.mxu0 0
      %2629 = vmatpush1.bf16.msra.mxu0 0
      %2630 = vmatprep.subr.bf16.mxu0 0
      %2631 = vmatpush1.bf16.msra.mxu0 %v2614
      %2632 = vmatprep.subr.bf16.mxu0 0
      %2633 = vmatpush2.bf16.msra.mxu0 0
      %2634 = vmatprep.subr.bf16.mxu0 0
      %2635 = vmatpush2.bf16.msra.mxu0 0
      %2636 = vmatprep.subr.bf16.mxu0 0
      %2637 = vmatpush2.bf16.msra.mxu0 0
      %2638 = vmatprep.subr.bf16.mxu0 0
      %2639 = vmatpush2.bf16.msra.mxu0 0
      %2640 = vmatprep.subr.bf16.mxu0 0
      %2641 = vmatpush2.bf16.msra.mxu0 0
      %2642 = vmatprep.subr.bf16.mxu0 0
      %2643 = vmatpush2.bf16.msra.mxu0 0
      %2644 = vmatprep.subr.bf16.mxu0 0
      %2645 = vmatpush2.bf16.msra.mxu0 0
      %2646 = vmatprep.subr.bf16.mxu0 0
      %2647 = vmatpush2.bf16.msra.mxu0 0
      %2648 = vmatprep.mubr.bf16.mxu0 0
      %2649 = vmatmul.mubr.bf16.gmra.mxu0 %v2611
      %v2650 = vpop.f32.mrf.mxu0
      %v2651 = vadd.f32 0.0, %v2650
      %v2652 = vpop.f32.mrf.mxu0
      %v2653 = vpop.f32.mrf.mxu0
      %v2654 = vpop.f32.mrf.mxu0
      %2655 = vdwg.mxu0
      %v2656 = vld [vmem:[%s2429 + $0x10] sm:$0xf]
      %v2657 = vld [vmem:[%s2429 + $0x14] sm:$0xf]
      %v2658 = vld [vmem:[%s2429 + $0x18] sm:$0xf]
      %v2659 = vld [vmem:[%s2429 + $0x1c] sm:$0xf]
      %v2660 = vpack.c.bf16 %v2651, %v2651
      %v2665 = vunpack.c.l.b16 %v2656
      %v2666 = vunpack.c.l.b16 %v2657
      %v2667 = vunpack.c.l.b16 %v2658
      %v2668 = vunpack.c.l.b16 %v2659
      %v2669 = vpack.c.b16 %v2666, %v2665
      %v2670 = vpack.c.b16 %v2668, %v2667
      %v2674 = vsel %vm367, %v2660, 0
      %2676 = vmatprep.subr.bf16.mxu0 0
      %2677 = vmatpush1.bf16.msra.mxu0 0
      %2678 = vmatprep.subr.bf16.mxu0 0
      %2679 = vmatpush1.bf16.msra.mxu0 0
      %2680 = vmatprep.subr.bf16.mxu0 0
      %2681 = vmatpush1.bf16.msra.mxu0 0
      %2682 = vmatprep.subr.bf16.mxu0 0
      %2683 = vmatpush1.bf16.msra.mxu0 0
      %2684 = vmatprep.subr.bf16.mxu0 0
      %2685 = vmatpush1.bf16.msra.mxu0 0
      %2686 = vmatprep.subr.bf16.mxu0 0
      %2687 = vmatpush1.bf16.msra.mxu0 0
      %2688 = vmatprep.subr.bf16.mxu0 0
      %2689 = vmatpush1.bf16.msra.mxu0 %v2670
      %2690 = vmatprep.subr.bf16.mxu0 0
      %2691 = vmatpush1.bf16.msra.mxu0 %v2669
      %2692 = vmatprep.subr.bf16.mxu0 0
      %2693 = vmatpush2.bf16.msra.mxu0 0
      %2694 = vmatprep.subr.bf16.mxu0 0
      %2695 = vmatpush2.bf16.msra.mxu0 0
      %2696 = vmatprep.subr.bf16.mxu0 0
      %2697 = vmatpush2.bf16.msra.mxu0 0
      %2698 = vmatprep.subr.bf16.mxu0 0
      %2699 = vmatpush2.bf16.msra.mxu0 0
      %2700 = vmatprep.subr.bf16.mxu0 0
      %2701 = vmatpush2.bf16.msra.mxu0 0
      %2702 = vmatprep.subr.bf16.mxu0 0
      %2703 = vmatpush2.bf16.msra.mxu0 0
      %2704 = vmatprep.subr.bf16.mxu0 0
      %2705 = vmatpush2.bf16.msra.mxu0 0
      %2706 = vmatprep.subr.bf16.mxu0 0
      %2707 = vmatpush2.bf16.msra.mxu0 0
      %2708 = vmatprep.mubr.bf16.mxu0 0
      %2709 = vmatmul.mubr.bf16.gmra.mxu0 %v2674
      %v2710 = vpop.f32.mrf.mxu0
      %v2711 = vadd.f32 0.0, %v2710
      %v2712 = vpop.f32.mrf.mxu0
      %v2713 = vpop.f32.mrf.mxu0
      %v2714 = vpop.f32.mrf.mxu0
      %2715 = vdwg.mxu0
      %v2720 = vunpack.c.l.b16 %v2430
      %v2721 = vunpack.c.l.b16 %v2431
      %v2722 = vunpack.c.l.b16 %v2432
      %v2723 = vunpack.c.l.b16 %v2433
      %v2724 = vpack.c.b16 %v2721, %v2720
      %v2725 = vpack.c.b16 %v2723, %v2722
      %v2729 = vsel %vm367, %v2434, 0
      %2731 = vmatprep.subr.bf16.mxu0 0
      %2732 = vmatpush1.bf16.msra.mxu0 0
      %2733 = vmatprep.subr.bf16.mxu0 0
      %2734 = vmatpush1.bf16.msra.mxu0 0
      %2735 = vmatprep.subr.bf16.mxu0 0
      %2736 = vmatpush1.bf16.msra.mxu0 0
      %2737 = vmatprep.subr.bf16.mxu0 0
      %2738 = vmatpush1.bf16.msra.mxu0 0
      %2739 = vmatprep.subr.bf16.mxu0 0
      %2740 = vmatpush1.bf16.msra.mxu0 0
      %2741 = vmatprep.subr.bf16.mxu0 0
      %2742 = vmatpush1.bf16.msra.mxu0 0
      %2743 = vmatprep.subr.bf16.mxu0 0
      %2744 = vmatpush1.bf16.msra.mxu0 %v2725
      %2745 = vmatprep.subr.bf16.mxu0 0
      %2746 = vmatpush1.bf16.msra.mxu0 %v2724
      %2747 = vmatprep.subr.bf16.mxu0 0
      %2748 = vmatpush2.bf16.msra.mxu0 0
      %2749 = vmatprep.subr.bf16.mxu0 0
      %2750 = vmatpush2.bf16.msra.mxu0 0
      %2751 = vmatprep.subr.bf16.mxu0 0
      %2752 = vmatpush2.bf16.msra.mxu0 0
      %2753 = vmatprep.subr.bf16.mxu0 0
      %2754 = vmatpush2.bf16.msra.mxu0 0
      %2755 = vmatprep.subr.bf16.mxu0 0
      %2756 = vmatpush2.bf16.msra.mxu0 0
      %2757 = vmatprep.subr.bf16.mxu0 0
      %2758 = vmatpush2.bf16.msra.mxu0 0
      %2759 = vmatprep.subr.bf16.mxu0 0
      %2760 = vmatpush2.bf16.msra.mxu0 0
      %2761 = vmatprep.subr.bf16.mxu0 0
      %2762 = vmatpush2.bf16.msra.mxu0 0
      %2763 = vmatprep.mubr.bf16.mxu0 0
      %2764 = vmatmul.mubr.bf16.gmra.mxu0 %v2729
      %v2765 = vpop.f32.mrf.mxu0
      %v2766 = vadd.f32 %v2711, %v2765
      %v2767 = vpop.f32.mrf.mxu0
      %v2768 = vpop.f32.mrf.mxu0
      %v2769 = vpop.f32.mrf.mxu0
      %2770 = vdwg.mxu0
      %v2771 = vadd.f32 %v2068, %v2766
      %v2772 = vld [vmem:[%s5 + $0x26] ss:$0 sm:$0xff]
      %v2773 = vadd.f32 %v2771, %v2772
      %v2774 = vld [vmem:[%s5 + $0x27] ss:$0 sm:$0xff]
      %v2775 = vld [vmem:[%s5 + $0x30] ss:$0 sm:$0xff]
      %v2776 = vsel %vm367, %v2773, 0.0
      %2777 = vadd.xlane.f32.xlu0 %v2776
      %v2778 = vpop.xlane.xlu0 %2777
      %v2779 = vmul.f32 %v2778, %v371
      %v2780 = vsub.f32 %v2773, %v2779
      %v2781 = vmul.f32 %v2780, %v2780
      %v2782 = vsel %vm367, %v2781, 0.0
      %2783 = vadd.xlane.f32.xlu0 %v2782
      %v2784 = vpop.xlane.xlu0 %2783
      %v2785 = vmul.f32 %v2784, %v371
      %v2786 = vadd.f32 %v2785, 1e-05
      %v2787 = vrsqrt.pop %v2786
      %v2788 = vmul.f32 %v2780, %v2787
      %v2789 = vmul.f32 %v2788, %v2774
      %v2790 = vadd.f32 %v2789, %v2775
      %s2791 = scalar_lea.vmem %s3, 416
      %v2792 = vld [vmem:[%s2791] sm:$0xf]
      %v2793 = vld [vmem:[%s2791 + $0x4] sm:$0xf]
      %v2794 = vld [vmem:[%s2791 + $0x8] sm:$0xf]
      %v2795 = vld [vmem:[%s2791 + $0xc] sm:$0xf]
      %v2796 = vpack.c.bf16 %v2790, %v2790
      %v2797 = vld [vmem:[%s5 + $0x31] ss:$0 sm:$0xff]
      %v2802 = vunpack.c.l.b16 %v2792
      %v2803 = vunpack.c.l.b16 %v2793
      %v2804 = vunpack.c.l.b16 %v2794
      %v2805 = vunpack.c.l.b16 %v2795
      %v2806 = vpack.c.b16 %v2803, %v2802
      %v2807 = vpack.c.b16 %v2805, %v2804
      %v2811 = vsel %vm367, %v2796, 0
      %2813 = vmatprep.subr.bf16.mxu0 0
      %2814 = vmatpush1.bf16.msra.mxu0 0
      %2815 = vmatprep.subr.bf16.mxu0 0
      %2816 = vmatpush1.bf16.msra.mxu0 0
      %2817 = vmatprep.subr.bf16.mxu0 0
      %2818 = vmatpush1.bf16.msra.mxu0 0
      %2819 = vmatprep.subr.bf16.mxu0 0
      %2820 = vmatpush1.bf16.msra.mxu0 0
      %2821 = vmatprep.subr.bf16.mxu0 0
      %2822 = vmatpush1.bf16.msra.mxu0 0
      %2823 = vmatprep.subr.bf16.mxu0 0
      %2824 = vmatpush1.bf16.msra.mxu0 0
      %2825 = vmatprep.subr.bf16.mxu0 0
      %2826 = vmatpush1.bf16.msra.mxu0 %v2807
      %2827 = vmatprep.subr.bf16.mxu0 0
      %2828 = vmatpush1.bf16.msra.mxu0 %v2806
      %2829 = vmatprep.subr.bf16.mxu0 0
      %2830 = vmatpush2.bf16.msra.mxu0 0
      %2831 = vmatprep.subr.bf16.mxu0 0
      %2832 = vmatpush2.bf16.msra.mxu0 0
      %2833 = vmatprep.subr.bf16.mxu0 0
      %2834 = vmatpush2.bf16.msra.mxu0 0
      %2835 = vmatprep.subr.bf16.mxu0 0
      %2836 = vmatpush2.bf16.msra.mxu0 0
      %2837 = vmatprep.subr.bf16.mxu0 0
      %2838 = vmatpush2.bf16.msra.mxu0 0
      %2839 = vmatprep.subr.bf16.mxu0 0
      %2840 = vmatpush2.bf16.msra.mxu0 0
      %2841 = vmatprep.subr.bf16.mxu0 0
      %2842 = vmatpush2.bf16.msra.mxu0 0
      %2843 = vmatprep.subr.bf16.mxu0 0
      %2844 = vmatpush2.bf16.msra.mxu0 0
      %2845 = vmatprep.mubr.bf16.mxu0 0
      %2846 = vmatmul.mubr.bf16.gmra.mxu0 %v2811
      %v2847 = vpop.f32.mrf.mxu0
      %v2848 = vadd.f32 %v2797, %v2847
      %v2849 = vpop.f32.mrf.mxu0
      %v2850 = vpop.f32.mrf.mxu0
      %v2851 = vpop.f32.mrf.mxu0
      %2852 = vdwg.mxu0
      %v2853 = vmax.f32 %v2848, 0.0
      %s2854 = scalar_lea.vmem %s3, 448
      %v2855 = vld [vmem:[%s2854] sm:$0xf]
      %v2856 = vld [vmem:[%s2854 + $0x4] sm:$0xf]
      %v2857 = vld [vmem:[%s2854 + $0x8] sm:$0xf]
      %v2858 = vld [vmem:[%s2854 + $0xc] sm:$0xf]
      %v2859 = vld [vmem:[%s2854 + $0x10] sm:$0xf]
      %v2860 = vld [vmem:[%s2854 + $0x14] sm:$0xf]
      %v2861 = vld [vmem:[%s2854 + $0x18] sm:$0xf]
      %v2862 = vld [vmem:[%s2854 + $0x1c] sm:$0xf]
      %v2863 = vpack.c.bf16 %v2853, %v2853
      %v2864 = vld [vmem:[%s5 + $0x32] ss:$0 sm:$0xff]
      %v2873 = vunpack.c.l.b16 %v2855
      %v2874 = vunpack.c.l.b16 %v2856
      %v2875 = vunpack.c.l.b16 %v2857
      %v2876 = vunpack.c.l.b16 %v2858
      %v2877 = vunpack.c.l.b16 %v2859
      %v2878 = vunpack.c.l.b16 %v2860
      %v2879 = vunpack.c.l.b16 %v2861
      %v2880 = vunpack.c.l.b16 %v2862
      %v2881 = vpack.c.b16 %v2874, %v2873
      %v2882 = vpack.c.b16 %v2876, %v2875
      %v2883 = vpack.c.b16 %v2878, %v2877
      %v2884 = vpack.c.b16 %v2880, %v2879
      %v2890 = vsel %vm463, %v2863, 0
      %2892 = vmatprep.subr.bf16.mxu0 0
      %2893 = vmatpush1.bf16.msra.mxu0 0
      %2894 = vmatprep.subr.bf16.mxu0 0
      %2895 = vmatpush1.bf16.msra.mxu0 0
      %2896 = vmatprep.subr.bf16.mxu0 0
      %2897 = vmatpush1.bf16.msra.mxu0 0
      %2898 = vmatprep.subr.bf16.mxu0 0
      %2899 = vmatpush1.bf16.msra.mxu0 0
      %2900 = vmatprep.subr.bf16.mxu0 0
      %2901 = vmatpush1.bf16.msra.mxu0 %v2884
      %2902 = vmatprep.subr.bf16.mxu0 0
      %2903 = vmatpush1.bf16.msra.mxu0 %v2883
      %2904 = vmatprep.subr.bf16.mxu0 0
      %2905 = vmatpush1.bf16.msra.mxu0 %v2882
      %2906 = vmatprep.subr.bf16.mxu0 0
      %2907 = vmatpush1.bf16.msra.mxu0 %v2881
      %2908 = vmatprep.subr.bf16.mxu0 0
      %2909 = vmatpush2.bf16.msra.mxu0 0
      %2910 = vmatprep.subr.bf16.mxu0 0
      %2911 = vmatpush2.bf16.msra.mxu0 0
      %2912 = vmatprep.subr.bf16.mxu0 0
      %2913 = vmatpush2.bf16.msra.mxu0 0
      %2914 = vmatprep.subr.bf16.mxu0 0
      %2915 = vmatpush2.bf16.msra.mxu0 0
      %2916 = vmatprep.subr.bf16.mxu0 0
      %2917 = vmatpush2.bf16.msra.mxu0 0
      %2918 = vmatprep.subr.bf16.mxu0 0
      %2919 = vmatpush2.bf16.msra.mxu0 0
      %2920 = vmatprep.subr.bf16.mxu0 0
      %2921 = vmatpush2.bf16.msra.mxu0 0
      %2922 = vmatprep.subr.bf16.mxu0 0
      %2923 = vmatpush2.bf16.msra.mxu0 0
      %2924 = vmatprep.mubr.bf16.mxu0 0
      %2925 = vmatmul.mubr.bf16.gmra.mxu0 %v2890
      %v2926 = vpop.f32.mrf.mxu0
      %v2927 = vadd.f32 %v2864, %v2926
      %v2928 = vpop.f32.mrf.mxu0
      %v2929 = vpop.f32.mrf.mxu0
      %v2930 = vpop.f32.mrf.mxu0
      %2931 = vdwg.mxu0
      %v2932 = vadd.f32 %v2790, %v2927
      %v2933 = vld [vmem:[%s5 + $0x33] ss:$0 sm:$0xff]
      %v2934 = vld [vmem:[%s5 + $0x34] ss:$0 sm:$0xff]
      %v2935 = vsel %vm367, %v2932, 0.0
      %2936 = vadd.xlane.f32.xlu0 %v2935
      %v2937 = vpop.xlane.xlu0 %2936
      %v2938 = vmul.f32 %v2937, %v371
      %v2939 = vsub.f32 %v2932, %v2938
      %v2940 = vmul.f32 %v2939, %v2939
      %v2941 = vsel %vm367, %v2940, 0.0
      %2942 = vadd.xlane.f32.xlu0 %v2941
      %v2943 = vpop.xlane.xlu0 %2942
      %v2944 = vmul.f32 %v2943, %v371
      %v2945 = vadd.f32 %v2944, 1e-05
      %v2946 = vrsqrt.pop %v2945
      %v2947 = vmul.f32 %v2939, %v2946
      %v2948 = vmul.f32 %v2947, %v2933
      %v2949 = vadd.f32 %v2948, %v2934
      %v2950 = vsel %vm367, %v2949, 0.0
      %2951 = vadd.xlane.f32.xlu0 %v2950
      %v2952 = vpop.xlane.xlu0 %2951
      %v2953 = vsel %vm367, %v383, 0.0
      %2954 = vadd.xlane.f32.xlu0 %v2953
      %v2955 = vpop.xlane.xlu0 %2954
      %v2956 = vadd.f32 %v2952, %v2955
      %v2957 = vmul.f32 %v2956, %v467
      %v2958 = vsub.f32 %v2949, %v2957
      %v2959 = vsub.f32 %v383, %v2957
      %v2960 = vmul.f32 %v2958, %v2958
      %v2961 = vsel %vm367, %v2960, 0.0
      %2962 = vadd.xlane.f32.xlu0 %v2961
      %v2963 = vpop.xlane.xlu0 %2962
      %v2964 = vmul.f32 %v2959, %v2959
      %v2965 = vsel %vm367, %v2964, 0.0
      %2966 = vadd.xlane.f32.xlu0 %v2965
      %v2967 = vpop.xlane.xlu0 %2966
      %v2968 = vadd.f32 %v2963, %v2967
      %v2969 = vmul.f32 %v2968, %v467
      %v2970 = vadd.f32 %v2969, 1e-05
      %v2971 = vrsqrt.pop %v2970
      %v2972 = vmul.f32 %v2958, %v2971
      %v2973 = vld [vmem:[%s5 + $0x35] ss:$0 sm:$0xff]
      %v2974 = vmul.f32 %v2972, %v2973
      %v2975 = vld [vmem:[%s5 + $0x37] ss:$0 sm:$0xff]
      %v2976 = vadd.f32 %v2974, %v2975
      %v2977 = vmul.f32 %v2959, %v2971
      %v2978 = vld [vmem:[%s5 + $0x36] ss:$0 sm:$0xff]
      %v2979 = vmul.f32 %v2977, %v2978
      %v2980 = vld [vmem:[%s5 + $0x40] ss:$0 sm:$0xff]
      %v2981 = vadd.f32 %v2979, %v2980
      %s2982 = scalar_lea.vmem %s3, 480
      %v2983 = vld [vmem:[%s2982] sm:$0xf]
      %v2984 = vld [vmem:[%s2982 + $0x4] sm:$0xf]
      %v2985 = vld [vmem:[%s2982 + $0x8] sm:$0xf]
      %v2986 = vld [vmem:[%s2982 + $0xc] sm:$0xf]
      %v2987 = vld [vmem:[%s2982 + $0x10] sm:$0xf]
      %v2988 = vld [vmem:[%s2982 + $0x14] sm:$0xf]
      %v2989 = vld [vmem:[%s2982 + $0x18] sm:$0xf]
      %v2990 = vld [vmem:[%s2982 + $0x1c] sm:$0xf]
      %v2991 = vpack.c.bf16 %v2976, %v2976
      %v2992 = vpack.c.bf16 %v2981, %v2981
      %v2997 = vunpack.c.l.b16 %v2987
      %v2998 = vunpack.c.l.b16 %v2988
      %v2999 = vunpack.c.l.b16 %v2989
      %v3000 = vunpack.c.l.b16 %v2990
      %v3001 = vpack.c.b16 %v2998, %v2997
      %v3002 = vpack.c.b16 %v3000, %v2999
      %v3006 = vsel %vm367, %v2992, 0
      %3008 = vmatprep.subr.bf16.mxu0 0
      %3009 = vmatpush1.bf16.msra.mxu0 0
      %3010 = vmatprep.subr.bf16.mxu0 0
      %3011 = vmatpush1.bf16.msra.mxu0 0
      %3012 = vmatprep.subr.bf16.mxu0 0
      %3013 = vmatpush1.bf16.msra.mxu0 0
      %3014 = vmatprep.subr.bf16.mxu0 0
      %3015 = vmatpush1.bf16.msra.mxu0 0
      %3016 = vmatprep.subr.bf16.mxu0 0
      %3017 = vmatpush1.bf16.msra.mxu0 0
      %3018 = vmatprep.subr.bf16.mxu0 0
      %3019 = vmatpush1.bf16.msra.mxu0 0
      %3020 = vmatprep.subr.bf16.mxu0 0
      %3021 = vmatpush1.bf16.msra.mxu0 %v3002
      %3022 = vmatprep.subr.bf16.mxu0 0
      %3023 = vmatpush1.bf16.msra.mxu0 %v3001
      %3024 = vmatprep.subr.bf16.mxu0 0
      %3025 = vmatpush2.bf16.msra.mxu0 0
      %3026 = vmatprep.subr.bf16.mxu0 0
      %3027 = vmatpush2.bf16.msra.mxu0 0
      %3028 = vmatprep.subr.bf16.mxu0 0
      %3029 = vmatpush2.bf16.msra.mxu0 0
      %3030 = vmatprep.subr.bf16.mxu0 0
      %3031 = vmatpush2.bf16.msra.mxu0 0
      %3032 = vmatprep.subr.bf16.mxu0 0
      %3033 = vmatpush2.bf16.msra.mxu0 0
      %3034 = vmatprep.subr.bf16.mxu0 0
      %3035 = vmatpush2.bf16.msra.mxu0 0
      %3036 = vmatprep.subr.bf16.mxu0 0
      %3037 = vmatpush2.bf16.msra.mxu0 0
      %3038 = vmatprep.subr.bf16.mxu0 0
      %3039 = vmatpush2.bf16.msra.mxu0 0
      %3040 = vmatprep.mubr.bf16.mxu0 0
      %3041 = vmatmul.mubr.bf16.gmra.mxu0 %v3006
      %v3042 = vpop.f32.mrf.mxu0
      %v3043 = vadd.f32 0.0, %v3042
      %v3044 = vpop.f32.mrf.mxu0
      %v3045 = vpop.f32.mrf.mxu0
      %v3046 = vpop.f32.mrf.mxu0
      %3047 = vdwg.mxu0
      %v3052 = vunpack.c.l.b16 %v2983
      %v3053 = vunpack.c.l.b16 %v2984
      %v3054 = vunpack.c.l.b16 %v2985
      %v3055 = vunpack.c.l.b16 %v2986
      %v3056 = vpack.c.b16 %v3053, %v3052
      %v3057 = vpack.c.b16 %v3055, %v3054
      %v3061 = vsel %vm367, %v2991, 0
      %3063 = vmatprep.subr.bf16.mxu0 0
      %3064 = vmatpush1.bf16.msra.mxu0 0
      %3065 = vmatprep.subr.bf16.mxu0 0
      %3066 = vmatpush1.bf16.msra.mxu0 0
      %3067 = vmatprep.subr.bf16.mxu0 0
      %3068 = vmatpush1.bf16.msra.mxu0 0
      %3069 = vmatprep.subr.bf16.mxu0 0
      %3070 = vmatpush1.bf16.msra.mxu0 0
      %3071 = vmatprep.subr.bf16.mxu0 0
      %3072 = vmatpush1.bf16.msra.mxu0 0
      %3073 = vmatprep.subr.bf16.mxu0 0
      %3074 = vmatpush1.bf16.msra.mxu0 0
      %3075 = vmatprep.subr.bf16.mxu0 0
      %3076 = vmatpush1.bf16.msra.mxu0 %v3057
      %3077 = vmatprep.subr.bf16.mxu0 0
      %3078 = vmatpush1.bf16.msra.mxu0 %v3056
      %3079 = vmatprep.subr.bf16.mxu0 0
      %3080 = vmatpush2.bf16.msra.mxu0 0
      %3081 = vmatprep.subr.bf16.mxu0 0
      %3082 = vmatpush2.bf16.msra.mxu0 0
      %3083 = vmatprep.subr.bf16.mxu0 0
      %3084 = vmatpush2.bf16.msra.mxu0 0
      %3085 = vmatprep.subr.bf16.mxu0 0
      %3086 = vmatpush2.bf16.msra.mxu0 0
      %3087 = vmatprep.subr.bf16.mxu0 0
      %3088 = vmatpush2.bf16.msra.mxu0 0
      %3089 = vmatprep.subr.bf16.mxu0 0
      %3090 = vmatpush2.bf16.msra.mxu0 0
      %3091 = vmatprep.subr.bf16.mxu0 0
      %3092 = vmatpush2.bf16.msra.mxu0 0
      %3093 = vmatprep.subr.bf16.mxu0 0
      %3094 = vmatpush2.bf16.msra.mxu0 0
      %3095 = vmatprep.mubr.bf16.mxu0 0
      %3096 = vmatmul.mubr.bf16.gmra.mxu0 %v3061
      %v3097 = vpop.f32.mrf.mxu0
      %v3098 = vadd.f32 %v3043, %v3097
      %v3099 = vpop.f32.mrf.mxu0
      %v3100 = vpop.f32.mrf.mxu0
      %v3101 = vpop.f32.mrf.mxu0
      %3102 = vdwg.mxu0
      %v3103 = vld [vmem:[%s5 + $0x41] ss:$0 sm:$0xff]
      %v3104 = vadd.f32 %v3098, %v3103
      %v3105 = vmax.f32 %v3104, 0.0
      %v3106 = vld [vmem:[%s5 + $0x42] ss:$0 sm:$0xff]
      %v3107 = vld [vmem:[%s5 + $0x43] ss:$0 sm:$0xff]
      %v3108 = vsel %vm463, %v3105, 0.0
      %3109 = vadd.xlane.f32.xlu0 %v3108
      %v3110 = vpop.xlane.xlu0 %3109
      %v3111 = vmul.f32 %v3110, %v467
      %v3112 = vsub.f32 %v3105, %v3111
      %v3113 = vmul.f32 %v3112, %v3112
      %v3114 = vsel %vm463, %v3113, 0.0
      %3115 = vadd.xlane.f32.xlu0 %v3114
      %v3116 = vpop.xlane.xlu0 %3115
      %v3117 = vmul.f32 %v3116, %v467
      %v3118 = vadd.f32 %v3117, 1e-05
      %v3119 = vrsqrt.pop %v3118
      %v3120 = vmul.f32 %v3112, %v3119
      %v3121 = vmul.f32 %v3120, %v3106
      %v3122 = vadd.f32 %v3121, %v3107
      %v3123 = vld [vmem:[%s4] sm:$0xff]
      %v3124 = vld [vmem:[%s4 + $0x8] sm:$0xff]
      %v3125 = vld [vmem:[%s4 + $0x10] sm:$0xff]
      %v3126 = vld [vmem:[%s4 + $0x18] sm:$0xff]
      %v3127 = vld [vmem:[%s4 + $0x20] sm:$0xff]
      %v3128 = vld [vmem:[%s4 + $0x28] sm:$0xff]
      %v3129 = vld [vmem:[%s4 + $0x30] sm:$0xff]
      %v3130 = vld [vmem:[%s4 + $0x38] sm:$0xff]
      %v3131 = vpack.c.bf16 %v3122, %v3122
      %s3132 = scalar_lea.vmem %s5, 68
      %v3133 = vld [vmem:[%s3132] ss:$8 sm:$0x3]
      %v3135 = vlaneseq
      %v3136 = vshrl.u32 %v3135, 7
      %v3137 = vsub.s32 0, %v3136
      %v3138 = vrot.slane %v3133, %v3137
      %v3139 = vlaneseq
      %v3140 = vshrl.u32 %v3139, 7
      %v3141 = vsub.s32 1, %v3140
      %v3142 = vrot.slane %v3133, %v3141
      %v3153 = vunpack.c.l.b16 %v3123
      %v3154 = vunpack.c.h.b16 %v3123
      %v3155 = vunpack.c.l.b16 %v3124
      %v3156 = vunpack.c.h.b16 %v3124
      %v3157 = vunpack.c.l.b16 %v3125
      %v3158 = vunpack.c.h.b16 %v3125
      %v3159 = vunpack.c.l.b16 %v3126
      %v3160 = vunpack.c.h.b16 %v3126
      %v3161 = vunpack.c.l.b16 %v3127
      %v3162 = vunpack.c.h.b16 %v3127
      %v3163 = vunpack.c.l.b16 %v3128
      %v3164 = vunpack.c.h.b16 %v3128
      %v3165 = vunpack.c.l.b16 %v3129
      %v3166 = vunpack.c.h.b16 %v3129
      %v3167 = vunpack.c.l.b16 %v3130
      %v3168 = vunpack.c.h.b16 %v3130
      %v3169 = vpack.c.b16 %v3155, %v3153
      %v3170 = vpack.c.b16 %v3156, %v3154
      %v3171 = vpack.c.b16 %v3159, %v3157
      %v3172 = vpack.c.b16 %v3160, %v3158
      %v3173 = vpack.c.b16 %v3163, %v3161
      %v3174 = vpack.c.b16 %v3164, %v3162
      %v3175 = vpack.c.b16 %v3167, %v3165
      %v3176 = vpack.c.b16 %v3168, %v3166
      %v3186 = vsel %vm463, %v3131, 0
      %3188 = vmatprep.subr.bf16.mxu0 0
      %3189 = vmatpush1.bf16.msra.mxu0 0
      %3190 = vmatprep.subr.bf16.mxu0 0
      %3191 = vmatpush1.bf16.msra.mxu0 0
      %3192 = vmatprep.subr.bf16.mxu0 0
      %3193 = vmatpush1.bf16.msra.mxu0 0
      %3194 = vmatprep.subr.bf16.mxu0 0
      %3195 = vmatpush1.bf16.msra.mxu0 0
      %3196 = vmatprep.subr.bf16.mxu0 %v3176
      %3197 = vmatpush1.bf16.msra.mxu0 %v3175
      %3198 = vmatprep.subr.bf16.mxu0 %v3174
      %3199 = vmatpush1.bf16.msra.mxu0 %v3173
      %3200 = vmatprep.subr.bf16.mxu0 %v3172
      %3201 = vmatpush1.bf16.msra.mxu0 %v3171
      %3202 = vmatprep.subr.bf16.mxu0 %v3170
      %3203 = vmatpush1.bf16.msra.mxu0 %v3169
      %3204 = vmatprep.subr.bf16.mxu0 0
      %3205 = vmatpush2.bf16.msra.mxu0 0
      %3206 = vmatprep.subr.bf16.mxu0 0
      %3207 = vmatpush2.bf16.msra.mxu0 0
      %3208 = vmatprep.subr.bf16.mxu0 0
      %3209 = vmatpush2.bf16.msra.mxu0 0
      %3210 = vmatprep.subr.bf16.mxu0 0
      %3211 = vmatpush2.bf16.msra.mxu0 0
      %3212 = vmatprep.subr.bf16.mxu0 0
      %3213 = vmatpush2.bf16.msra.mxu0 0
      %3214 = vmatprep.subr.bf16.mxu0 0
      %3215 = vmatpush2.bf16.msra.mxu0 0
      %3216 = vmatprep.subr.bf16.mxu0 0
      %3217 = vmatpush2.bf16.msra.mxu0 0
      %3218 = vmatprep.subr.bf16.mxu0 0
      %3219 = vmatpush2.bf16.msra.mxu0 0
      %3220 = vmatprep.mubr.bf16.mxu0 0
      %3221 = vmatmul.mubr.bf16.gmra.mxu0 %v3186
      %v3222 = vpop.f32.mrf.mxu0
      %v3223 = vadd.f32 %v3138, %v3222
      %v3224 = vpop.f32.mrf.mxu0
      %v3225 = vadd.f32 %v3142, %v3224
      %v3226 = vpop.f32.mrf.mxu0
      %v3227 = vpop.f32.mrf.mxu0
      %3228 = vdwg.mxu0
      %v3229 = vmax.f32 %v3223, 0.0
      %v3230 = vmax.f32 %v3225, 0.0
      %s3231 = scalar_lea.vmem %s5, 69
      %v3232 = vld [vmem:[%s3231] ss:$8 sm:$0x3]
      %s3233 = scalar_lea.vmem %s5, 70
      %v3234 = vld [vmem:[%s3233] ss:$8 sm:$0x3]
      %v3235 = vadd.f32 %v3229, %v3230
      %3236 = vadd.xlane.f32.xlu0 %v3235
      %v3237 = vpop.xlane.xlu0 %3236
      %v3238 = vrcp.pop 256.0
      %v3239 = vmul.f32 %v3237, %v3238
      %v3240 = vsub.f32 %v3229, %v3239
      %v3241 = vsub.f32 %v3230, %v3239
      %v3242 = vmul.f32 %v3240, %v3240
      %v3243 = vmul.f32 %v3241, %v3241
      %v3244 = vadd.f32 %v3242, %v3243
      %3245 = vadd.xlane.f32.xlu0 %v3244
      %v3246 = vpop.xlane.xlu0 %3245
      %v3247 = vmul.f32 %v3246, %v3238
      %v3248 = vadd.f32 %v3247, 1e-05
      %v3249 = vrsqrt.pop %v3248
      %v3250 = vmul.f32 %v3240, %v3249
      %v3251 = vmul.f32 %v3241, %v3249
      %v3253 = vlaneseq
      %v3254 = vshrl.u32 %v3253, 7
      %v3255 = vsub.s32 0, %v3254
      %v3256 = vrot.slane %v3232, %v3255
      %v3257 = vlaneseq
      %v3258 = vshrl.u32 %v3257, 7
      %v3259 = vsub.s32 1, %v3258
      %v3260 = vrot.slane %v3232, %v3259
      %v3263 = vmul.f32 %v3250, %v3256
      %v3264 = vmul.f32 %v3251, %v3260
      %v3266 = vlaneseq
      %v3267 = vshrl.u32 %v3266, 7
      %v3268 = vsub.s32 0, %v3267
      %v3269 = vrot.slane %v3234, %v3268
      %v3270 = vlaneseq
      %v3271 = vshrl.u32 %v3270, 7
      %v3272 = vsub.s32 1, %v3271
      %v3273 = vrot.slane %v3234, %v3272
      %v3276 = vadd.f32 %v3263, %v3269
      %v3277 = vadd.f32 %v3264, %v3273
      %s3278 = scalar_lea.vmem %s5, 71
      %v3279 = vld [vmem:[%s3278] ss:$8 sm:$0x3]
      %v3281 = vlaneseq
      %v3282 = vshrl.u32 %v3281, 7
      %v3283 = vsub.s32 0, %v3282
      %v3284 = vrot.slane %v3279, %v3283
      %v3285 = vlaneseq
      %v3286 = vshrl.u32 %v3285, 7
      %v3287 = vsub.s32 1, %v3286
      %v3288 = vrot.slane %v3279, %v3287
      %v3291 = vmul.f32 %v3276, %v3284
      %v3292 = vmul.f32 %v3277, %v3288
      %v3293 = vadd.f32 %v3291, %v3292
      %3294 = vadd.xlane.f32.xlu0 %v3293
      %v3295 = vpop.xlane.xlu0 %3294
      %v3296 = vld [vmem:[%s5 + $0x50] ss:$0 sm:$0xff]
      %v3297 = vadd.f32 %v3295, %v3296
      %3299 = vset.pattern.permute.xlu0 0
      %3300 = vperm.xlu0 %3299, %v3297
      %v3301 = vpop.permute.xlu0 %3300
      %3303 = vst [vmem:[%s280] sm:$0xff] %v3301
      %p3304 = scmp.lt.s32.totalorder %s17, 1
      %s3305 = scalar_select %p3304, %s17, 1
      %s3306 = smul.addr %s3305, 8
      %s3307 = scalar_lea.vmem %s6, %s3306
      // Predicated region
      $region45: #{qakt_forward.1} parent=43 // pred_check
        %p3308 = pneg %p176
      $region46: #{qakt_forward.1} parent=43 // pred_check_branch
        %3310 = sbr.rel (%p3308) target = $region48
      $region47: #{qakt_forward.1} parent=43 // pred_region
        _
      $region48: #{qakt_forward.1} parent=43 // pred_fallthru
        _
    $region44: #{qakt_forward.1} parent=5 // pred_fallthru
      _
    %p3311 = scmp.le.s32.totalorder 2, %s12
    // Predicated region
    $region49: #{qakt_forward.1} parent=5 // pred_check
      %p3312 = pneg %p3311
    $region50: #{qakt_forward.1} parent=5 // pred_check_branch
      %3314 = sbr.rel (%p3312) target = $region52
    $region51: #{qakt_forward.1} parent=5 // pred_region
      %s3315 = ssub.s32 %s12, 2
      // Predicated region
      $region53: #{qakt_forward.1} parent=51 // pred_check
        %p3316 = pneg %p182
      $region54: #{qakt_forward.1} parent=51 // pred_check_branch
        %3318 = sbr.rel (%p3316) target = $region56
      $region55: #{qakt_forward.1} parent=51 // pred_region
        %p3319 = scmp.lt.s32.totalorder %s18, 1
        %s3320 = scalar_select %p3319, %s18, 1
        %s3321 = smul.addr %s3320, 8
        %s3322 = scalar_lea.vmem %s6, %s3321
      $region56: #{qakt_forward.1} parent=51 // pred_fallthru
        _
    $region52: #{qakt_forward.1} parent=5 // pred_fallthru
      _
  $region6: #{qakt_forward.1} parent=0 // loop_footer
    %s16 = sadd.s32 1, %s12
  $region7: #{qakt_forward.1} parent=0 // loop_footer_branch
    %11 = sbr.rel target = $region3
  $region8: #{qakt_forward.1} parent=0 // loop_exit
    _

</llo_original>
